<compile_context>
chip_gen: v7x
topology: tpu7x:2x2x1
jax: 0.10.0
libtpu: 0.0.40
codegen_flags: <defaults>
</compile_context>

<pallas_src>
import functools

import jax
import jax.numpy as jnp
from jax.experimental import pallas as pl
from jax.experimental.pallas import tpu as pltpu

BATCH = 2
SEQ_LEN = 48
DIM = 32
HEADS = 2
DIM_HEAD = 16
INNER = HEADS * DIM_HEAD  # 32


# --------------------------- in-kernel math helpers ---------------------------
def _sparsemax_lane_dense(z):
    """Sparsemax along the last axis of z: (Z, nq, nk).

    Works in a transposed (nk, Z*nq) layout so the Z*nq independent problems sit
    densely on the lane axis.  Support test uses the relu-sum identity
        j in S(z)  <=>  sum_jp relu(z_jp - z_j) < 1
    so the O(nk^2 * Z*nq) pass is a single subtract/relu/accumulate chain of
    lane-dense VPU vreg ops (no pairwise tensor materialized in VMEM).
    """
    Z, nq, nk = z.shape
    zt = z.reshape(Z * nq, nk).T                          # (nk, Z*nq)  XLU transpose

    r = jnp.zeros_like(zt)
    for jp in range(nk):                                  # unrolled: static row slice,
        r = r + jnp.maximum(zt[jp:jp + 1, :] - zt, 0.0)   # sublane-bcast, sub/relu/add

    support = jnp.where(r < 1.0, 1.0, 0.0)                # (nk, Z*nq)
    k_star = jnp.sum(support, axis=0, keepdims=True)      # (1, Z*nq), always >= 1
    s_star = jnp.sum(zt * support, axis=0, keepdims=True)
    tau = (s_star - 1.0) / k_star
    p_t = jnp.maximum(zt - tau, 0.0)                      # (nk, Z*nq)
    return p_t.T.reshape(Z, nq, nk)                       # transpose back (XLU)


# --------------------------------- kernel ------------------------------------
def attention_kernel(x_ref, wqkv_ref, wo_ref, bo_ref, o_ref, *, heads, dim_head):
    B, N, D = x_ref.shape
    inner = heads * dim_head
    x2 = x_ref[...].reshape(B * N, D)                     # free leading-dim merge

    # ONE fused QKV projection (single MXU call, 3*inner = 96-lane-dense result).
    # Column order: [q_h0 | q_h1 | k_h0 | k_h1 | v_h0 | v_h1]; scale folded into q.
    qkv = jnp.dot(x2, wqkv_ref[...], preferred_element_type=jnp.float32)  # (B*N, 3*inner)

    def head_stack(base):
        # Stack per-head slices so z = h*B + b is the leading batch axis.
        return jnp.concatenate(
            [qkv[:, base + h * dim_head: base + (h + 1) * dim_head]
             .reshape(B, N, dim_head) for h in range(heads)], axis=0)  # (H*B, N, dh)

    q_s = head_stack(0)
    k_s = head_stack(inner)
    v_s = head_stack(2 * inner)

    # One batched pass over all (head, batch) pairs.
    sim = jnp.einsum('zid,zjd->zij', q_s, k_s,
                     preferred_element_type=jnp.float32)  # (H*B, N, N)
    attn = _sparsemax_lane_dense(sim)                     # dropout(p=0.0) == identity
    o_s = jnp.einsum('zij,zjd->zid', attn, v_s,
                     preferred_element_type=jnp.float32)  # (H*B, N, dh)

    # rearrange 'b h n d -> b n (h d)' (head-major column concat), then to_out.
    o_cat = jnp.concatenate(
        [o_s[h * B:(h + 1) * B].reshape(B * N, dim_head) for h in range(heads)],
        axis=-1)                                          # (B*N, inner)
    out = jnp.dot(o_cat, wo_ref[...], preferred_element_type=jnp.float32) + bo_ref[...]
    o_ref[...] = out.reshape(B, N, D).astype(o_ref.dtype)


# ------------------------------ pallas wrapper --------------------------------
def _dual_tensorcore_chip():
    # v7x has 2 TensorCores per chip; v5e/v6e have 1 (grid overhead would only hurt).
    try:
        return "v7" in jax.devices()[0].device_kind.lower()
    except Exception:
        return False


def attention(x, params):
    B, N, D = x.shape
    kern = functools.partial(attention_kernel, heads=HEADS, dim_head=DIM_HEAD)
    vmem = pl.BlockSpec(memory_space=pltpu.MemorySpace.VMEM)
    cparams_kwargs = dict(vmem_limit_bytes=32 * 1024 * 1024)
    args = (x, params["wqkv"], params["wo"], params["bo"])

    if _dual_tensorcore_chip():
        # v7x: shard the independent per-batch work across the two TensorCores.
        return pl.pallas_call(
            kern,
            out_shape=jax.ShapeDtypeStruct((B, N, D), jnp.float32),
            grid=(B,),
            in_specs=[pl.BlockSpec((1, N, D), lambda b: (b, 0, 0)),
                      vmem, vmem, vmem],
            out_specs=pl.BlockSpec((1, N, D), lambda b: (b, 0, 0)),
            compiler_params=pltpu.CompilerParams(
                dimension_semantics=("parallel",), **cparams_kwargs),
        )(*args)

    # v5e / v6e: one grid-less, fully VMEM-resident invocation.
    return pl.pallas_call(
        kern,
        out_shape=jax.ShapeDtypeStruct((B, N, D), jnp.float32),
        in_specs=[vmem] * 4,
        out_specs=vmem,
        compiler_params=pltpu.CompilerParams(**cparams_kwargs),
    )(*args)


# ------------------------------- parameters ------------------------------------
def init_params(key):
    def uniform(k, fan_in, shape):
        # matches torch nn.Linear default init: U(-1/sqrt(fan_in), 1/sqrt(fan_in))
        bound = 1.0 / (fan_in ** 0.5)
        return jax.random.uniform(k, shape, jnp.float32, -bound, bound)

    k_qkv, k_wo, k_bo = jax.random.split(key, 3)
    # to_qkv (bias=False), pre-transposed & packed: columns [q heads | k heads | v heads],
    # head-major within each block (same layout as torch's chunk + rearrange).
    wqkv = uniform(k_qkv, DIM, (DIM, 3 * INNER))
    # Fold the attention scale dim_head**-0.5 (= 0.25, exact) into the q columns:
    # (x Wq) (x Wk)^T * scale  ==  (x (Wq*scale)) (x Wk)^T.
    scale = DIM_HEAD ** (-0.5)
    col_scale = jnp.concatenate([jnp.full((INNER,), scale, jnp.float32),
                                 jnp.ones((2 * INNER,), jnp.float32)])
    wqkv = wqkv * col_scale[None, :]
    return {
        "wqkv": wqkv,                                   # (D, 3*inner)
        "wo": uniform(k_wo, INNER, (INNER, DIM)),       # to_out weight, pre-transposed
        "bo": uniform(k_bo, INNER, (1, DIM)),           # to_out bias
    }


# ----------------------------- pure-JAX reference ------------------------------
def _sparsemax_ref(z):
    # Sort-based sparsemax (different algorithm than the kernel -> real cross-check).
    z_sorted = jnp.sort(z, axis=-1)[..., ::-1]
    k = jnp.arange(1, z.shape[-1] + 1, dtype=jnp.float32)
    z_cum = jnp.cumsum(z_sorted, axis=-1)
    support = (1.0 + k * z_sorted > z_cum).astype(jnp.float32)
    k_star = jnp.sum(support, axis=-1, keepdims=True)
    s_star = jnp.take_along_axis(z_cum, k_star.astype(jnp.int32) - 1, axis=-1)
    tau = (s_star - 1.0) / k_star
    return jnp.maximum(z - tau, 0.0)


def attention_ref(x, p):
    B, N, _ = x.shape
    qkv = jnp.einsum('bnd,de->bne', x, p["wqkv"])       # scale already folded into q cols
    q, k, v = qkv[..., :INNER], qkv[..., INNER:2 * INNER], qkv[..., 2 * INNER:]

    def split_heads(t):  # 'b n (h d) -> b h n d'
        return t.reshape(B, N, HEADS, DIM_HEAD).transpose(0, 2, 1, 3)

    q, k, v = split_heads(q), split_heads(k), split_heads(v)
    sim = jnp.einsum('bhid,bhjd->bhij', q, k)
    attn = _sparsemax_ref(sim)                          # dropout(p=0.0) == identity
    out = jnp.einsum('bhij,bhjd->bhid', attn, v)
    out = out.transpose(0, 2, 1, 3).reshape(B, N, INNER)   # 'b h n d -> b n (h d)'
    return out @ p["wo"] + p["bo"][0]


# ----------------------------------- main ---------------------------------------
if __name__ == "__main__":
    root = jax.random.PRNGKey(0)
    k_x, k_p = jax.random.split(root)
    x = jax.random.normal(k_x, (BATCH, SEQ_LEN, DIM), jnp.float32)
    params = init_params(k_p)

    out = attention(x, params)
    out = jax.block_until_ready(out)

    assert out.shape == (BATCH, SEQ_LEN, DIM), out.shape
    assert bool(jnp.all(jnp.isfinite(out)))

    with jax.default_matmul_precision("highest"):
        ref = attention_ref(x, params)
    max_err = float(jnp.max(jnp.abs(out - ref)))
    assert bool(jnp.allclose(out, ref, atol=5e-4, rtol=5e-4)), max_err

    print("KERNEL_OK")
</pallas_src>

<mosaic_0001>
module attributes {stable_mosaic.version = 11 : i64} {
  func.func @attention_kernel(%arg0: memref<2x48x32xf32, #tpu.memory_space<vmem>>, %arg1: memref<32x96xf32, #tpu.memory_space<vmem>>, %arg2: memref<32x32xf32, #tpu.memory_space<vmem>>, %arg3: memref<1x32xf32, #tpu.memory_space<vmem>>, %arg4: memref<2x48x32xf32, #tpu.memory_space<vmem>>) attributes {dimension_semantics = [], scalar_prefetch = 0 : i64, scratch_operands = 0 : i64, tpu.core_type = #tpu.core_type<tc>} {
    %c0 = arith.constant 0 : index
    %c0_0 = arith.constant 0 : index
    %c0_1 = arith.constant 0 : index
    %0 = vector.load %arg0[%c0, %c0_0, %c0_1] : memref<2x48x32xf32, #tpu.memory_space<vmem>>, vector<2x48x32xf32>
    %1 = vector.shape_cast %0 : vector<2x48x32xf32> to vector<96x32xf32>
    %c0_2 = arith.constant 0 : index
    %c0_3 = arith.constant 0 : index
    %2 = vector.load %arg1[%c0_2, %c0_3] : memref<32x96xf32, #tpu.memory_space<vmem>>, vector<32x96xf32>
    %cst = arith.constant dense<0.000000e+00> : vector<96x96xf32>
    %3 = tpu.matmul %1, %2, %cst {dimension_numbers = #tpu.dot_dimension_numbers<[1], [0], [0], [1], [0, 0, 1, 1], [], []>} : vector<96x32xf32>, vector<32x96xf32>, vector<96x96xf32> -> vector<96x96xf32>
    %4 = vector.extract_strided_slice %3 {offsets = [0, 0], sizes = [96, 16], strides = [1, 1]} : vector<96x96xf32> to vector<96x16xf32>
    %5 = vector.shape_cast %4 : vector<96x16xf32> to vector<2x48x16xf32>
    %6 = vector.extract_strided_slice %3 {offsets = [0, 16], sizes = [96, 16], strides = [1, 1]} : vector<96x96xf32> to vector<96x16xf32>
    %7 = vector.shape_cast %6 : vector<96x16xf32> to vector<2x48x16xf32>
    %8 = tpu.concatenate %5, %7 in 0 : vector<2x48x16xf32>, vector<2x48x16xf32> -> vector<4x48x16xf32>
    %9 = vector.extract_strided_slice %3 {offsets = [0, 32], sizes = [96, 16], strides = [1, 1]} : vector<96x96xf32> to vector<96x16xf32>
    %10 = vector.shape_cast %9 : vector<96x16xf32> to vector<2x48x16xf32>
    %11 = vector.extract_strided_slice %3 {offsets = [0, 48], sizes = [96, 16], strides = [1, 1]} : vector<96x96xf32> to vector<96x16xf32>
    %12 = vector.shape_cast %11 : vector<96x16xf32> to vector<2x48x16xf32>
    %13 = tpu.concatenate %10, %12 in 0 : vector<2x48x16xf32>, vector<2x48x16xf32> -> vector<4x48x16xf32>
    %14 = vector.extract_strided_slice %3 {offsets = [0, 64], sizes = [96, 16], strides = [1, 1]} : vector<96x96xf32> to vector<96x16xf32>
    %15 = vector.shape_cast %14 : vector<96x16xf32> to vector<2x48x16xf32>
    %16 = vector.extract_strided_slice %3 {offsets = [0, 80], sizes = [96, 16], strides = [1, 1]} : vector<96x96xf32> to vector<96x16xf32>
    %17 = vector.shape_cast %16 : vector<96x16xf32> to vector<2x48x16xf32>
    %18 = tpu.concatenate %15, %17 in 0 : vector<2x48x16xf32>, vector<2x48x16xf32> -> vector<4x48x16xf32>
    "tpu.trace_start"() <{level = 10 : i32, message = "zid,zjd->zij"}> : () -> ()
    %cst_4 = arith.constant dense<0.000000e+00> : vector<4x48x48xf32>
    %19 = tpu.matmul %8, %13, %cst_4 {dimension_numbers = #tpu.dot_dimension_numbers<[2], [2], [1], [1], [0, 0, 0, 1, 1, 1], [0], [0]>} : vector<4x48x16xf32>, vector<4x48x16xf32>, vector<4x48x48xf32> -> vector<4x48x48xf32>
    "tpu.trace_stop"() : () -> ()
    %20 = vector.shape_cast %19 : vector<4x48x48xf32> to vector<192x48xf32>
    %21 = tpu.transpose %20, [1, 0] : vector<192x48xf32> -> vector<48x192xf32>
    %cst_5 = arith.constant 0.000000e+00 : f32
    %22 = vector.broadcast %cst_5 : f32 to vector<48x192xf32>
    %23 = vector.extract_strided_slice %21 {offsets = [0, 0], sizes = [1, 192], strides = [1, 1]} : vector<48x192xf32> to vector<1x192xf32>
    %24 = vector.broadcast %23 : vector<1x192xf32> to vector<48x192xf32>
    %25 = arith.subf %24, %21 : vector<48x192xf32>
    %cst_6 = arith.constant 0.000000e+00 : f32
    %26 = vector.broadcast %cst_6 : f32 to vector<48x192xf32>
    %27 = arith.maximumf %25, %26 : vector<48x192xf32>
    %28 = arith.addf %22, %27 : vector<48x192xf32>
    %29 = vector.extract_strided_slice %21 {offsets = [1, 0], sizes = [1, 192], strides = [1, 1]} : vector<48x192xf32> to vector<1x192xf32>
    %30 = vector.broadcast %29 : vector<1x192xf32> to vector<48x192xf32>
    %31 = arith.subf %30, %21 : vector<48x192xf32>
    %cst_7 = arith.constant 0.000000e+00 : f32
    %32 = vector.broadcast %cst_7 : f32 to vector<48x192xf32>
    %33 = arith.maximumf %31, %32 : vector<48x192xf32>
    %34 = arith.addf %28, %33 : vector<48x192xf32>
    %35 = vector.extract_strided_slice %21 {offsets = [2, 0], sizes = [1, 192], strides = [1, 1]} : vector<48x192xf32> to vector<1x192xf32>
    %36 = vector.broadcast %35 : vector<1x192xf32> to vector<48x192xf32>
    %37 = arith.subf %36, %21 : vector<48x192xf32>
    %cst_8 = arith.constant 0.000000e+00 : f32
    %38 = vector.broadcast %cst_8 : f32 to vector<48x192xf32>
    %39 = arith.maximumf %37, %38 : vector<48x192xf32>
    %40 = arith.addf %34, %39 : vector<48x192xf32>
    %41 = vector.extract_strided_slice %21 {offsets = [3, 0], sizes = [1, 192], strides = [1, 1]} : vector<48x192xf32> to vector<1x192xf32>
    %42 = vector.broadcast %41 : vector<1x192xf32> to vector<48x192xf32>
    %43 = arith.subf %42, %21 : vector<48x192xf32>
    %cst_9 = arith.constant 0.000000e+00 : f32
    %44 = vector.broadcast %cst_9 : f32 to vector<48x192xf32>
    %45 = arith.maximumf %43, %44 : vector<48x192xf32>
    %46 = arith.addf %40, %45 : vector<48x192xf32>
    %47 = vector.extract_strided_slice %21 {offsets = [4, 0], sizes = [1, 192], strides = [1, 1]} : vector<48x192xf32> to vector<1x192xf32>
    %48 = vector.broadcast %47 : vector<1x192xf32> to vector<48x192xf32>
    %49 = arith.subf %48, %21 : vector<48x192xf32>
    %cst_10 = arith.constant 0.000000e+00 : f32
    %50 = vector.broadcast %cst_10 : f32 to vector<48x192xf32>
    %51 = arith.maximumf %49, %50 : vector<48x192xf32>
    %52 = arith.addf %46, %51 : vector<48x192xf32>
    %53 = vector.extract_strided_slice %21 {offsets = [5, 0], sizes = [1, 192], strides = [1, 1]} : vector<48x192xf32> to vector<1x192xf32>
    %54 = vector.broadcast %53 : vector<1x192xf32> to vector<48x192xf32>
    %55 = arith.subf %54, %21 : vector<48x192xf32>
    %cst_11 = arith.constant 0.000000e+00 : f32
    %56 = vector.broadcast %cst_11 : f32 to vector<48x192xf32>
    %57 = arith.maximumf %55, %56 : vector<48x192xf32>
    %58 = arith.addf %52, %57 : vector<48x192xf32>
    %59 = vector.extract_strided_slice %21 {offsets = [6, 0], sizes = [1, 192], strides = [1, 1]} : vector<48x192xf32> to vector<1x192xf32>
    %60 = vector.broadcast %59 : vector<1x192xf32> to vector<48x192xf32>
    %61 = arith.subf %60, %21 : vector<48x192xf32>
    %cst_12 = arith.constant 0.000000e+00 : f32
    %62 = vector.broadcast %cst_12 : f32 to vector<48x192xf32>
    %63 = arith.maximumf %61, %62 : vector<48x192xf32>
    %64 = arith.addf %58, %63 : vector<48x192xf32>
    %65 = vector.extract_strided_slice %21 {offsets = [7, 0], sizes = [1, 192], strides = [1, 1]} : vector<48x192xf32> to vector<1x192xf32>
    %66 = vector.broadcast %65 : vector<1x192xf32> to vector<48x192xf32>
    %67 = arith.subf %66, %21 : vector<48x192xf32>
    %cst_13 = arith.constant 0.000000e+00 : f32
    %68 = vector.broadcast %cst_13 : f32 to vector<48x192xf32>
    %69 = arith.maximumf %67, %68 : vector<48x192xf32>
    %70 = arith.addf %64, %69 : vector<48x192xf32>
    %71 = vector.extract_strided_slice %21 {offsets = [8, 0], sizes = [1, 192], strides = [1, 1]} : vector<48x192xf32> to vector<1x192xf32>
    %72 = vector.broadcast %71 : vector<1x192xf32> to vector<48x192xf32>
    %73 = arith.subf %72, %21 : vector<48x192xf32>
    %cst_14 = arith.constant 0.000000e+00 : f32
    %74 = vector.broadcast %cst_14 : f32 to vector<48x192xf32>
    %75 = arith.maximumf %73, %74 : vector<48x192xf32>
    %76 = arith.addf %70, %75 : vector<48x192xf32>
    %77 = vector.extract_strided_slice %21 {offsets = [9, 0], sizes = [1, 192], strides = [1, 1]} : vector<48x192xf32> to vector<1x192xf32>
    %78 = vector.broadcast %77 : vector<1x192xf32> to vector<48x192xf32>
    %79 = arith.subf %78, %21 : vector<48x192xf32>
    %cst_15 = arith.constant 0.000000e+00 : f32
    %80 = vector.broadcast %cst_15 : f32 to vector<48x192xf32>
    %81 = arith.maximumf %79, %80 : vector<48x192xf32>
    %82 = arith.addf %76, %81 : vector<48x192xf32>
    %83 = vector.extract_strided_slice %21 {offsets = [10, 0], sizes = [1, 192], strides = [1, 1]} : vector<48x192xf32> to vector<1x192xf32>
    %84 = vector.broadcast %83 : vector<1x192xf32> to vector<48x192xf32>
    %85 = arith.subf %84, %21 : vector<48x192xf32>
    %cst_16 = arith.constant 0.000000e+00 : f32
    %86 = vector.broadcast %cst_16 : f32 to vector<48x192xf32>
    %87 = arith.maximumf %85, %86 : vector<48x192xf32>
    %88 = arith.addf %82, %87 : vector<48x192xf32>
    %89 = vector.extract_strided_slice %21 {offsets = [11, 0], sizes = [1, 192], strides = [1, 1]} : vector<48x192xf32> to vector<1x192xf32>
    %90 = vector.broadcast %89 : vector<1x192xf32> to vector<48x192xf32>
    %91 = arith.subf %90, %21 : vector<48x192xf32>
    %cst_17 = arith.constant 0.000000e+00 : f32
    %92 = vector.broadcast %cst_17 : f32 to vector<48x192xf32>
    %93 = arith.maximumf %91, %92 : vector<48x192xf32>
    %94 = arith.addf %88, %93 : vector<48x192xf32>
    %95 = vector.extract_strided_slice %21 {offsets = [12, 0], sizes = [1, 192], strides = [1, 1]} : vector<48x192xf32> to vector<1x192xf32>
    %96 = vector.broadcast %95 : vector<1x192xf32> to vector<48x192xf32>
    %97 = arith.subf %96, %21 : vector<48x192xf32>
    %cst_18 = arith.constant 0.000000e+00 : f32
    %98 = vector.broadcast %cst_18 : f32 to vector<48x192xf32>
    %99 = arith.maximumf %97, %98 : vector<48x192xf32>
    %100 = arith.addf %94, %99 : vector<48x192xf32>
    %101 = vector.extract_strided_slice %21 {offsets = [13, 0], sizes = [1, 192], strides = [1, 1]} : vector<48x192xf32> to vector<1x192xf32>
    %102 = vector.broadcast %101 : vector<1x192xf32> to vector<48x192xf32>
    %103 = arith.subf %102, %21 : vector<48x192xf32>
    %cst_19 = arith.constant 0.000000e+00 : f32
    %104 = vector.broadcast %cst_19 : f32 to vector<48x192xf32>
    %105 = arith.maximumf %103, %104 : vector<48x192xf32>
    %106 = arith.addf %100, %105 : vector<48x192xf32>
    %107 = vector.extract_strided_slice %21 {offsets = [14, 0], sizes = [1, 192], strides = [1, 1]} : vector<48x192xf32> to vector<1x192xf32>
    %108 = vector.broadcast %107 : vector<1x192xf32> to vector<48x192xf32>
    %109 = arith.subf %108, %21 : vector<48x192xf32>
    %cst_20 = arith.constant 0.000000e+00 : f32
    %110 = vector.broadcast %cst_20 : f32 to vector<48x192xf32>
    %111 = arith.maximumf %109, %110 : vector<48x192xf32>
    %112 = arith.addf %106, %111 : vector<48x192xf32>
    %113 = vector.extract_strided_slice %21 {offsets = [15, 0], sizes = [1, 192], strides = [1, 1]} : vector<48x192xf32> to vector<1x192xf32>
    %114 = vector.broadcast %113 : vector<1x192xf32> to vector<48x192xf32>
    %115 = arith.subf %114, %21 : vector<48x192xf32>
    %cst_21 = arith.constant 0.000000e+00 : f32
    %116 = vector.broadcast %cst_21 : f32 to vector<48x192xf32>
    %117 = arith.maximumf %115, %116 : vector<48x192xf32>
    %118 = arith.addf %112, %117 : vector<48x192xf32>
    %119 = vector.extract_strided_slice %21 {offsets = [16, 0], sizes = [1, 192], strides = [1, 1]} : vector<48x192xf32> to vector<1x192xf32>
    %120 = vector.broadcast %119 : vector<1x192xf32> to vector<48x192xf32>
    %121 = arith.subf %120, %21 : vector<48x192xf32>
    %cst_22 = arith.constant 0.000000e+00 : f32
    %122 = vector.broadcast %cst_22 : f32 to vector<48x192xf32>
    %123 = arith.maximumf %121, %122 : vector<48x192xf32>
    %124 = arith.addf %118, %123 : vector<48x192xf32>
    %125 = vector.extract_strided_slice %21 {offsets = [17, 0], sizes = [1, 192], strides = [1, 1]} : vector<48x192xf32> to vector<1x192xf32>
    %126 = vector.broadcast %125 : vector<1x192xf32> to vector<48x192xf32>
    %127 = arith.subf %126, %21 : vector<48x192xf32>
    %cst_23 = arith.constant 0.000000e+00 : f32
    %128 = vector.broadcast %cst_23 : f32 to vector<48x192xf32>
    %129 = arith.maximumf %127, %128 : vector<48x192xf32>
    %130 = arith.addf %124, %129 : vector<48x192xf32>
    %131 = vector.extract_strided_slice %21 {offsets = [18, 0], sizes = [1, 192], strides = [1, 1]} : vector<48x192xf32> to vector<1x192xf32>
    %132 = vector.broadcast %131 : vector<1x192xf32> to vector<48x192xf32>
    %133 = arith.subf %132, %21 : vector<48x192xf32>
    %cst_24 = arith.constant 0.000000e+00 : f32
    %134 = vector.broadcast %cst_24 : f32 to vector<48x192xf32>
    %135 = arith.maximumf %133, %134 : vector<48x192xf32>
    %136 = arith.addf %130, %135 : vector<48x192xf32>
    %137 = vector.extract_strided_slice %21 {offsets = [19, 0], sizes = [1, 192], strides = [1, 1]} : vector<48x192xf32> to vector<1x192xf32>
    %138 = vector.broadcast %137 : vector<1x192xf32> to vector<48x192xf32>
    %139 = arith.subf %138, %21 : vector<48x192xf32>
    %cst_25 = arith.constant 0.000000e+00 : f32
    %140 = vector.broadcast %cst_25 : f32 to vector<48x192xf32>
    %141 = arith.maximumf %139, %140 : vector<48x192xf32>
    %142 = arith.addf %136, %141 : vector<48x192xf32>
    %143 = vector.extract_strided_slice %21 {offsets = [20, 0], sizes = [1, 192], strides = [1, 1]} : vector<48x192xf32> to vector<1x192xf32>
    %144 = vector.broadcast %143 : vector<1x192xf32> to vector<48x192xf32>
    %145 = arith.subf %144, %21 : vector<48x192xf32>
    %cst_26 = arith.constant 0.000000e+00 : f32
    %146 = vector.broadcast %cst_26 : f32 to vector<48x192xf32>
    %147 = arith.maximumf %145, %146 : vector<48x192xf32>
    %148 = arith.addf %142, %147 : vector<48x192xf32>
    %149 = vector.extract_strided_slice %21 {offsets = [21, 0], sizes = [1, 192], strides = [1, 1]} : vector<48x192xf32> to vector<1x192xf32>
    %150 = vector.broadcast %149 : vector<1x192xf32> to vector<48x192xf32>
    %151 = arith.subf %150, %21 : vector<48x192xf32>
    %cst_27 = arith.constant 0.000000e+00 : f32
    %152 = vector.broadcast %cst_27 : f32 to vector<48x192xf32>
    %153 = arith.maximumf %151, %152 : vector<48x192xf32>
    %154 = arith.addf %148, %153 : vector<48x192xf32>
    %155 = vector.extract_strided_slice %21 {offsets = [22, 0], sizes = [1, 192], strides = [1, 1]} : vector<48x192xf32> to vector<1x192xf32>
    %156 = vector.broadcast %155 : vector<1x192xf32> to vector<48x192xf32>
    %157 = arith.subf %156, %21 : vector<48x192xf32>
    %cst_28 = arith.constant 0.000000e+00 : f32
    %158 = vector.broadcast %cst_28 : f32 to vector<48x192xf32>
    %159 = arith.maximumf %157, %158 : vector<48x192xf32>
    %160 = arith.addf %154, %159 : vector<48x192xf32>
    %161 = vector.extract_strided_slice %21 {offsets = [23, 0], sizes = [1, 192], strides = [1, 1]} : vector<48x192xf32> to vector<1x192xf32>
    %162 = vector.broadcast %161 : vector<1x192xf32> to vector<48x192xf32>
    %163 = arith.subf %162, %21 : vector<48x192xf32>
    %cst_29 = arith.constant 0.000000e+00 : f32
    %164 = vector.broadcast %cst_29 : f32 to vector<48x192xf32>
    %165 = arith.maximumf %163, %164 : vector<48x192xf32>
    %166 = arith.addf %160, %165 : vector<48x192xf32>
    %167 = vector.extract_strided_slice %21 {offsets = [24, 0], sizes = [1, 192], strides = [1, 1]} : vector<48x192xf32> to vector<1x192xf32>
    %168 = vector.broadcast %167 : vector<1x192xf32> to vector<48x192xf32>
    %169 = arith.subf %168, %21 : vector<48x192xf32>
    %cst_30 = arith.constant 0.000000e+00 : f32
    %170 = vector.broadcast %cst_30 : f32 to vector<48x192xf32>
    %171 = arith.maximumf %169, %170 : vector<48x192xf32>
    %172 = arith.addf %166, %171 : vector<48x192xf32>
    %173 = vector.extract_strided_slice %21 {offsets = [25, 0], sizes = [1, 192], strides = [1, 1]} : vector<48x192xf32> to vector<1x192xf32>
    %174 = vector.broadcast %173 : vector<1x192xf32> to vector<48x192xf32>
    %175 = arith.subf %174, %21 : vector<48x192xf32>
    %cst_31 = arith.constant 0.000000e+00 : f32
    %176 = vector.broadcast %cst_31 : f32 to vector<48x192xf32>
    %177 = arith.maximumf %175, %176 : vector<48x192xf32>
    %178 = arith.addf %172, %177 : vector<48x192xf32>
    %179 = vector.extract_strided_slice %21 {offsets = [26, 0], sizes = [1, 192], strides = [1, 1]} : vector<48x192xf32> to vector<1x192xf32>
    %180 = vector.broadcast %179 : vector<1x192xf32> to vector<48x192xf32>
    %181 = arith.subf %180, %21 : vector<48x192xf32>
    %cst_32 = arith.constant 0.000000e+00 : f32
    %182 = vector.broadcast %cst_32 : f32 to vector<48x192xf32>
    %183 = arith.maximumf %181, %182 : vector<48x192xf32>
    %184 = arith.addf %178, %183 : vector<48x192xf32>
    %185 = vector.extract_strided_slice %21 {offsets = [27, 0], sizes = [1, 192], strides = [1, 1]} : vector<48x192xf32> to vector<1x192xf32>
    %186 = vector.broadcast %185 : vector<1x192xf32> to vector<48x192xf32>
    %187 = arith.subf %186, %21 : vector<48x192xf32>
    %cst_33 = arith.constant 0.000000e+00 : f32
    %188 = vector.broadcast %cst_33 : f32 to vector<48x192xf32>
    %189 = arith.maximumf %187, %188 : vector<48x192xf32>
    %190 = arith.addf %184, %189 : vector<48x192xf32>
    %191 = vector.extract_strided_slice %21 {offsets = [28, 0], sizes = [1, 192], strides = [1, 1]} : vector<48x192xf32> to vector<1x192xf32>
    %192 = vector.broadcast %191 : vector<1x192xf32> to vector<48x192xf32>
    %193 = arith.subf %192, %21 : vector<48x192xf32>
    %cst_34 = arith.constant 0.000000e+00 : f32
    %194 = vector.broadcast %cst_34 : f32 to vector<48x192xf32>
    %195 = arith.maximumf %193, %194 : vector<48x192xf32>
    %196 = arith.addf %190, %195 : vector<48x192xf32>
    %197 = vector.extract_strided_slice %21 {offsets = [29, 0], sizes = [1, 192], strides = [1, 1]} : vector<48x192xf32> to vector<1x192xf32>
    %198 = vector.broadcast %197 : vector<1x192xf32> to vector<48x192xf32>
    %199 = arith.subf %198, %21 : vector<48x192xf32>
    %cst_35 = arith.constant 0.000000e+00 : f32
    %200 = vector.broadcast %cst_35 : f32 to vector<48x192xf32>
    %201 = arith.maximumf %199, %200 : vector<48x192xf32>
    %202 = arith.addf %196, %201 : vector<48x192xf32>
    %203 = vector.extract_strided_slice %21 {offsets = [30, 0], sizes = [1, 192], strides = [1, 1]} : vector<48x192xf32> to vector<1x192xf32>
    %204 = vector.broadcast %203 : vector<1x192xf32> to vector<48x192xf32>
    %205 = arith.subf %204, %21 : vector<48x192xf32>
    %cst_36 = arith.constant 0.000000e+00 : f32
    %206 = vector.broadcast %cst_36 : f32 to vector<48x192xf32>
    %207 = arith.maximumf %205, %206 : vector<48x192xf32>
    %208 = arith.addf %202, %207 : vector<48x192xf32>
    %209 = vector.extract_strided_slice %21 {offsets = [31, 0], sizes = [1, 192], strides = [1, 1]} : vector<48x192xf32> to vector<1x192xf32>
    %210 = vector.broadcast %209 : vector<1x192xf32> to vector<48x192xf32>
    %211 = arith.subf %210, %21 : vector<48x192xf32>
    %cst_37 = arith.constant 0.000000e+00 : f32
    %212 = vector.broadcast %cst_37 : f32 to vector<48x192xf32>
    %213 = arith.maximumf %211, %212 : vector<48x192xf32>
    %214 = arith.addf %208, %213 : vector<48x192xf32>
    %215 = vector.extract_strided_slice %21 {offsets = [32, 0], sizes = [1, 192], strides = [1, 1]} : vector<48x192xf32> to vector<1x192xf32>
    %216 = vector.broadcast %215 : vector<1x192xf32> to vector<48x192xf32>
    %217 = arith.subf %216, %21 : vector<48x192xf32>
    %cst_38 = arith.constant 0.000000e+00 : f32
    %218 = vector.broadcast %cst_38 : f32 to vector<48x192xf32>
    %219 = arith.maximumf %217, %218 : vector<48x192xf32>
    %220 = arith.addf %214, %219 : vector<48x192xf32>
    %221 = vector.extract_strided_slice %21 {offsets = [33, 0], sizes = [1, 192], strides = [1, 1]} : vector<48x192xf32> to vector<1x192xf32>
    %222 = vector.broadcast %221 : vector<1x192xf32> to vector<48x192xf32>
    %223 = arith.subf %222, %21 : vector<48x192xf32>
    %cst_39 = arith.constant 0.000000e+00 : f32
    %224 = vector.broadcast %cst_39 : f32 to vector<48x192xf32>
    %225 = arith.maximumf %223, %224 : vector<48x192xf32>
    %226 = arith.addf %220, %225 : vector<48x192xf32>
    %227 = vector.extract_strided_slice %21 {offsets = [34, 0], sizes = [1, 192], strides = [1, 1]} : vector<48x192xf32> to vector<1x192xf32>
    %228 = vector.broadcast %227 : vector<1x192xf32> to vector<48x192xf32>
    %229 = arith.subf %228, %21 : vector<48x192xf32>
    %cst_40 = arith.constant 0.000000e+00 : f32
    %230 = vector.broadcast %cst_40 : f32 to vector<48x192xf32>
    %231 = arith.maximumf %229, %230 : vector<48x192xf32>
    %232 = arith.addf %226, %231 : vector<48x192xf32>
    %233 = vector.extract_strided_slice %21 {offsets = [35, 0], sizes = [1, 192], strides = [1, 1]} : vector<48x192xf32> to vector<1x192xf32>
    %234 = vector.broadcast %233 : vector<1x192xf32> to vector<48x192xf32>
    %235 = arith.subf %234, %21 : vector<48x192xf32>
    %cst_41 = arith.constant 0.000000e+00 : f32
    %236 = vector.broadcast %cst_41 : f32 to vector<48x192xf32>
    %237 = arith.maximumf %235, %236 : vector<48x192xf32>
    %238 = arith.addf %232, %237 : vector<48x192xf32>
    %239 = vector.extract_strided_slice %21 {offsets = [36, 0], sizes = [1, 192], strides = [1, 1]} : vector<48x192xf32> to vector<1x192xf32>
    %240 = vector.broadcast %239 : vector<1x192xf32> to vector<48x192xf32>
    %241 = arith.subf %240, %21 : vector<48x192xf32>
    %cst_42 = arith.constant 0.000000e+00 : f32
    %242 = vector.broadcast %cst_42 : f32 to vector<48x192xf32>
    %243 = arith.maximumf %241, %242 : vector<48x192xf32>
    %244 = arith.addf %238, %243 : vector<48x192xf32>
    %245 = vector.extract_strided_slice %21 {offsets = [37, 0], sizes = [1, 192], strides = [1, 1]} : vector<48x192xf32> to vector<1x192xf32>
    %246 = vector.broadcast %245 : vector<1x192xf32> to vector<48x192xf32>
    %247 = arith.subf %246, %21 : vector<48x192xf32>
    %cst_43 = arith.constant 0.000000e+00 : f32
    %248 = vector.broadcast %cst_43 : f32 to vector<48x192xf32>
    %249 = arith.maximumf %247, %248 : vector<48x192xf32>
    %250 = arith.addf %244, %249 : vector<48x192xf32>
    %251 = vector.extract_strided_slice %21 {offsets = [38, 0], sizes = [1, 192], strides = [1, 1]} : vector<48x192xf32> to vector<1x192xf32>
    %252 = vector.broadcast %251 : vector<1x192xf32> to vector<48x192xf32>
    %253 = arith.subf %252, %21 : vector<48x192xf32>
    %cst_44 = arith.constant 0.000000e+00 : f32
    %254 = vector.broadcast %cst_44 : f32 to vector<48x192xf32>
    %255 = arith.maximumf %253, %254 : vector<48x192xf32>
    %256 = arith.addf %250, %255 : vector<48x192xf32>
    %257 = vector.extract_strided_slice %21 {offsets = [39, 0], sizes = [1, 192], strides = [1, 1]} : vector<48x192xf32> to vector<1x192xf32>
    %258 = vector.broadcast %257 : vector<1x192xf32> to vector<48x192xf32>
    %259 = arith.subf %258, %21 : vector<48x192xf32>
    %cst_45 = arith.constant 0.000000e+00 : f32
    %260 = vector.broadcast %cst_45 : f32 to vector<48x192xf32>
    %261 = arith.maximumf %259, %260 : vector<48x192xf32>
    %262 = arith.addf %256, %261 : vector<48x192xf32>
    %263 = vector.extract_strided_slice %21 {offsets = [40, 0], sizes = [1, 192], strides = [1, 1]} : vector<48x192xf32> to vector<1x192xf32>
    %264 = vector.broadcast %263 : vector<1x192xf32> to vector<48x192xf32>
    %265 = arith.subf %264, %21 : vector<48x192xf32>
    %cst_46 = arith.constant 0.000000e+00 : f32
    %266 = vector.broadcast %cst_46 : f32 to vector<48x192xf32>
    %267 = arith.maximumf %265, %266 : vector<48x192xf32>
    %268 = arith.addf %262, %267 : vector<48x192xf32>
    %269 = vector.extract_strided_slice %21 {offsets = [41, 0], sizes = [1, 192], strides = [1, 1]} : vector<48x192xf32> to vector<1x192xf32>
    %270 = vector.broadcast %269 : vector<1x192xf32> to vector<48x192xf32>
    %271 = arith.subf %270, %21 : vector<48x192xf32>
    %cst_47 = arith.constant 0.000000e+00 : f32
    %272 = vector.broadcast %cst_47 : f32 to vector<48x192xf32>
    %273 = arith.maximumf %271, %272 : vector<48x192xf32>
    %274 = arith.addf %268, %273 : vector<48x192xf32>
    %275 = vector.extract_strided_slice %21 {offsets = [42, 0], sizes = [1, 192], strides = [1, 1]} : vector<48x192xf32> to vector<1x192xf32>
    %276 = vector.broadcast %275 : vector<1x192xf32> to vector<48x192xf32>
    %277 = arith.subf %276, %21 : vector<48x192xf32>
    %cst_48 = arith.constant 0.000000e+00 : f32
    %278 = vector.broadcast %cst_48 : f32 to vector<48x192xf32>
    %279 = arith.maximumf %277, %278 : vector<48x192xf32>
    %280 = arith.addf %274, %279 : vector<48x192xf32>
    %281 = vector.extract_strided_slice %21 {offsets = [43, 0], sizes = [1, 192], strides = [1, 1]} : vector<48x192xf32> to vector<1x192xf32>
    %282 = vector.broadcast %281 : vector<1x192xf32> to vector<48x192xf32>
    %283 = arith.subf %282, %21 : vector<48x192xf32>
    %cst_49 = arith.constant 0.000000e+00 : f32
    %284 = vector.broadcast %cst_49 : f32 to vector<48x192xf32>
    %285 = arith.maximumf %283, %284 : vector<48x192xf32>
    %286 = arith.addf %280, %285 : vector<48x192xf32>
    %287 = vector.extract_strided_slice %21 {offsets = [44, 0], sizes = [1, 192], strides = [1, 1]} : vector<48x192xf32> to vector<1x192xf32>
    %288 = vector.broadcast %287 : vector<1x192xf32> to vector<48x192xf32>
    %289 = arith.subf %288, %21 : vector<48x192xf32>
    %cst_50 = arith.constant 0.000000e+00 : f32
    %290 = vector.broadcast %cst_50 : f32 to vector<48x192xf32>
    %291 = arith.maximumf %289, %290 : vector<48x192xf32>
    %292 = arith.addf %286, %291 : vector<48x192xf32>
    %293 = vector.extract_strided_slice %21 {offsets = [45, 0], sizes = [1, 192], strides = [1, 1]} : vector<48x192xf32> to vector<1x192xf32>
    %294 = vector.broadcast %293 : vector<1x192xf32> to vector<48x192xf32>
    %295 = arith.subf %294, %21 : vector<48x192xf32>
    %cst_51 = arith.constant 0.000000e+00 : f32
    %296 = vector.broadcast %cst_51 : f32 to vector<48x192xf32>
    %297 = arith.maximumf %295, %296 : vector<48x192xf32>
    %298 = arith.addf %292, %297 : vector<48x192xf32>
    %299 = vector.extract_strided_slice %21 {offsets = [46, 0], sizes = [1, 192], strides = [1, 1]} : vector<48x192xf32> to vector<1x192xf32>
    %300 = vector.broadcast %299 : vector<1x192xf32> to vector<48x192xf32>
    %301 = arith.subf %300, %21 : vector<48x192xf32>
    %cst_52 = arith.constant 0.000000e+00 : f32
    %302 = vector.broadcast %cst_52 : f32 to vector<48x192xf32>
    %303 = arith.maximumf %301, %302 : vector<48x192xf32>
    %304 = arith.addf %298, %303 : vector<48x192xf32>
    %305 = vector.extract_strided_slice %21 {offsets = [47, 0], sizes = [1, 192], strides = [1, 1]} : vector<48x192xf32> to vector<1x192xf32>
    %306 = vector.broadcast %305 : vector<1x192xf32> to vector<48x192xf32>
    %307 = arith.subf %306, %21 : vector<48x192xf32>
    %cst_53 = arith.constant 0.000000e+00 : f32
    %308 = vector.broadcast %cst_53 : f32 to vector<48x192xf32>
    %309 = arith.maximumf %307, %308 : vector<48x192xf32>
    %310 = arith.addf %304, %309 : vector<48x192xf32>
    %cst_54 = arith.constant 1.000000e+00 : f32
    %311 = vector.broadcast %cst_54 : f32 to vector<48x192xf32>
    %312 = arith.cmpf olt, %310, %311 : vector<48x192xf32>
    %cst_55 = arith.constant 1.000000e+00 : f32
    %cst_56 = arith.constant 0.000000e+00 : f32
    %313 = vector.broadcast %cst_55 : f32 to vector<48x192xf32>
    %314 = vector.broadcast %cst_56 : f32 to vector<48x192xf32>
    %315 = arith.select %312, %313, %314 : vector<48x192xi1>, vector<48x192xf32>
    %cst_57 = arith.constant dense<0.000000e+00> : vector<192xf32>
    %316 = vector.multi_reduction <add>, %315, %cst_57 [0] : vector<48x192xf32> to vector<192xf32>
    %317 = vector.shape_cast %316 : vector<192xf32> to vector<1x192xf32>
    %318 = arith.mulf %21, %315 : vector<48x192xf32>
    %cst_58 = arith.constant dense<0.000000e+00> : vector<192xf32>
    %319 = vector.multi_reduction <add>, %318, %cst_58 [0] : vector<48x192xf32> to vector<192xf32>
    %320 = vector.shape_cast %319 : vector<192xf32> to vector<1x192xf32>
    %cst_59 = arith.constant 1.000000e+00 : f32
    %321 = vector.broadcast %cst_59 : f32 to vector<1x192xf32>
    %322 = arith.subf %320, %321 : vector<1x192xf32>
    %323 = arith.divf %322, %317 : vector<1x192xf32>
    %324 = vector.broadcast %323 : vector<1x192xf32> to vector<48x192xf32>
    %325 = arith.subf %21, %324 : vector<48x192xf32>
    %cst_60 = arith.constant 0.000000e+00 : f32
    %326 = vector.broadcast %cst_60 : f32 to vector<48x192xf32>
    %327 = arith.maximumf %325, %326 : vector<48x192xf32>
    %328 = tpu.transpose %327, [1, 0] : vector<48x192xf32> -> vector<192x48xf32>
    %329 = vector.shape_cast %328 : vector<192x48xf32> to vector<4x48x48xf32>
    "tpu.trace_start"() <{level = 10 : i32, message = "zij,zjd->zid"}> : () -> ()
    %cst_61 = arith.constant dense<0.000000e+00> : vector<4x48x16xf32>
    %330 = tpu.matmul %329, %18, %cst_61 {dimension_numbers = #tpu.dot_dimension_numbers<[2], [1], [1], [2], [0, 0, 0, 1, 1, 2], [0], [0]>} : vector<4x48x48xf32>, vector<4x48x16xf32>, vector<4x48x16xf32> -> vector<4x48x16xf32>
    "tpu.trace_stop"() : () -> ()
    %331 = vector.extract_strided_slice %330 {offsets = [0, 0, 0], sizes = [2, 48, 16], strides = [1, 1, 1]} : vector<4x48x16xf32> to vector<2x48x16xf32>
    %332 = vector.shape_cast %331 : vector<2x48x16xf32> to vector<96x16xf32>
    %333 = vector.extract_strided_slice %330 {offsets = [2, 0, 0], sizes = [2, 48, 16], strides = [1, 1, 1]} : vector<4x48x16xf32> to vector<2x48x16xf32>
    %334 = vector.shape_cast %333 : vector<2x48x16xf32> to vector<96x16xf32>
    %335 = tpu.concatenate %332, %334 in 1 : vector<96x16xf32>, vector<96x16xf32> -> vector<96x32xf32>
    %c0_62 = arith.constant 0 : index
    %c0_63 = arith.constant 0 : index
    %336 = vector.load %arg2[%c0_62, %c0_63] : memref<32x32xf32, #tpu.memory_space<vmem>>, vector<32x32xf32>
    %cst_64 = arith.constant dense<0.000000e+00> : vector<96x32xf32>
    %337 = tpu.matmul %335, %336, %cst_64 {dimension_numbers = #tpu.dot_dimension_numbers<[1], [0], [0], [1], [0, 0, 1, 1], [], []>} : vector<96x32xf32>, vector<32x32xf32>, vector<96x32xf32> -> vector<96x32xf32>
    %c0_65 = arith.constant 0 : index
    %c0_66 = arith.constant 0 : index
    %338 = vector.load %arg3[%c0_65, %c0_66] : memref<1x32xf32, #tpu.memory_space<vmem>>, vector<1x32xf32>
    %339 = vector.broadcast %338 : vector<1x32xf32> to vector<96x32xf32>
    %340 = arith.addf %337, %339 : vector<96x32xf32>
    %341 = vector.shape_cast %340 : vector<96x32xf32> to vector<2x48x32xf32>
    %c0_67 = arith.constant 0 : index
    %c0_68 = arith.constant 0 : index
    %c0_69 = arith.constant 0 : index
    %342 = vector.load %arg4[%c0_67, %c0_68, %c0_69] : memref<2x48x32xf32, #tpu.memory_space<vmem>>, vector<2x48x32xf32>
    tpu.vector_store %arg4[%c0_67, %c0_68, %c0_69], %341 {strides = array<i32>} : memref<2x48x32xf32, #tpu.memory_space<vmem>>, vector<2x48x32xf32>,
    return
  }
}

</mosaic_0001>

<llo_original>
// kernel: tpu_custom_call.1
$region0: #{tpu_custom_call.1}
  #allocation0 [shape = 'u32[]', space=smem, size = 0x4, offset = 0x4, fixed_abs, tag = 'smem constant byte address 0x4 - core index']
  #allocation1 [shape = 'u32[144,128]{1,0:T(1,128)}', space=vmem, size = 0x12000, scoped, tag = 'internal scratch']
  %s0 = inlined_call_operand.vmem [shape: f32[2,48,32], index: 0, kind: input, shape index: {}]
  %s1 = inlined_call_operand.vmem [shape: f32[32,96], index: 1, kind: input, shape index: {}]
  %s2 = inlined_call_operand.vmem [shape: f32[32,32], index: 2, kind: input, shape index: {}]
  %s3 = inlined_call_operand.vmem [shape: f32[1,32], index: 3, kind: input, shape index: {}]
  %s4 = inlined_call_operand.vmem [shape: f32[2,48,32], index: 4, kind: output, shape index: {}]
  %s5 = sld [smem:[#allocation0]]
  $region26: #{tpu_custom_call.1} parent=0
    _
  %s7 = ssub.s32 1, %s5
  %s8 = scalar_select 0, %s7, %s5
  // Predicated region
  $region2: #{tpu_custom_call.1} parent=0 // pred_check
    _
  $region3: #{tpu_custom_call.1} parent=0 // pred_check_branch
    %10 = sbr.rel (0) target = $region5
  $region4: #{tpu_custom_call.1} parent=0 // pred_region
    _
  $region5: #{tpu_custom_call.1} parent=0 // pred_fallthru
    _
  // Predicated region
  $region6: #{tpu_custom_call.1} parent=0 // pred_check
    _
  $region7: #{tpu_custom_call.1} parent=0 // pred_check_branch
    %12 = sbr.rel (0) target = $region9
  $region8: #{tpu_custom_call.1} parent=0 // pred_region
    _
  $region9: #{tpu_custom_call.1} parent=0 // pred_fallthru
    _
  // Predicated region
  $region10: #{tpu_custom_call.1} parent=0 // pred_check
    _
  $region11: #{tpu_custom_call.1} parent=0 // pred_check_branch
    %14 = sbr.rel (0) target = $region13
  $region12: #{tpu_custom_call.1} parent=0 // pred_region
    _
  $region13: #{tpu_custom_call.1} parent=0 // pred_fallthru
    _
  // Predicated region
  $region14: #{tpu_custom_call.1} parent=0 // pred_check
    _
  $region15: #{tpu_custom_call.1} parent=0 // pred_check_branch
    %16 = sbr.rel (0) target = $region17
  $region16: #{tpu_custom_call.1} parent=0 // pred_region
    _
  $region17: #{tpu_custom_call.1} parent=0 // pred_fallthru
    _
  %v17 = vld [vmem:[%s0] sm:$0xff]
  %v18 = vld [vmem:[%s0 + $0x8] sm:$0xff]
  %v19 = vld [vmem:[%s0 + $0x10] sm:$0xff]
  %v20 = vld [vmem:[%s0 + $0x18] sm:$0xff]
  %v21 = vld [vmem:[%s0 + $0x20] sm:$0xff]
  %v22 = vld [vmem:[%s0 + $0x28] sm:$0xff]
  %v23 = vld [vmem:[%s0 + $0x30] sm:$0xff]
  %v24 = vld [vmem:[%s0 + $0x38] sm:$0xff]
  %v25 = vld [vmem:[%s0 + $0x40] sm:$0xff]
  %v26 = vld [vmem:[%s0 + $0x48] sm:$0xff]
  %v27 = vld [vmem:[%s0 + $0x50] sm:$0xff]
  %v28 = vld [vmem:[%s0 + $0x58] sm:$0xff]
  %v29 = vld [vmem:[%s1] sm:$0xff]
  %v30 = vld [vmem:[%s1 + $0x8] sm:$0xff]
  %v31 = vld [vmem:[%s1 + $0x10] sm:$0xff]
  %v32 = vld [vmem:[%s1 + $0x18] sm:$0xff]
  %vm33 = vcmask 261120
  %v35 = vsel %vm33, %v17, 0
  %v38 = vsel %vm33, %v18, 0
  %v41 = vsel %vm33, %v19, 0
  %v44 = vsel %vm33, %v20, 0
  %v47 = vsel %vm33, %v21, 0
  %v50 = vsel %vm33, %v22, 0
  %v53 = vsel %vm33, %v23, 0
  %v56 = vsel %vm33, %v24, 0
  %v59 = vsel %vm33, %v25, 0
  %v62 = vsel %vm33, %v26, 0
  %v65 = vsel %vm33, %v27, 0
  %v68 = vsel %vm33, %v28, 0
  %70 = vmatprep.subr.mxu0 0.0
  %71 = vmatpush1.msra.mxu0 %v29
  %72 = vmatprep.subr.mxu0 0.0
  %73 = vmatpush1.msra.mxu0 %v30
  %74 = vmatprep.subr.mxu0 0.0
  %75 = vmatpush1.msra.mxu0 %v31
  %76 = vmatprep.subr.mxu0 0.0
  %77 = vmatpush1.msra.mxu0 %v32
  %78 = vmatprep.subr.mxu0 0.0
  %79 = vmatpush1.msra.mxu0 0.0
  %80 = vmatprep.subr.mxu0 0.0
  %81 = vmatpush1.msra.mxu0 0.0
  %82 = vmatprep.subr.mxu0 0.0
  %83 = vmatpush1.msra.mxu0 0.0
  %84 = vmatprep.subr.mxu0 0.0
  %85 = vmatpush1.msra.mxu0 0.0
  %86 = vmatprep.subr.mxu0 0.0
  %87 = vmatpush1.msra.mxu0 0.0
  %88 = vmatprep.subr.mxu0 0.0
  %89 = vmatpush1.msra.mxu0 0.0
  %90 = vmatprep.subr.mxu0 0.0
  %91 = vmatpush1.msra.mxu0 0.0
  %92 = vmatprep.subr.mxu0 0.0
  %93 = vmatpush1.msra.mxu0 0.0
  %94 = vmatprep.subr.mxu0 0.0
  %95 = vmatpush1.msra.mxu0 0.0
  %96 = vmatprep.subr.mxu0 0.0
  %97 = vmatpush1.msra.mxu0 0.0
  %98 = vmatprep.subr.mxu0 0.0
  %99 = vmatpush1.msra.mxu0 0.0
  %100 = vmatprep.subr.mxu0 0.0
  %101 = vmatpush1.msra.mxu0 0.0
  %102 = vmatprep.subr.mxu0 0.0
  %103 = vmatpush1.msra.mxu0 0.0
  %104 = vmatprep.subr.mxu0 0.0
  %105 = vmatpush1.msra.mxu0 0.0
  %106 = vmatprep.subr.mxu0 0.0
  %107 = vmatpush1.msra.mxu0 0.0
  %108 = vmatprep.subr.mxu0 0.0
  %109 = vmatpush1.msra.mxu0 0.0
  %110 = vmatprep.subr.mxu0 0.0
  %111 = vmatpush1.msra.mxu0 0.0
  %112 = vmatprep.subr.mxu0 0.0
  %113 = vmatpush1.msra.mxu0 0.0
  %114 = vmatprep.subr.mxu0 0.0
  %115 = vmatpush1.msra.mxu0 0.0
  %116 = vmatprep.subr.mxu0 0.0
  %117 = vmatpush1.msra.mxu0 0.0
  %118 = vmatprep.subr.mxu0 0.0
  %119 = vmatpush1.msra.mxu0 0.0
  %120 = vmatprep.subr.mxu0 0.0
  %121 = vmatpush1.msra.mxu0 0.0
  %122 = vmatprep.subr.mxu0 0.0
  %123 = vmatpush1.msra.mxu0 0.0
  %124 = vmatprep.subr.mxu0 0.0
  %125 = vmatpush1.msra.mxu0 0.0
  %126 = vmatprep.subr.mxu0 0.0
  %127 = vmatpush1.msra.mxu0 0.0
  %128 = vmatprep.subr.mxu0 0.0
  %129 = vmatpush1.msra.mxu0 0.0
  %130 = vmatprep.subr.mxu0 0.0
  %131 = vmatpush1.msra.mxu0 0.0
  %132 = vmatprep.subr.mxu0 0.0
  %133 = vmatpush1.msra.mxu0 0.0
  %134 = vmatprep.mubr.f32.mxu0 0.0
  %135 = vmatmul.mubr.f32.gmra.mrb[0].mxu0 %v35
  %v136 = vpop.f32.mrb[0].mxu0
  %v137 = vadd.f32 0.0, %v136
  %v138 = vpop.f32.mrb[0].mxu0
  %139 = vmatprep.mubr.f32.mxu0 0.0
  %140 = vmatmul.mubr.f32.gmra.mrb[0].mxu0 %v38
  %v141 = vpop.f32.mrb[0].mxu0
  %v142 = vadd.f32 0.0, %v141
  %v143 = vpop.f32.mrb[0].mxu0
  %144 = vmatprep.mubr.f32.mxu0 0.0
  %145 = vmatmul.mubr.f32.gmra.mrb[0].mxu0 %v41
  %v146 = vpop.f32.mrb[0].mxu0
  %v147 = vadd.f32 0.0, %v146
  %v148 = vpop.f32.mrb[0].mxu0
  %149 = vmatprep.mubr.f32.mxu0 0.0
  %150 = vmatmul.mubr.f32.gmra.mrb[0].mxu0 %v44
  %v151 = vpop.f32.mrb[0].mxu0
  %v152 = vadd.f32 0.0, %v151
  %v153 = vpop.f32.mrb[0].mxu0
  %154 = vmatprep.mubr.f32.mxu0 0.0
  %155 = vmatmul.mubr.f32.gmra.mrb[0].mxu0 %v47
  %v156 = vpop.f32.mrb[0].mxu0
  %v157 = vadd.f32 0.0, %v156
  %v158 = vpop.f32.mrb[0].mxu0
  %159 = vmatprep.mubr.f32.mxu0 0.0
  %160 = vmatmul.mubr.f32.gmra.mrb[0].mxu0 %v50
  %v161 = vpop.f32.mrb[0].mxu0
  %v162 = vadd.f32 0.0, %v161
  %v163 = vpop.f32.mrb[0].mxu0
  %164 = vmatprep.mubr.f32.mxu0 0.0
  %165 = vmatmul.mubr.f32.gmra.mrb[0].mxu0 %v53
  %v166 = vpop.f32.mrb[0].mxu0
  %v167 = vadd.f32 0.0, %v166
  %v168 = vpop.f32.mrb[0].mxu0
  %169 = vmatprep.mubr.f32.mxu0 0.0
  %170 = vmatmul.mubr.f32.gmra.mrb[0].mxu0 %v56
  %v171 = vpop.f32.mrb[0].mxu0
  %v172 = vadd.f32 0.0, %v171
  %v173 = vpop.f32.mrb[0].mxu0
  %174 = vmatprep.mubr.f32.mxu0 0.0
  %175 = vmatmul.mubr.f32.gmra.mrb[0].mxu0 %v59
  %v176 = vpop.f32.mrb[0].mxu0
  %v177 = vadd.f32 0.0, %v176
  %v178 = vpop.f32.mrb[0].mxu0
  %179 = vmatprep.mubr.f32.mxu0 0.0
  %180 = vmatmul.mubr.f32.gmra.mrb[0].mxu0 %v62
  %v181 = vpop.f32.mrb[0].mxu0
  %v182 = vadd.f32 0.0, %v181
  %v183 = vpop.f32.mrb[0].mxu0
  %184 = vmatprep.mubr.f32.mxu0 0.0
  %185 = vmatmul.mubr.f32.gmra.mrb[0].mxu0 %v65
  %v186 = vpop.f32.mrb[0].mxu0
  %v187 = vadd.f32 0.0, %v186
  %v188 = vpop.f32.mrb[0].mxu0
  %189 = vmatprep.mubr.f32.mxu0 0.0
  %190 = vmatmul.mubr.f32.gmra.mrb[0].mxu0 %v68
  %v191 = vpop.f32.mrb[0].mxu0
  %v192 = vadd.f32 0.0, %v191
  %v193 = vpop.f32.mrb[0].mxu0
  %194 = vdwg.mxu0
  %207 = vrot.lane.b32.xlu0 %v137, 112
  %v208 = vpop.permute.xlu0 %207
  %209 = vrot.lane.b32.xlu0 %v142, 112
  %v210 = vpop.permute.xlu0 %209
  %211 = vrot.lane.b32.xlu0 %v147, 112
  %v212 = vpop.permute.xlu0 %211
  %213 = vrot.lane.b32.xlu0 %v152, 112
  %v214 = vpop.permute.xlu0 %213
  %215 = vrot.lane.b32.xlu0 %v157, 112
  %v216 = vpop.permute.xlu0 %215
  %217 = vrot.lane.b32.xlu0 %v162, 112
  %v218 = vpop.permute.xlu0 %217
  %219 = vrot.lane.b32.xlu0 %v167, 112
  %v220 = vpop.permute.xlu0 %219
  %221 = vrot.lane.b32.xlu0 %v172, 112
  %v222 = vpop.permute.xlu0 %221
  %223 = vrot.lane.b32.xlu0 %v177, 112
  %v224 = vpop.permute.xlu0 %223
  %225 = vrot.lane.b32.xlu0 %v182, 112
  %v226 = vpop.permute.xlu0 %225
  %227 = vrot.lane.b32.xlu0 %v187, 112
  %v228 = vpop.permute.xlu0 %227
  %229 = vrot.lane.b32.xlu0 %v192, 112
  %v230 = vpop.permute.xlu0 %229
  %231 = vrot.lane.b32.xlu0 %v137, 96
  %v232 = vpop.permute.xlu0 %231
  %233 = vrot.lane.b32.xlu0 %v142, 96
  %v234 = vpop.permute.xlu0 %233
  %235 = vrot.lane.b32.xlu0 %v147, 96
  %v236 = vpop.permute.xlu0 %235
  %237 = vrot.lane.b32.xlu0 %v152, 96
  %v238 = vpop.permute.xlu0 %237
  %239 = vrot.lane.b32.xlu0 %v157, 96
  %v240 = vpop.permute.xlu0 %239
  %241 = vrot.lane.b32.xlu0 %v162, 96
  %v242 = vpop.permute.xlu0 %241
  %vm243 = vcmask 130048
  %v244 = vsel %vm243, %v137, 0
  %v246 = vsel %vm243, %v142, 0
  %v248 = vsel %vm243, %v147, 0
  %v250 = vsel %vm243, %v152, 0
  %v252 = vsel %vm243, %v157, 0
  %v254 = vsel %vm243, %v162, 0
  %v256 = vsel %vm243, %v232, 0
  %v258 = vsel %vm243, %v234, 0
  %v260 = vsel %vm243, %v236, 0
  %v262 = vsel %vm243, %v238, 0
  %v264 = vsel %vm243, %v240, 0
  %v266 = vsel %vm243, %v242, 0
  %268 = vmatprep.subr.mxu0 0.0
  %269 = vmatpush1.xpose.msra.mxu0 %v256
  %270 = vmatprep.subr.mxu0 0.0
  %271 = vmatpush1.xpose.msra.mxu0 %v258
  %272 = vmatprep.subr.mxu0 0.0
  %273 = vmatpush1.xpose.msra.mxu0 %v260
  %274 = vmatprep.subr.mxu0 0.0
  %275 = vmatpush1.xpose.msra.mxu0 %v262
  %276 = vmatprep.subr.mxu0 0.0
  %277 = vmatpush1.xpose.msra.mxu0 %v264
  %278 = vmatprep.subr.mxu0 0.0
  %279 = vmatpush1.xpose.msra.mxu0 %v266
  %280 = vmatprep.subr.mxu0 0.0
  %281 = vmatpush1.xpose.msra.mxu0 0.0
  %282 = vmatprep.subr.mxu0 0.0
  %283 = vmatpush1.xpose.msra.mxu0 0.0
  %284 = vmatprep.subr.mxu0 0.0
  %285 = vmatpush1.xpose.msra.mxu0 0.0
  %286 = vmatprep.subr.mxu0 0.0
  %287 = vmatpush1.xpose.msra.mxu0 0.0
  %288 = vmatprep.subr.mxu0 0.0
  %289 = vmatpush1.xpose.msra.mxu0 0.0
  %290 = vmatprep.subr.mxu0 0.0
  %291 = vmatpush1.xpose.msra.mxu0 0.0
  %292 = vmatprep.subr.mxu0 0.0
  %293 = vmatpush1.xpose.msra.mxu0 0.0
  %294 = vmatprep.subr.mxu0 0.0
  %295 = vmatpush1.xpose.msra.mxu0 0.0
  %296 = vmatprep.subr.mxu0 0.0
  %297 = vmatpush1.xpose.msra.mxu0 0.0
  %298 = vmatprep.subr.mxu0 0.0
  %299 = vmatpush1.xpose.msra.mxu0 0.0
  %300 = vmatprep.subr.mxu0 0.0
  %301 = vmatpush1.xpose.msra.mxu0 0.0
  %302 = vmatprep.subr.mxu0 0.0
  %303 = vmatpush1.xpose.msra.mxu0 0.0
  %304 = vmatprep.subr.mxu0 0.0
  %305 = vmatpush1.xpose.msra.mxu0 0.0
  %306 = vmatprep.subr.mxu0 0.0
  %307 = vmatpush1.xpose.msra.mxu0 0.0
  %308 = vmatprep.subr.mxu0 0.0
  %309 = vmatpush1.xpose.msra.mxu0 0.0
  %310 = vmatprep.subr.mxu0 0.0
  %311 = vmatpush1.xpose.msra.mxu0 0.0
  %312 = vmatprep.subr.mxu0 0.0
  %313 = vmatpush1.xpose.msra.mxu0 0.0
  %314 = vmatprep.subr.mxu0 0.0
  %315 = vmatpush1.xpose.msra.mxu0 0.0
  %316 = vmatprep.subr.mxu0 0.0
  %317 = vmatpush1.xpose.msra.mxu0 0.0
  %318 = vmatprep.subr.mxu0 0.0
  %319 = vmatpush1.xpose.msra.mxu0 0.0
  %320 = vmatprep.subr.mxu0 0.0
  %321 = vmatpush1.xpose.msra.mxu0 0.0
  %322 = vmatprep.subr.mxu0 0.0
  %323 = vmatpush1.xpose.msra.mxu0 0.0
  %324 = vmatprep.subr.mxu0 0.0
  %325 = vmatpush1.xpose.msra.mxu0 0.0
  %326 = vmatprep.subr.mxu0 0.0
  %327 = vmatpush1.xpose.msra.mxu0 0.0
  %328 = vmatprep.subr.mxu0 0.0
  %329 = vmatpush1.xpose.msra.mxu0 0.0
  %330 = vmatprep.subr.mxu0 0.0
  %331 = vmatpush1.xpose.msra.mxu0 0.0
  %332 = vmatprep.mubr.f32.mxu0 0.0
  %333 = vmatmul.mubr.f32.gmra.mrb[0].mxu0 %v244
  %v334 = vpop.f32.mrb[0].mxu0
  %v335 = vadd.f32 0.0, %v334
  %v336 = vpop.f32.mrb[0].mxu0
  %337 = vmatprep.mubr.f32.mxu0 0.0
  %338 = vmatmul.mubr.f32.gmra.mrb[0].mxu0 %v246
  %v339 = vpop.f32.mrb[0].mxu0
  %v340 = vadd.f32 0.0, %v339
  %v341 = vpop.f32.mrb[0].mxu0
  %342 = vmatprep.mubr.f32.mxu0 0.0
  %343 = vmatmul.mubr.f32.gmra.mrb[0].mxu0 %v248
  %v344 = vpop.f32.mrb[0].mxu0
  %v345 = vadd.f32 0.0, %v344
  %v346 = vpop.f32.mrb[0].mxu0
  %347 = vmatprep.mubr.f32.mxu0 0.0
  %348 = vmatmul.mubr.f32.gmra.mrb[0].mxu0 %v250
  %v349 = vpop.f32.mrb[0].mxu0
  %v350 = vadd.f32 0.0, %v349
  %v351 = vpop.f32.mrb[0].mxu0
  %352 = vmatprep.mubr.f32.mxu0 0.0
  %353 = vmatmul.mubr.f32.gmra.mrb[0].mxu0 %v252
  %v354 = vpop.f32.mrb[0].mxu0
  %v355 = vadd.f32 0.0, %v354
  %v356 = vpop.f32.mrb[0].mxu0
  %357 = vmatprep.mubr.f32.mxu0 0.0
  %358 = vmatmul.mubr.f32.gmra.mrb[0].mxu0 %v254
  %v359 = vpop.f32.mrb[0].mxu0
  %v360 = vadd.f32 0.0, %v359
  %v361 = vpop.f32.mrb[0].mxu0
  %362 = vdwg.mxu0
  %363 = vrot.lane.b32.xlu0 %v167, 96
  %v364 = vpop.permute.xlu0 %363
  %365 = vrot.lane.b32.xlu0 %v172, 96
  %v366 = vpop.permute.xlu0 %365
  %367 = vrot.lane.b32.xlu0 %v177, 96
  %v368 = vpop.permute.xlu0 %367
  %369 = vrot.lane.b32.xlu0 %v182, 96
  %v370 = vpop.permute.xlu0 %369
  %371 = vrot.lane.b32.xlu0 %v187, 96
  %v372 = vpop.permute.xlu0 %371
  %373 = vrot.lane.b32.xlu0 %v192, 96
  %v374 = vpop.permute.xlu0 %373
  %v375 = vsel %vm243, %v167, 0
  %v377 = vsel %vm243, %v172, 0
  %v379 = vsel %vm243, %v177, 0
  %v381 = vsel %vm243, %v182, 0
  %v383 = vsel %vm243, %v187, 0
  %v385 = vsel %vm243, %v192, 0
  %v387 = vsel %vm243, %v364, 0
  %v389 = vsel %vm243, %v366, 0
  %v391 = vsel %vm243, %v368, 0
  %v393 = vsel %vm243, %v370, 0
  %v395 = vsel %vm243, %v372, 0
  %v397 = vsel %vm243, %v374, 0
  %399 = vmatprep.subr.mxu0 0.0
  %400 = vmatpush1.xpose.msra.mxu0 %v387
  %401 = vmatprep.subr.mxu0 0.0
  %402 = vmatpush1.xpose.msra.mxu0 %v389
  %403 = vmatprep.subr.mxu0 0.0
  %404 = vmatpush1.xpose.msra.mxu0 %v391
  %405 = vmatprep.subr.mxu0 0.0
  %406 = vmatpush1.xpose.msra.mxu0 %v393
  %407 = vmatprep.subr.mxu0 0.0
  %408 = vmatpush1.xpose.msra.mxu0 %v395
  %409 = vmatprep.subr.mxu0 0.0
  %410 = vmatpush1.xpose.msra.mxu0 %v397
  %411 = vmatprep.subr.mxu0 0.0
  %412 = vmatpush1.xpose.msra.mxu0 0.0
  %413 = vmatprep.subr.mxu0 0.0
  %414 = vmatpush1.xpose.msra.mxu0 0.0
  %415 = vmatprep.subr.mxu0 0.0
  %416 = vmatpush1.xpose.msra.mxu0 0.0
  %417 = vmatprep.subr.mxu0 0.0
  %418 = vmatpush1.xpose.msra.mxu0 0.0
  %419 = vmatprep.subr.mxu0 0.0
  %420 = vmatpush1.xpose.msra.mxu0 0.0
  %421 = vmatprep.subr.mxu0 0.0
  %422 = vmatpush1.xpose.msra.mxu0 0.0
  %423 = vmatprep.subr.mxu0 0.0
  %424 = vmatpush1.xpose.msra.mxu0 0.0
  %425 = vmatprep.subr.mxu0 0.0
  %426 = vmatpush1.xpose.msra.mxu0 0.0
  %427 = vmatprep.subr.mxu0 0.0
  %428 = vmatpush1.xpose.msra.mxu0 0.0
  %429 = vmatprep.subr.mxu0 0.0
  %430 = vmatpush1.xpose.msra.mxu0 0.0
  %431 = vmatprep.subr.mxu0 0.0
  %432 = vmatpush1.xpose.msra.mxu0 0.0
  %433 = vmatprep.subr.mxu0 0.0
  %434 = vmatpush1.xpose.msra.mxu0 0.0
  %435 = vmatprep.subr.mxu0 0.0
  %436 = vmatpush1.xpose.msra.mxu0 0.0
  %437 = vmatprep.subr.mxu0 0.0
  %438 = vmatpush1.xpose.msra.mxu0 0.0
  %439 = vmatprep.subr.mxu0 0.0
  %440 = vmatpush1.xpose.msra.mxu0 0.0
  %441 = vmatprep.subr.mxu0 0.0
  %442 = vmatpush1.xpose.msra.mxu0 0.0
  %443 = vmatprep.subr.mxu0 0.0
  %444 = vmatpush1.xpose.msra.mxu0 0.0
  %445 = vmatprep.subr.mxu0 0.0
  %446 = vmatpush1.xpose.msra.mxu0 0.0
  %447 = vmatprep.subr.mxu0 0.0
  %448 = vmatpush1.xpose.msra.mxu0 0.0
  %449 = vmatprep.subr.mxu0 0.0
  %450 = vmatpush1.xpose.msra.mxu0 0.0
  %451 = vmatprep.subr.mxu0 0.0
  %452 = vmatpush1.xpose.msra.mxu0 0.0
  %453 = vmatprep.subr.mxu0 0.0
  %454 = vmatpush1.xpose.msra.mxu0 0.0
  %455 = vmatprep.subr.mxu0 0.0
  %456 = vmatpush1.xpose.msra.mxu0 0.0
  %457 = vmatprep.subr.mxu0 0.0
  %458 = vmatpush1.xpose.msra.mxu0 0.0
  %459 = vmatprep.subr.mxu0 0.0
  %460 = vmatpush1.xpose.msra.mxu0 0.0
  %461 = vmatprep.subr.mxu0 0.0
  %462 = vmatpush1.xpose.msra.mxu0 0.0
  %463 = vmatprep.mubr.f32.mxu0 0.0
  %464 = vmatmul.mubr.f32.gmra.mrb[0].mxu0 %v375
  %v465 = vpop.f32.mrb[0].mxu0
  %v466 = vadd.f32 0.0, %v465
  %v467 = vpop.f32.mrb[0].mxu0
  %468 = vmatprep.mubr.f32.mxu0 0.0
  %469 = vmatmul.mubr.f32.gmra.mrb[0].mxu0 %v377
  %v470 = vpop.f32.mrb[0].mxu0
  %v471 = vadd.f32 0.0, %v470
  %v472 = vpop.f32.mrb[0].mxu0
  %473 = vmatprep.mubr.f32.mxu0 0.0
  %474 = vmatmul.mubr.f32.gmra.mrb[0].mxu0 %v379
  %v475 = vpop.f32.mrb[0].mxu0
  %v476 = vadd.f32 0.0, %v475
  %v477 = vpop.f32.mrb[0].mxu0
  %478 = vmatprep.mubr.f32.mxu0 0.0
  %479 = vmatmul.mubr.f32.gmra.mrb[0].mxu0 %v381
  %v480 = vpop.f32.mrb[0].mxu0
  %v481 = vadd.f32 0.0, %v480
  %v482 = vpop.f32.mrb[0].mxu0
  %483 = vmatprep.mubr.f32.mxu0 0.0
  %484 = vmatmul.mubr.f32.gmra.mrb[0].mxu0 %v383
  %v485 = vpop.f32.mrb[0].mxu0
  %v486 = vadd.f32 0.0, %v485
  %v487 = vpop.f32.mrb[0].mxu0
  %488 = vmatprep.mubr.f32.mxu0 0.0
  %489 = vmatmul.mubr.f32.gmra.mrb[0].mxu0 %v385
  %v490 = vpop.f32.mrb[0].mxu0
  %v491 = vadd.f32 0.0, %v490
  %v492 = vpop.f32.mrb[0].mxu0
  %493 = vdwg.mxu0
  %494 = vrot.lane.b32.xlu0 %v208, 96
  %v495 = vpop.permute.xlu0 %494
  %496 = vrot.lane.b32.xlu0 %v210, 96
  %v497 = vpop.permute.xlu0 %496
  %498 = vrot.lane.b32.xlu0 %v212, 96
  %v499 = vpop.permute.xlu0 %498
  %500 = vrot.lane.b32.xlu0 %v214, 96
  %v501 = vpop.permute.xlu0 %500
  %502 = vrot.lane.b32.xlu0 %v216, 96
  %v503 = vpop.permute.xlu0 %502
  %504 = vrot.lane.b32.xlu0 %v218, 96
  %v505 = vpop.permute.xlu0 %504
  %v506 = vsel %vm243, %v208, 0
  %v508 = vsel %vm243, %v210, 0
  %v510 = vsel %vm243, %v212, 0
  %v512 = vsel %vm243, %v214, 0
  %v514 = vsel %vm243, %v216, 0
  %v516 = vsel %vm243, %v218, 0
  %v518 = vsel %vm243, %v495, 0
  %v520 = vsel %vm243, %v497, 0
  %v522 = vsel %vm243, %v499, 0
  %v524 = vsel %vm243, %v501, 0
  %v526 = vsel %vm243, %v503, 0
  %v528 = vsel %vm243, %v505, 0
  %530 = vmatprep.subr.mxu0 0.0
  %531 = vmatpush1.xpose.msra.mxu0 %v518
  %532 = vmatprep.subr.mxu0 0.0
  %533 = vmatpush1.xpose.msra.mxu0 %v520
  %534 = vmatprep.subr.mxu0 0.0
  %535 = vmatpush1.xpose.msra.mxu0 %v522
  %536 = vmatprep.subr.mxu0 0.0
  %537 = vmatpush1.xpose.msra.mxu0 %v524
  %538 = vmatprep.subr.mxu0 0.0
  %539 = vmatpush1.xpose.msra.mxu0 %v526
  %540 = vmatprep.subr.mxu0 0.0
  %541 = vmatpush1.xpose.msra.mxu0 %v528
  %542 = vmatprep.subr.mxu0 0.0
  %543 = vmatpush1.xpose.msra.mxu0 0.0
  %544 = vmatprep.subr.mxu0 0.0
  %545 = vmatpush1.xpose.msra.mxu0 0.0
  %546 = vmatprep.subr.mxu0 0.0
  %547 = vmatpush1.xpose.msra.mxu0 0.0
  %548 = vmatprep.subr.mxu0 0.0
  %549 = vmatpush1.xpose.msra.mxu0 0.0
  %550 = vmatprep.subr.mxu0 0.0
  %551 = vmatpush1.xpose.msra.mxu0 0.0
  %552 = vmatprep.subr.mxu0 0.0
  %553 = vmatpush1.xpose.msra.mxu0 0.0
  %554 = vmatprep.subr.mxu0 0.0
  %555 = vmatpush1.xpose.msra.mxu0 0.0
  %556 = vmatprep.subr.mxu0 0.0
  %557 = vmatpush1.xpose.msra.mxu0 0.0
  %558 = vmatprep.subr.mxu0 0.0
  %559 = vmatpush1.xpose.msra.mxu0 0.0
  %560 = vmatprep.subr.mxu0 0.0
  %561 = vmatpush1.xpose.msra.mxu0 0.0
  %562 = vmatprep.subr.mxu0 0.0
  %563 = vmatpush1.xpose.msra.mxu0 0.0
  %564 = vmatprep.subr.mxu0 0.0
  %565 = vmatpush1.xpose.msra.mxu0 0.0
  %566 = vmatprep.subr.mxu0 0.0
  %567 = vmatpush1.xpose.msra.mxu0 0.0
  %568 = vmatprep.subr.mxu0 0.0
  %569 = vmatpush1.xpose.msra.mxu0 0.0
  %570 = vmatprep.subr.mxu0 0.0
  %571 = vmatpush1.xpose.msra.mxu0 0.0
  %572 = vmatprep.subr.mxu0 0.0
  %573 = vmatpush1.xpose.msra.mxu0 0.0
  %574 = vmatprep.subr.mxu0 0.0
  %575 = vmatpush1.xpose.msra.mxu0 0.0
  %576 = vmatprep.subr.mxu0 0.0
  %577 = vmatpush1.xpose.msra.mxu0 0.0
  %578 = vmatprep.subr.mxu0 0.0
  %579 = vmatpush1.xpose.msra.mxu0 0.0
  %580 = vmatprep.subr.mxu0 0.0
  %581 = vmatpush1.xpose.msra.mxu0 0.0
  %582 = vmatprep.subr.mxu0 0.0
  %583 = vmatpush1.xpose.msra.mxu0 0.0
  %584 = vmatprep.subr.mxu0 0.0
  %585 = vmatpush1.xpose.msra.mxu0 0.0
  %586 = vmatprep.subr.mxu0 0.0
  %587 = vmatpush1.xpose.msra.mxu0 0.0
  %588 = vmatprep.subr.mxu0 0.0
  %589 = vmatpush1.xpose.msra.mxu0 0.0
  %590 = vmatprep.subr.mxu0 0.0
  %591 = vmatpush1.xpose.msra.mxu0 0.0
  %592 = vmatprep.subr.mxu0 0.0
  %593 = vmatpush1.xpose.msra.mxu0 0.0
  %594 = vmatprep.mubr.f32.mxu0 0.0
  %595 = vmatmul.mubr.f32.gmra.mrb[0].mxu0 %v506
  %v596 = vpop.f32.mrb[0].mxu0
  %v597 = vadd.f32 0.0, %v596
  %v598 = vpop.f32.mrb[0].mxu0
  %599 = vmatprep.mubr.f32.mxu0 0.0
  %600 = vmatmul.mubr.f32.gmra.mrb[0].mxu0 %v508
  %v601 = vpop.f32.mrb[0].mxu0
  %v602 = vadd.f32 0.0, %v601
  %v603 = vpop.f32.mrb[0].mxu0
  %604 = vmatprep.mubr.f32.mxu0 0.0
  %605 = vmatmul.mubr.f32.gmra.mrb[0].mxu0 %v510
  %v606 = vpop.f32.mrb[0].mxu0
  %v607 = vadd.f32 0.0, %v606
  %v608 = vpop.f32.mrb[0].mxu0
  %609 = vmatprep.mubr.f32.mxu0 0.0
  %610 = vmatmul.mubr.f32.gmra.mrb[0].mxu0 %v512
  %v611 = vpop.f32.mrb[0].mxu0
  %v612 = vadd.f32 0.0, %v611
  %v613 = vpop.f32.mrb[0].mxu0
  %614 = vmatprep.mubr.f32.mxu0 0.0
  %615 = vmatmul.mubr.f32.gmra.mrb[0].mxu0 %v514
  %v616 = vpop.f32.mrb[0].mxu0
  %v617 = vadd.f32 0.0, %v616
  %v618 = vpop.f32.mrb[0].mxu0
  %619 = vmatprep.mubr.f32.mxu0 0.0
  %620 = vmatmul.mubr.f32.gmra.mrb[0].mxu0 %v516
  %v621 = vpop.f32.mrb[0].mxu0
  %v622 = vadd.f32 0.0, %v621
  %v623 = vpop.f32.mrb[0].mxu0
  %624 = vdwg.mxu0
  %625 = vrot.lane.b32.xlu0 %v220, 96
  %v626 = vpop.permute.xlu0 %625
  %627 = vrot.lane.b32.xlu0 %v222, 96
  %v628 = vpop.permute.xlu0 %627
  %629 = vrot.lane.b32.xlu0 %v224, 96
  %v630 = vpop.permute.xlu0 %629
  %631 = vrot.lane.b32.xlu0 %v226, 96
  %v632 = vpop.permute.xlu0 %631
  %633 = vrot.lane.b32.xlu0 %v228, 96
  %v634 = vpop.permute.xlu0 %633
  %635 = vrot.lane.b32.xlu0 %v230, 96
  %v636 = vpop.permute.xlu0 %635
  %v637 = vsel %vm243, %v220, 0
  %v639 = vsel %vm243, %v222, 0
  %v641 = vsel %vm243, %v224, 0
  %v643 = vsel %vm243, %v226, 0
  %v645 = vsel %vm243, %v228, 0
  %v647 = vsel %vm243, %v230, 0
  %v649 = vsel %vm243, %v626, 0
  %v651 = vsel %vm243, %v628, 0
  %v653 = vsel %vm243, %v630, 0
  %v655 = vsel %vm243, %v632, 0
  %v657 = vsel %vm243, %v634, 0
  %v659 = vsel %vm243, %v636, 0
  %661 = vmatprep.subr.mxu0 0.0
  %662 = vmatpush1.xpose.msra.mxu0 %v649
  %663 = vmatprep.subr.mxu0 0.0
  %664 = vmatpush1.xpose.msra.mxu0 %v651
  %665 = vmatprep.subr.mxu0 0.0
  %666 = vmatpush1.xpose.msra.mxu0 %v653
  %667 = vmatprep.subr.mxu0 0.0
  %668 = vmatpush1.xpose.msra.mxu0 %v655
  %669 = vmatprep.subr.mxu0 0.0
  %670 = vmatpush1.xpose.msra.mxu0 %v657
  %671 = vmatprep.subr.mxu0 0.0
  %672 = vmatpush1.xpose.msra.mxu0 %v659
  %673 = vmatprep.subr.mxu0 0.0
  %674 = vmatpush1.xpose.msra.mxu0 0.0
  %675 = vmatprep.subr.mxu0 0.0
  %676 = vmatpush1.xpose.msra.mxu0 0.0
  %677 = vmatprep.subr.mxu0 0.0
  %678 = vmatpush1.xpose.msra.mxu0 0.0
  %679 = vmatprep.subr.mxu0 0.0
  %680 = vmatpush1.xpose.msra.mxu0 0.0
  %681 = vmatprep.subr.mxu0 0.0
  %682 = vmatpush1.xpose.msra.mxu0 0.0
  %683 = vmatprep.subr.mxu0 0.0
  %684 = vmatpush1.xpose.msra.mxu0 0.0
  %685 = vmatprep.subr.mxu0 0.0
  %686 = vmatpush1.xpose.msra.mxu0 0.0
  %687 = vmatprep.subr.mxu0 0.0
  %688 = vmatpush1.xpose.msra.mxu0 0.0
  %689 = vmatprep.subr.mxu0 0.0
  %690 = vmatpush1.xpose.msra.mxu0 0.0
  %691 = vmatprep.subr.mxu0 0.0
  %692 = vmatpush1.xpose.msra.mxu0 0.0
  %693 = vmatprep.subr.mxu0 0.0
  %694 = vmatpush1.xpose.msra.mxu0 0.0
  %695 = vmatprep.subr.mxu0 0.0
  %696 = vmatpush1.xpose.msra.mxu0 0.0
  %697 = vmatprep.subr.mxu0 0.0
  %698 = vmatpush1.xpose.msra.mxu0 0.0
  %699 = vmatprep.subr.mxu0 0.0
  %700 = vmatpush1.xpose.msra.mxu0 0.0
  %701 = vmatprep.subr.mxu0 0.0
  %702 = vmatpush1.xpose.msra.mxu0 0.0
  %703 = vmatprep.subr.mxu0 0.0
  %704 = vmatpush1.xpose.msra.mxu0 0.0
  %705 = vmatprep.subr.mxu0 0.0
  %706 = vmatpush1.xpose.msra.mxu0 0.0
  %707 = vmatprep.subr.mxu0 0.0
  %708 = vmatpush1.xpose.msra.mxu0 0.0
  %709 = vmatprep.subr.mxu0 0.0
  %710 = vmatpush1.xpose.msra.mxu0 0.0
  %711 = vmatprep.subr.mxu0 0.0
  %712 = vmatpush1.xpose.msra.mxu0 0.0
  %713 = vmatprep.subr.mxu0 0.0
  %714 = vmatpush1.xpose.msra.mxu0 0.0
  %715 = vmatprep.subr.mxu0 0.0
  %716 = vmatpush1.xpose.msra.mxu0 0.0
  %717 = vmatprep.subr.mxu0 0.0
  %718 = vmatpush1.xpose.msra.mxu0 0.0
  %719 = vmatprep.subr.mxu0 0.0
  %720 = vmatpush1.xpose.msra.mxu0 0.0
  %721 = vmatprep.subr.mxu0 0.0
  %722 = vmatpush1.xpose.msra.mxu0 0.0
  %723 = vmatprep.subr.mxu0 0.0
  %724 = vmatpush1.xpose.msra.mxu0 0.0
  %725 = vmatprep.mubr.f32.mxu0 0.0
  %726 = vmatmul.mubr.f32.gmra.mrb[0].mxu0 %v637
  %v727 = vpop.f32.mrb[0].mxu0
  %v728 = vadd.f32 0.0, %v727
  %v729 = vpop.f32.mrb[0].mxu0
  %730 = vmatprep.mubr.f32.mxu0 0.0
  %731 = vmatmul.mubr.f32.gmra.mrb[0].mxu0 %v639
  %v732 = vpop.f32.mrb[0].mxu0
  %v733 = vadd.f32 0.0, %v732
  %v734 = vpop.f32.mrb[0].mxu0
  %735 = vmatprep.mubr.f32.mxu0 0.0
  %736 = vmatmul.mubr.f32.gmra.mrb[0].mxu0 %v641
  %v737 = vpop.f32.mrb[0].mxu0
  %v738 = vadd.f32 0.0, %v737
  %v739 = vpop.f32.mrb[0].mxu0
  %740 = vmatprep.mubr.f32.mxu0 0.0
  %741 = vmatmul.mubr.f32.gmra.mrb[0].mxu0 %v643
  %v742 = vpop.f32.mrb[0].mxu0
  %v743 = vadd.f32 0.0, %v742
  %v744 = vpop.f32.mrb[0].mxu0
  %745 = vmatprep.mubr.f32.mxu0 0.0
  %746 = vmatmul.mubr.f32.gmra.mrb[0].mxu0 %v645
  %v747 = vpop.f32.mrb[0].mxu0
  %v748 = vadd.f32 0.0, %v747
  %v749 = vpop.f32.mrb[0].mxu0
  %750 = vmatprep.mubr.f32.mxu0 0.0
  %751 = vmatmul.mubr.f32.gmra.mrb[0].mxu0 %v647
  %v752 = vpop.f32.mrb[0].mxu0
  %v753 = vadd.f32 0.0, %v752
  %v754 = vpop.f32.mrb[0].mxu0
  %755 = vdwg.mxu0
  %756 = vxpose.xlu0.b32.start [1/16] %v335, 128
  %757 = vxpose.xlu0.b32.cont [2/16] %v340, 128
  %758 = vxpose.xlu0.b32.cont [3/16] %v345, 128
  %759 = vxpose.xlu0.b32.cont [4/16] %v350, 128
  %760 = vxpose.xlu0.b32.cont [5/16] %v355, 128
  %761 = vxpose.xlu0.b32.cont [6/16] %v360, 128
  %762 = vxpose.xlu0.b32.cont [7/16] %v466, 128
  %763 = vxpose.xlu0.b32.cont [8/16] %v471, 128
  %764 = vxpose.xlu0.b32.cont [9/16] %v476, 128
  %765 = vxpose.xlu0.b32.cont [10/16] %v481, 128
  %766 = vxpose.xlu0.b32.cont [11/16] %v486, 128
  %767 = vxpose.xlu0.b32.cont [12/16] %v491, 128
  %768 = vxpose.xlu0.b32.cont [13/16] %v597, 128
  %769 = vxpose.xlu0.b32.cont [14/16] %v602, 128
  %770 = vxpose.xlu0.b32.cont [15/16] %v607, 128
  %771 = vxpose.xlu0.b32.end [16/16] %v612, 128
  %v772 = vpop.trf.xlu0
  %v773 = vpop.trf.xlu0
  %v774 = vpop.trf.xlu0
  %v775 = vpop.trf.xlu0
  %v776 = vpop.trf.xlu0
  %v777 = vpop.trf.xlu0
  %v778 = vpop.trf.xlu0
  %v779 = vpop.trf.xlu0
  %v780 = vpop.trf.xlu0
  %v781 = vpop.trf.xlu0
  %v782 = vpop.trf.xlu0
  %v783 = vpop.trf.xlu0
  %v784 = vpop.trf.xlu0
  %v785 = vpop.trf.xlu0
  %v786 = vpop.trf.xlu0
  %v787 = vpop.trf.xlu0
  %788 = vxpose.xlu0.b32.start [1/16] %v617, 128
  %789 = vxpose.xlu0.b32.cont [2/16] %v622, 128
  %790 = vxpose.xlu0.b32.cont [3/16] %v728, 128
  %791 = vxpose.xlu0.b32.cont [4/16] %v733, 128
  %792 = vxpose.xlu0.b32.cont [5/16] %v738, 128
  %793 = vxpose.xlu0.b32.cont [6/16] %v743, 128
  %794 = vxpose.xlu0.b32.cont [7/16] %v748, 128
  %795 = vxpose.xlu0.b32.cont [8/16] %v753, 128
  %796 = vxpose.xlu0.b32.cont [9/16] 0.0, 128
  %797 = vxpose.xlu0.b32.cont [10/16] 0.0, 128
  %798 = vxpose.xlu0.b32.cont [11/16] 0.0, 128
  %799 = vxpose.xlu0.b32.cont [12/16] 0.0, 128
  %800 = vxpose.xlu0.b32.cont [13/16] 0.0, 128
  %801 = vxpose.xlu0.b32.cont [14/16] 0.0, 128
  %802 = vxpose.xlu0.b32.cont [15/16] 0.0, 128
  %803 = vxpose.xlu0.b32.end [16/16] 0.0, 128
  %v804 = vpop.trf.xlu0
  %v805 = vpop.trf.xlu0
  %v806 = vpop.trf.xlu0
  %v807 = vpop.trf.xlu0
  %v808 = vpop.trf.xlu0
  %v809 = vpop.trf.xlu0
  %v810 = vpop.trf.xlu0
  %v811 = vpop.trf.xlu0
  %v812 = vpop.trf.xlu0
  %v813 = vpop.trf.xlu0
  %v814 = vpop.trf.xlu0
  %v815 = vpop.trf.xlu0
  %v816 = vpop.trf.xlu0
  %v817 = vpop.trf.xlu0
  %v818 = vpop.trf.xlu0
  %v819 = vpop.trf.xlu0
  %v820 = vlaneseq
  %v821 = vshrl.u32 %v820, 7
  %v822 = vsub.s32 0, %v821
  %v823 = vrot.slane %v772, %v822
  %v824 = vlaneseq
  %v825 = vshrl.u32 %v824, 7
  %v826 = vsub.s32 0, %v825
  %v827 = vrot.slane %v804, %v826
  %v828 = vsub.f32 %v823, %v772
  %v829 = vsub.f32 %v827, %v804
  %v830 = vsub.f32 %v823, %v773
  %v831 = vsub.f32 %v827, %v805
  %v832 = vsub.f32 %v823, %v774
  %v833 = vsub.f32 %v827, %v806
  %v834 = vsub.f32 %v823, %v775
  %v835 = vsub.f32 %v827, %v807
  %v836 = vsub.f32 %v823, %v776
  %v837 = vsub.f32 %v827, %v808
  %v838 = vsub.f32 %v823, %v777
  %v839 = vsub.f32 %v827, %v809
  %v840 = vmax.f32 %v828, 0.0
  %v841 = vmax.f32 %v829, 0.0
  %v842 = vmax.f32 %v830, 0.0
  %v843 = vmax.f32 %v831, 0.0
  %v844 = vmax.f32 %v832, 0.0
  %v845 = vmax.f32 %v833, 0.0
  %v846 = vmax.f32 %v834, 0.0
  %v847 = vmax.f32 %v835, 0.0
  %v848 = vmax.f32 %v836, 0.0
  %v849 = vmax.f32 %v837, 0.0
  %v850 = vmax.f32 %v838, 0.0
  %v851 = vmax.f32 %v839, 0.0
  %v852 = vadd.f32 %v840, 0.0
  %v853 = vadd.f32 %v841, 0.0
  %v854 = vadd.f32 %v842, 0.0
  %v855 = vadd.f32 %v843, 0.0
  %v856 = vadd.f32 %v844, 0.0
  %v857 = vadd.f32 %v845, 0.0
  %v858 = vadd.f32 %v846, 0.0
  %v859 = vadd.f32 %v847, 0.0
  %v860 = vadd.f32 %v848, 0.0
  %v861 = vadd.f32 %v849, 0.0
  %v862 = vadd.f32 %v850, 0.0
  %v863 = vadd.f32 %v851, 0.0
  %v864 = vlaneseq
  %v865 = vshrl.u32 %v864, 7
  %v866 = vsub.s32 1, %v865
  %v867 = vrot.slane %v772, %v866
  %v868 = vlaneseq
  %v869 = vshrl.u32 %v868, 7
  %v870 = vsub.s32 1, %v869
  %v871 = vrot.slane %v804, %v870
  %v872 = vsub.f32 %v867, %v772
  %v873 = vsub.f32 %v871, %v804
  %v874 = vsub.f32 %v867, %v773
  %v875 = vsub.f32 %v871, %v805
  %v876 = vsub.f32 %v867, %v774
  %v877 = vsub.f32 %v871, %v806
  %v878 = vsub.f32 %v867, %v775
  %v879 = vsub.f32 %v871, %v807
  %v880 = vsub.f32 %v867, %v776
  %v881 = vsub.f32 %v871, %v808
  %v882 = vsub.f32 %v867, %v777
  %v883 = vsub.f32 %v871, %v809
  %v884 = vmax.f32 %v872, 0.0
  %v885 = vmax.f32 %v873, 0.0
  %v886 = vmax.f32 %v874, 0.0
  %v887 = vmax.f32 %v875, 0.0
  %v888 = vmax.f32 %v876, 0.0
  %v889 = vmax.f32 %v877, 0.0
  %v890 = vmax.f32 %v878, 0.0
  %v891 = vmax.f32 %v879, 0.0
  %v892 = vmax.f32 %v880, 0.0
  %v893 = vmax.f32 %v881, 0.0
  %v894 = vmax.f32 %v882, 0.0
  %v895 = vmax.f32 %v883, 0.0
  %v896 = vadd.f32 %v852, %v884
  %v897 = vadd.f32 %v853, %v885
  %v898 = vadd.f32 %v854, %v886
  %v899 = vadd.f32 %v855, %v887
  %v900 = vadd.f32 %v856, %v888
  %v901 = vadd.f32 %v857, %v889
  %v902 = vadd.f32 %v858, %v890
  %v903 = vadd.f32 %v859, %v891
  %v904 = vadd.f32 %v860, %v892
  %v905 = vadd.f32 %v861, %v893
  %v906 = vadd.f32 %v862, %v894
  %v907 = vadd.f32 %v863, %v895
  %v908 = vlaneseq
  %v909 = vshrl.u32 %v908, 7
  %v910 = vsub.s32 2, %v909
  %v911 = vrot.slane %v772, %v910
  %v912 = vlaneseq
  %v913 = vshrl.u32 %v912, 7
  %v914 = vsub.s32 2, %v913
  %v915 = vrot.slane %v804, %v914
  %v916 = vsub.f32 %v911, %v772
  %v917 = vsub.f32 %v915, %v804
  %v918 = vsub.f32 %v911, %v773
  %v919 = vsub.f32 %v915, %v805
  %v920 = vsub.f32 %v911, %v774
  %v921 = vsub.f32 %v915, %v806
  %v922 = vsub.f32 %v911, %v775
  %v923 = vsub.f32 %v915, %v807
  %v924 = vsub.f32 %v911, %v776
  %v925 = vsub.f32 %v915, %v808
  %v926 = vsub.f32 %v911, %v777
  %v927 = vsub.f32 %v915, %v809
  %v928 = vmax.f32 %v916, 0.0
  %v929 = vmax.f32 %v917, 0.0
  %v930 = vmax.f32 %v918, 0.0
  %v931 = vmax.f32 %v919, 0.0
  %v932 = vmax.f32 %v920, 0.0
  %v933 = vmax.f32 %v921, 0.0
  %v934 = vmax.f32 %v922, 0.0
  %v935 = vmax.f32 %v923, 0.0
  %v936 = vmax.f32 %v924, 0.0
  %v937 = vmax.f32 %v925, 0.0
  %v938 = vmax.f32 %v926, 0.0
  %v939 = vmax.f32 %v927, 0.0
  %v940 = vadd.f32 %v896, %v928
  %v941 = vadd.f32 %v897, %v929
  %v942 = vadd.f32 %v898, %v930
  %v943 = vadd.f32 %v899, %v931
  %v944 = vadd.f32 %v900, %v932
  %v945 = vadd.f32 %v901, %v933
  %v946 = vadd.f32 %v902, %v934
  %v947 = vadd.f32 %v903, %v935
  %v948 = vadd.f32 %v904, %v936
  %v949 = vadd.f32 %v905, %v937
  %v950 = vadd.f32 %v906, %v938
  %v951 = vadd.f32 %v907, %v939
  %v952 = vlaneseq
  %v953 = vshrl.u32 %v952, 7
  %v954 = vsub.s32 3, %v953
  %v955 = vrot.slane %v772, %v954
  %v956 = vlaneseq
  %v957 = vshrl.u32 %v956, 7
  %v958 = vsub.s32 3, %v957
  %v959 = vrot.slane %v804, %v958
  %v960 = vsub.f32 %v955, %v772
  %v961 = vsub.f32 %v959, %v804
  %v962 = vsub.f32 %v955, %v773
  %v963 = vsub.f32 %v959, %v805
  %v964 = vsub.f32 %v955, %v774
  %v965 = vsub.f32 %v959, %v806
  %v966 = vsub.f32 %v955, %v775
  %v967 = vsub.f32 %v959, %v807
  %v968 = vsub.f32 %v955, %v776
  %v969 = vsub.f32 %v959, %v808
  %v970 = vsub.f32 %v955, %v777
  %v971 = vsub.f32 %v959, %v809
  %v972 = vmax.f32 %v960, 0.0
  %v973 = vmax.f32 %v961, 0.0
  %v974 = vmax.f32 %v962, 0.0
  %v975 = vmax.f32 %v963, 0.0
  %v976 = vmax.f32 %v964, 0.0
  %v977 = vmax.f32 %v965, 0.0
  %v978 = vmax.f32 %v966, 0.0
  %v979 = vmax.f32 %v967, 0.0
  %v980 = vmax.f32 %v968, 0.0
  %v981 = vmax.f32 %v969, 0.0
  %v982 = vmax.f32 %v970, 0.0
  %v983 = vmax.f32 %v971, 0.0
  %v984 = vadd.f32 %v940, %v972
  %v985 = vadd.f32 %v941, %v973
  %v986 = vadd.f32 %v942, %v974
  %v987 = vadd.f32 %v943, %v975
  %v988 = vadd.f32 %v944, %v976
  %v989 = vadd.f32 %v945, %v977
  %v990 = vadd.f32 %v946, %v978
  %v991 = vadd.f32 %v947, %v979
  %v992 = vadd.f32 %v948, %v980
  %v993 = vadd.f32 %v949, %v981
  %v994 = vadd.f32 %v950, %v982
  %v995 = vadd.f32 %v951, %v983
  %v996 = vlaneseq
  %v997 = vshrl.u32 %v996, 7
  %v998 = vsub.s32 4, %v997
  %v999 = vrot.slane %v772, %v998
  %v1000 = vlaneseq
  %v1001 = vshrl.u32 %v1000, 7
  %v1002 = vsub.s32 4, %v1001
  %v1003 = vrot.slane %v804, %v1002
  %v1004 = vsub.f32 %v999, %v772
  %v1005 = vsub.f32 %v1003, %v804
  %v1006 = vsub.f32 %v999, %v773
  %v1007 = vsub.f32 %v1003, %v805
  %v1008 = vsub.f32 %v999, %v774
  %v1009 = vsub.f32 %v1003, %v806
  %v1010 = vsub.f32 %v999, %v775
  %v1011 = vsub.f32 %v1003, %v807
  %v1012 = vsub.f32 %v999, %v776
  %v1013 = vsub.f32 %v1003, %v808
  %v1014 = vsub.f32 %v999, %v777
  %v1015 = vsub.f32 %v1003, %v809
  %v1016 = vmax.f32 %v1004, 0.0
  %v1017 = vmax.f32 %v1005, 0.0
  %v1018 = vmax.f32 %v1006, 0.0
  %v1019 = vmax.f32 %v1007, 0.0
  %v1020 = vmax.f32 %v1008, 0.0
  %v1021 = vmax.f32 %v1009, 0.0
  %v1022 = vmax.f32 %v1010, 0.0
  %v1023 = vmax.f32 %v1011, 0.0
  %v1024 = vmax.f32 %v1012, 0.0
  %v1025 = vmax.f32 %v1013, 0.0
  %v1026 = vmax.f32 %v1014, 0.0
  %v1027 = vmax.f32 %v1015, 0.0
  %v1028 = vadd.f32 %v984, %v1016
  %v1029 = vadd.f32 %v985, %v1017
  %v1030 = vadd.f32 %v986, %v1018
  %v1031 = vadd.f32 %v987, %v1019
  %v1032 = vadd.f32 %v988, %v1020
  %v1033 = vadd.f32 %v989, %v1021
  %v1034 = vadd.f32 %v990, %v1022
  %v1035 = vadd.f32 %v991, %v1023
  %v1036 = vadd.f32 %v992, %v1024
  %v1037 = vadd.f32 %v993, %v1025
  %v1038 = vadd.f32 %v994, %v1026
  %v1039 = vadd.f32 %v995, %v1027
  %v1040 = vlaneseq
  %v1041 = vshrl.u32 %v1040, 7
  %v1042 = vsub.s32 5, %v1041
  %v1043 = vrot.slane %v772, %v1042
  %v1044 = vlaneseq
  %v1045 = vshrl.u32 %v1044, 7
  %v1046 = vsub.s32 5, %v1045
  %v1047 = vrot.slane %v804, %v1046
  %v1048 = vsub.f32 %v1043, %v772
  %v1049 = vsub.f32 %v1047, %v804
  %v1050 = vsub.f32 %v1043, %v773
  %v1051 = vsub.f32 %v1047, %v805
  %v1052 = vsub.f32 %v1043, %v774
  %v1053 = vsub.f32 %v1047, %v806
  %v1054 = vsub.f32 %v1043, %v775
  %v1055 = vsub.f32 %v1047, %v807
  %v1056 = vsub.f32 %v1043, %v776
  %v1057 = vsub.f32 %v1047, %v808
  %v1058 = vsub.f32 %v1043, %v777
  %v1059 = vsub.f32 %v1047, %v809
  %v1060 = vmax.f32 %v1048, 0.0
  %v1061 = vmax.f32 %v1049, 0.0
  %v1062 = vmax.f32 %v1050, 0.0
  %v1063 = vmax.f32 %v1051, 0.0
  %v1064 = vmax.f32 %v1052, 0.0
  %v1065 = vmax.f32 %v1053, 0.0
  %v1066 = vmax.f32 %v1054, 0.0
  %v1067 = vmax.f32 %v1055, 0.0
  %v1068 = vmax.f32 %v1056, 0.0
  %v1069 = vmax.f32 %v1057, 0.0
  %v1070 = vmax.f32 %v1058, 0.0
  %v1071 = vmax.f32 %v1059, 0.0
  %v1072 = vadd.f32 %v1028, %v1060
  %v1073 = vadd.f32 %v1029, %v1061
  %v1074 = vadd.f32 %v1030, %v1062
  %v1075 = vadd.f32 %v1031, %v1063
  %v1076 = vadd.f32 %v1032, %v1064
  %v1077 = vadd.f32 %v1033, %v1065
  %v1078 = vadd.f32 %v1034, %v1066
  %v1079 = vadd.f32 %v1035, %v1067
  %v1080 = vadd.f32 %v1036, %v1068
  %v1081 = vadd.f32 %v1037, %v1069
  %v1082 = vadd.f32 %v1038, %v1070
  %v1083 = vadd.f32 %v1039, %v1071
  %v1084 = vlaneseq
  %v1085 = vshrl.u32 %v1084, 7
  %v1086 = vsub.s32 6, %v1085
  %v1087 = vrot.slane %v772, %v1086
  %v1088 = vlaneseq
  %v1089 = vshrl.u32 %v1088, 7
  %v1090 = vsub.s32 6, %v1089
  %v1091 = vrot.slane %v804, %v1090
  %v1092 = vsub.f32 %v1087, %v772
  %v1093 = vsub.f32 %v1091, %v804
  %v1094 = vsub.f32 %v1087, %v773
  %v1095 = vsub.f32 %v1091, %v805
  %v1096 = vsub.f32 %v1087, %v774
  %v1097 = vsub.f32 %v1091, %v806
  %v1098 = vsub.f32 %v1087, %v775
  %v1099 = vsub.f32 %v1091, %v807
  %v1100 = vsub.f32 %v1087, %v776
  %v1101 = vsub.f32 %v1091, %v808
  %v1102 = vsub.f32 %v1087, %v777
  %v1103 = vsub.f32 %v1091, %v809
  %v1104 = vmax.f32 %v1092, 0.0
  %v1105 = vmax.f32 %v1093, 0.0
  %v1106 = vmax.f32 %v1094, 0.0
  %v1107 = vmax.f32 %v1095, 0.0
  %v1108 = vmax.f32 %v1096, 0.0
  %v1109 = vmax.f32 %v1097, 0.0
  %v1110 = vmax.f32 %v1098, 0.0
  %v1111 = vmax.f32 %v1099, 0.0
  %v1112 = vmax.f32 %v1100, 0.0
  %v1113 = vmax.f32 %v1101, 0.0
  %v1114 = vmax.f32 %v1102, 0.0
  %v1115 = vmax.f32 %v1103, 0.0
  %v1116 = vadd.f32 %v1072, %v1104
  %v1117 = vadd.f32 %v1073, %v1105
  %v1118 = vadd.f32 %v1074, %v1106
  %v1119 = vadd.f32 %v1075, %v1107
  %v1120 = vadd.f32 %v1076, %v1108
  %v1121 = vadd.f32 %v1077, %v1109
  %v1122 = vadd.f32 %v1078, %v1110
  %v1123 = vadd.f32 %v1079, %v1111
  %v1124 = vadd.f32 %v1080, %v1112
  %v1125 = vadd.f32 %v1081, %v1113
  %v1126 = vadd.f32 %v1082, %v1114
  %v1127 = vadd.f32 %v1083, %v1115
  %v1128 = vlaneseq
  %v1129 = vshrl.u32 %v1128, 7
  %v1130 = vsub.s32 7, %v1129
  %v1131 = vrot.slane %v772, %v1130
  %v1132 = vlaneseq
  %v1133 = vshrl.u32 %v1132, 7
  %v1134 = vsub.s32 7, %v1133
  %v1135 = vrot.slane %v804, %v1134
  %v1136 = vsub.f32 %v1131, %v772
  %v1137 = vsub.f32 %v1135, %v804
  %v1138 = vsub.f32 %v1131, %v773
  %v1139 = vsub.f32 %v1135, %v805
  %v1140 = vsub.f32 %v1131, %v774
  %v1141 = vsub.f32 %v1135, %v806
  %v1142 = vsub.f32 %v1131, %v775
  %v1143 = vsub.f32 %v1135, %v807
  %v1144 = vsub.f32 %v1131, %v776
  %v1145 = vsub.f32 %v1135, %v808
  %v1146 = vsub.f32 %v1131, %v777
  %v1147 = vsub.f32 %v1135, %v809
  %v1148 = vmax.f32 %v1136, 0.0
  %v1149 = vmax.f32 %v1137, 0.0
  %v1150 = vmax.f32 %v1138, 0.0
  %v1151 = vmax.f32 %v1139, 0.0
  %v1152 = vmax.f32 %v1140, 0.0
  %v1153 = vmax.f32 %v1141, 0.0
  %v1154 = vmax.f32 %v1142, 0.0
  %v1155 = vmax.f32 %v1143, 0.0
  %v1156 = vmax.f32 %v1144, 0.0
  %v1157 = vmax.f32 %v1145, 0.0
  %v1158 = vmax.f32 %v1146, 0.0
  %v1159 = vmax.f32 %v1147, 0.0
  %v1160 = vadd.f32 %v1116, %v1148
  %v1161 = vadd.f32 %v1117, %v1149
  %v1162 = vadd.f32 %v1118, %v1150
  %v1163 = vadd.f32 %v1119, %v1151
  %v1164 = vadd.f32 %v1120, %v1152
  %v1165 = vadd.f32 %v1121, %v1153
  %v1166 = vadd.f32 %v1122, %v1154
  %v1167 = vadd.f32 %v1123, %v1155
  %v1168 = vadd.f32 %v1124, %v1156
  %v1169 = vadd.f32 %v1125, %v1157
  %v1170 = vadd.f32 %v1126, %v1158
  %v1171 = vadd.f32 %v1127, %v1159
  %v1172 = vlaneseq
  %v1173 = vshrl.u32 %v1172, 7
  %v1174 = vsub.s32 0, %v1173
  %v1175 = vrot.slane %v773, %v1174
  %v1176 = vlaneseq
  %v1177 = vshrl.u32 %v1176, 7
  %v1178 = vsub.s32 0, %v1177
  %v1179 = vrot.slane %v805, %v1178
  %v1180 = vsub.f32 %v1175, %v772
  %v1181 = vsub.f32 %v1179, %v804
  %v1182 = vsub.f32 %v1175, %v773
  %v1183 = vsub.f32 %v1179, %v805
  %v1184 = vsub.f32 %v1175, %v774
  %v1185 = vsub.f32 %v1179, %v806
  %v1186 = vsub.f32 %v1175, %v775
  %v1187 = vsub.f32 %v1179, %v807
  %v1188 = vsub.f32 %v1175, %v776
  %v1189 = vsub.f32 %v1179, %v808
  %v1190 = vsub.f32 %v1175, %v777
  %v1191 = vsub.f32 %v1179, %v809
  %v1192 = vmax.f32 %v1180, 0.0
  %v1193 = vmax.f32 %v1181, 0.0
  %v1194 = vmax.f32 %v1182, 0.0
  %v1195 = vmax.f32 %v1183, 0.0
  %v1196 = vmax.f32 %v1184, 0.0
  %v1197 = vmax.f32 %v1185, 0.0
  %v1198 = vmax.f32 %v1186, 0.0
  %v1199 = vmax.f32 %v1187, 0.0
  %v1200 = vmax.f32 %v1188, 0.0
  %v1201 = vmax.f32 %v1189, 0.0
  %v1202 = vmax.f32 %v1190, 0.0
  %v1203 = vmax.f32 %v1191, 0.0
  %v1204 = vadd.f32 %v1160, %v1192
  %v1205 = vadd.f32 %v1161, %v1193
  %v1206 = vadd.f32 %v1162, %v1194
  %v1207 = vadd.f32 %v1163, %v1195
  %v1208 = vadd.f32 %v1164, %v1196
  %v1209 = vadd.f32 %v1165, %v1197
  %v1210 = vadd.f32 %v1166, %v1198
  %v1211 = vadd.f32 %v1167, %v1199
  %v1212 = vadd.f32 %v1168, %v1200
  %v1213 = vadd.f32 %v1169, %v1201
  %v1214 = vadd.f32 %v1170, %v1202
  %v1215 = vadd.f32 %v1171, %v1203
  %v1216 = vlaneseq
  %v1217 = vshrl.u32 %v1216, 7
  %v1218 = vsub.s32 1, %v1217
  %v1219 = vrot.slane %v773, %v1218
  %v1220 = vlaneseq
  %v1221 = vshrl.u32 %v1220, 7
  %v1222 = vsub.s32 1, %v1221
  %v1223 = vrot.slane %v805, %v1222
  %v1224 = vsub.f32 %v1219, %v772
  %v1225 = vsub.f32 %v1223, %v804
  %v1226 = vsub.f32 %v1219, %v773
  %v1227 = vsub.f32 %v1223, %v805
  %v1228 = vsub.f32 %v1219, %v774
  %v1229 = vsub.f32 %v1223, %v806
  %v1230 = vsub.f32 %v1219, %v775
  %v1231 = vsub.f32 %v1223, %v807
  %v1232 = vsub.f32 %v1219, %v776
  %v1233 = vsub.f32 %v1223, %v808
  %v1234 = vsub.f32 %v1219, %v777
  %v1235 = vsub.f32 %v1223, %v809
  %v1236 = vmax.f32 %v1224, 0.0
  %v1237 = vmax.f32 %v1225, 0.0
  %v1238 = vmax.f32 %v1226, 0.0
  %v1239 = vmax.f32 %v1227, 0.0
  %v1240 = vmax.f32 %v1228, 0.0
  %v1241 = vmax.f32 %v1229, 0.0
  %v1242 = vmax.f32 %v1230, 0.0
  %v1243 = vmax.f32 %v1231, 0.0
  %v1244 = vmax.f32 %v1232, 0.0
  %v1245 = vmax.f32 %v1233, 0.0
  %v1246 = vmax.f32 %v1234, 0.0
  %v1247 = vmax.f32 %v1235, 0.0
  %v1248 = vadd.f32 %v1204, %v1236
  %v1249 = vadd.f32 %v1205, %v1237
  %v1250 = vadd.f32 %v1206, %v1238
  %v1251 = vadd.f32 %v1207, %v1239
  %v1252 = vadd.f32 %v1208, %v1240
  %v1253 = vadd.f32 %v1209, %v1241
  %v1254 = vadd.f32 %v1210, %v1242
  %v1255 = vadd.f32 %v1211, %v1243
  %v1256 = vadd.f32 %v1212, %v1244
  %v1257 = vadd.f32 %v1213, %v1245
  %v1258 = vadd.f32 %v1214, %v1246
  %v1259 = vadd.f32 %v1215, %v1247
  %v1260 = vlaneseq
  %v1261 = vshrl.u32 %v1260, 7
  %v1262 = vsub.s32 2, %v1261
  %v1263 = vrot.slane %v773, %v1262
  %v1264 = vlaneseq
  %v1265 = vshrl.u32 %v1264, 7
  %v1266 = vsub.s32 2, %v1265
  %v1267 = vrot.slane %v805, %v1266
  %v1268 = vsub.f32 %v1263, %v772
  %v1269 = vsub.f32 %v1267, %v804
  %v1270 = vsub.f32 %v1263, %v773
  %v1271 = vsub.f32 %v1267, %v805
  %v1272 = vsub.f32 %v1263, %v774
  %v1273 = vsub.f32 %v1267, %v806
  %v1274 = vsub.f32 %v1263, %v775
  %v1275 = vsub.f32 %v1267, %v807
  %v1276 = vsub.f32 %v1263, %v776
  %v1277 = vsub.f32 %v1267, %v808
  %v1278 = vsub.f32 %v1263, %v777
  %v1279 = vsub.f32 %v1267, %v809
  %v1280 = vmax.f32 %v1268, 0.0
  %v1281 = vmax.f32 %v1269, 0.0
  %v1282 = vmax.f32 %v1270, 0.0
  %v1283 = vmax.f32 %v1271, 0.0
  %v1284 = vmax.f32 %v1272, 0.0
  %v1285 = vmax.f32 %v1273, 0.0
  %v1286 = vmax.f32 %v1274, 0.0
  %v1287 = vmax.f32 %v1275, 0.0
  %v1288 = vmax.f32 %v1276, 0.0
  %v1289 = vmax.f32 %v1277, 0.0
  %v1290 = vmax.f32 %v1278, 0.0
  %v1291 = vmax.f32 %v1279, 0.0
  %v1292 = vadd.f32 %v1248, %v1280
  %v1293 = vadd.f32 %v1249, %v1281
  %v1294 = vadd.f32 %v1250, %v1282
  %v1295 = vadd.f32 %v1251, %v1283
  %v1296 = vadd.f32 %v1252, %v1284
  %v1297 = vadd.f32 %v1253, %v1285
  %v1298 = vadd.f32 %v1254, %v1286
  %v1299 = vadd.f32 %v1255, %v1287
  %v1300 = vadd.f32 %v1256, %v1288
  %v1301 = vadd.f32 %v1257, %v1289
  %v1302 = vadd.f32 %v1258, %v1290
  %v1303 = vadd.f32 %v1259, %v1291
  %v1304 = vlaneseq
  %v1305 = vshrl.u32 %v1304, 7
  %v1306 = vsub.s32 3, %v1305
  %v1307 = vrot.slane %v773, %v1306
  %v1308 = vlaneseq
  %v1309 = vshrl.u32 %v1308, 7
  %v1310 = vsub.s32 3, %v1309
  %v1311 = vrot.slane %v805, %v1310
  %v1312 = vsub.f32 %v1307, %v772
  %v1313 = vsub.f32 %v1311, %v804
  %v1314 = vsub.f32 %v1307, %v773
  %v1315 = vsub.f32 %v1311, %v805
  %v1316 = vsub.f32 %v1307, %v774
  %v1317 = vsub.f32 %v1311, %v806
  %v1318 = vsub.f32 %v1307, %v775
  %v1319 = vsub.f32 %v1311, %v807
  %v1320 = vsub.f32 %v1307, %v776
  %v1321 = vsub.f32 %v1311, %v808
  %v1322 = vsub.f32 %v1307, %v777
  %v1323 = vsub.f32 %v1311, %v809
  %v1324 = vmax.f32 %v1312, 0.0
  %v1325 = vmax.f32 %v1313, 0.0
  %v1326 = vmax.f32 %v1314, 0.0
  %v1327 = vmax.f32 %v1315, 0.0
  %v1328 = vmax.f32 %v1316, 0.0
  %v1329 = vmax.f32 %v1317, 0.0
  %v1330 = vmax.f32 %v1318, 0.0
  %v1331 = vmax.f32 %v1319, 0.0
  %v1332 = vmax.f32 %v1320, 0.0
  %v1333 = vmax.f32 %v1321, 0.0
  %v1334 = vmax.f32 %v1322, 0.0
  %v1335 = vmax.f32 %v1323, 0.0
  %v1336 = vadd.f32 %v1292, %v1324
  %v1337 = vadd.f32 %v1293, %v1325
  %v1338 = vadd.f32 %v1294, %v1326
  %v1339 = vadd.f32 %v1295, %v1327
  %v1340 = vadd.f32 %v1296, %v1328
  %v1341 = vadd.f32 %v1297, %v1329
  %v1342 = vadd.f32 %v1298, %v1330
  %v1343 = vadd.f32 %v1299, %v1331
  %v1344 = vadd.f32 %v1300, %v1332
  %v1345 = vadd.f32 %v1301, %v1333
  %v1346 = vadd.f32 %v1302, %v1334
  %v1347 = vadd.f32 %v1303, %v1335
  %v1348 = vlaneseq
  %v1349 = vshrl.u32 %v1348, 7
  %v1350 = vsub.s32 4, %v1349
  %v1351 = vrot.slane %v773, %v1350
  %v1352 = vlaneseq
  %v1353 = vshrl.u32 %v1352, 7
  %v1354 = vsub.s32 4, %v1353
  %v1355 = vrot.slane %v805, %v1354
  %v1356 = vsub.f32 %v1351, %v772
  %v1357 = vsub.f32 %v1355, %v804
  %v1358 = vsub.f32 %v1351, %v773
  %v1359 = vsub.f32 %v1355, %v805
  %v1360 = vsub.f32 %v1351, %v774
  %v1361 = vsub.f32 %v1355, %v806
  %v1362 = vsub.f32 %v1351, %v775
  %v1363 = vsub.f32 %v1355, %v807
  %v1364 = vsub.f32 %v1351, %v776
  %v1365 = vsub.f32 %v1355, %v808
  %v1366 = vsub.f32 %v1351, %v777
  %v1367 = vsub.f32 %v1355, %v809
  %v1368 = vmax.f32 %v1356, 0.0
  %v1369 = vmax.f32 %v1357, 0.0
  %v1370 = vmax.f32 %v1358, 0.0
  %v1371 = vmax.f32 %v1359, 0.0
  %v1372 = vmax.f32 %v1360, 0.0
  %v1373 = vmax.f32 %v1361, 0.0
  %v1374 = vmax.f32 %v1362, 0.0
  %v1375 = vmax.f32 %v1363, 0.0
  %v1376 = vmax.f32 %v1364, 0.0
  %v1377 = vmax.f32 %v1365, 0.0
  %v1378 = vmax.f32 %v1366, 0.0
  %v1379 = vmax.f32 %v1367, 0.0
  %v1380 = vadd.f32 %v1336, %v1368
  %v1381 = vadd.f32 %v1337, %v1369
  %v1382 = vadd.f32 %v1338, %v1370
  %v1383 = vadd.f32 %v1339, %v1371
  %v1384 = vadd.f32 %v1340, %v1372
  %v1385 = vadd.f32 %v1341, %v1373
  %v1386 = vadd.f32 %v1342, %v1374
  %v1387 = vadd.f32 %v1343, %v1375
  %v1388 = vadd.f32 %v1344, %v1376
  %v1389 = vadd.f32 %v1345, %v1377
  %v1390 = vadd.f32 %v1346, %v1378
  %v1391 = vadd.f32 %v1347, %v1379
  %v1392 = vlaneseq
  %v1393 = vshrl.u32 %v1392, 7
  %v1394 = vsub.s32 5, %v1393
  %v1395 = vrot.slane %v773, %v1394
  %v1396 = vlaneseq
  %v1397 = vshrl.u32 %v1396, 7
  %v1398 = vsub.s32 5, %v1397
  %v1399 = vrot.slane %v805, %v1398
  %v1400 = vsub.f32 %v1395, %v772
  %v1401 = vsub.f32 %v1399, %v804
  %v1402 = vsub.f32 %v1395, %v773
  %v1403 = vsub.f32 %v1399, %v805
  %v1404 = vsub.f32 %v1395, %v774
  %v1405 = vsub.f32 %v1399, %v806
  %v1406 = vsub.f32 %v1395, %v775
  %v1407 = vsub.f32 %v1399, %v807
  %v1408 = vsub.f32 %v1395, %v776
  %v1409 = vsub.f32 %v1399, %v808
  %v1410 = vsub.f32 %v1395, %v777
  %v1411 = vsub.f32 %v1399, %v809
  %v1412 = vmax.f32 %v1400, 0.0
  %v1413 = vmax.f32 %v1401, 0.0
  %v1414 = vmax.f32 %v1402, 0.0
  %v1415 = vmax.f32 %v1403, 0.0
  %v1416 = vmax.f32 %v1404, 0.0
  %v1417 = vmax.f32 %v1405, 0.0
  %v1418 = vmax.f32 %v1406, 0.0
  %v1419 = vmax.f32 %v1407, 0.0
  %v1420 = vmax.f32 %v1408, 0.0
  %v1421 = vmax.f32 %v1409, 0.0
  %v1422 = vmax.f32 %v1410, 0.0
  %v1423 = vmax.f32 %v1411, 0.0
  %v1424 = vadd.f32 %v1380, %v1412
  %v1425 = vadd.f32 %v1381, %v1413
  %v1426 = vadd.f32 %v1382, %v1414
  %v1427 = vadd.f32 %v1383, %v1415
  %v1428 = vadd.f32 %v1384, %v1416
  %v1429 = vadd.f32 %v1385, %v1417
  %v1430 = vadd.f32 %v1386, %v1418
  %v1431 = vadd.f32 %v1387, %v1419
  %v1432 = vadd.f32 %v1388, %v1420
  %v1433 = vadd.f32 %v1389, %v1421
  %v1434 = vadd.f32 %v1390, %v1422
  %v1435 = vadd.f32 %v1391, %v1423
  %v1436 = vlaneseq
  %v1437 = vshrl.u32 %v1436, 7
  %v1438 = vsub.s32 6, %v1437
  %v1439 = vrot.slane %v773, %v1438
  %v1440 = vlaneseq
  %v1441 = vshrl.u32 %v1440, 7
  %v1442 = vsub.s32 6, %v1441
  %v1443 = vrot.slane %v805, %v1442
  %v1444 = vsub.f32 %v1439, %v772
  %v1445 = vsub.f32 %v1443, %v804
  %v1446 = vsub.f32 %v1439, %v773
  %v1447 = vsub.f32 %v1443, %v805
  %v1448 = vsub.f32 %v1439, %v774
  %v1449 = vsub.f32 %v1443, %v806
  %v1450 = vsub.f32 %v1439, %v775
  %v1451 = vsub.f32 %v1443, %v807
  %v1452 = vsub.f32 %v1439, %v776
  %v1453 = vsub.f32 %v1443, %v808
  %v1454 = vsub.f32 %v1439, %v777
  %v1455 = vsub.f32 %v1443, %v809
  %v1456 = vmax.f32 %v1444, 0.0
  %v1457 = vmax.f32 %v1445, 0.0
  %v1458 = vmax.f32 %v1446, 0.0
  %v1459 = vmax.f32 %v1447, 0.0
  %v1460 = vmax.f32 %v1448, 0.0
  %v1461 = vmax.f32 %v1449, 0.0
  %v1462 = vmax.f32 %v1450, 0.0
  %v1463 = vmax.f32 %v1451, 0.0
  %v1464 = vmax.f32 %v1452, 0.0
  %v1465 = vmax.f32 %v1453, 0.0
  %v1466 = vmax.f32 %v1454, 0.0
  %v1467 = vmax.f32 %v1455, 0.0
  %v1468 = vadd.f32 %v1424, %v1456
  %v1469 = vadd.f32 %v1425, %v1457
  %v1470 = vadd.f32 %v1426, %v1458
  %v1471 = vadd.f32 %v1427, %v1459
  %v1472 = vadd.f32 %v1428, %v1460
  %v1473 = vadd.f32 %v1429, %v1461
  %v1474 = vadd.f32 %v1430, %v1462
  %v1475 = vadd.f32 %v1431, %v1463
  %v1476 = vadd.f32 %v1432, %v1464
  %v1477 = vadd.f32 %v1433, %v1465
  %v1478 = vadd.f32 %v1434, %v1466
  %v1479 = vadd.f32 %v1435, %v1467
  %v1480 = vlaneseq
  %v1481 = vshrl.u32 %v1480, 7
  %v1482 = vsub.s32 7, %v1481
  %v1483 = vrot.slane %v773, %v1482
  %v1484 = vlaneseq
  %v1485 = vshrl.u32 %v1484, 7
  %v1486 = vsub.s32 7, %v1485
  %v1487 = vrot.slane %v805, %v1486
  %v1488 = vsub.f32 %v1483, %v772
  %v1489 = vsub.f32 %v1487, %v804
  %v1490 = vsub.f32 %v1483, %v773
  %v1491 = vsub.f32 %v1487, %v805
  %v1492 = vsub.f32 %v1483, %v774
  %v1493 = vsub.f32 %v1487, %v806
  %v1494 = vsub.f32 %v1483, %v775
  %v1495 = vsub.f32 %v1487, %v807
  %v1496 = vsub.f32 %v1483, %v776
  %v1497 = vsub.f32 %v1487, %v808
  %v1498 = vsub.f32 %v1483, %v777
  %v1499 = vsub.f32 %v1487, %v809
  %v1500 = vmax.f32 %v1488, 0.0
  %v1501 = vmax.f32 %v1489, 0.0
  %v1502 = vmax.f32 %v1490, 0.0
  %v1503 = vmax.f32 %v1491, 0.0
  %v1504 = vmax.f32 %v1492, 0.0
  %v1505 = vmax.f32 %v1493, 0.0
  %v1506 = vmax.f32 %v1494, 0.0
  %v1507 = vmax.f32 %v1495, 0.0
  %v1508 = vmax.f32 %v1496, 0.0
  %v1509 = vmax.f32 %v1497, 0.0
  %v1510 = vmax.f32 %v1498, 0.0
  %v1511 = vmax.f32 %v1499, 0.0
  %v1512 = vadd.f32 %v1468, %v1500
  %v1513 = vadd.f32 %v1469, %v1501
  %v1514 = vadd.f32 %v1470, %v1502
  %v1515 = vadd.f32 %v1471, %v1503
  %v1516 = vadd.f32 %v1472, %v1504
  %v1517 = vadd.f32 %v1473, %v1505
  %v1518 = vadd.f32 %v1474, %v1506
  %v1519 = vadd.f32 %v1475, %v1507
  %v1520 = vadd.f32 %v1476, %v1508
  %v1521 = vadd.f32 %v1477, %v1509
  %v1522 = vadd.f32 %v1478, %v1510
  %v1523 = vadd.f32 %v1479, %v1511
  %v1524 = vlaneseq
  %v1525 = vshrl.u32 %v1524, 7
  %v1526 = vsub.s32 0, %v1525
  %v1527 = vrot.slane %v774, %v1526
  %v1528 = vlaneseq
  %v1529 = vshrl.u32 %v1528, 7
  %v1530 = vsub.s32 0, %v1529
  %v1531 = vrot.slane %v806, %v1530
  %v1532 = vsub.f32 %v1527, %v772
  %v1533 = vsub.f32 %v1531, %v804
  %v1534 = vsub.f32 %v1527, %v773
  %v1535 = vsub.f32 %v1531, %v805
  %v1536 = vsub.f32 %v1527, %v774
  %v1537 = vsub.f32 %v1531, %v806
  %v1538 = vsub.f32 %v1527, %v775
  %v1539 = vsub.f32 %v1531, %v807
  %v1540 = vsub.f32 %v1527, %v776
  %v1541 = vsub.f32 %v1531, %v808
  %v1542 = vsub.f32 %v1527, %v777
  %v1543 = vsub.f32 %v1531, %v809
  %v1544 = vmax.f32 %v1532, 0.0
  %v1545 = vmax.f32 %v1533, 0.0
  %v1546 = vmax.f32 %v1534, 0.0
  %v1547 = vmax.f32 %v1535, 0.0
  %v1548 = vmax.f32 %v1536, 0.0
  %v1549 = vmax.f32 %v1537, 0.0
  %v1550 = vmax.f32 %v1538, 0.0
  %v1551 = vmax.f32 %v1539, 0.0
  %v1552 = vmax.f32 %v1540, 0.0
  %v1553 = vmax.f32 %v1541, 0.0
  %v1554 = vmax.f32 %v1542, 0.0
  %v1555 = vmax.f32 %v1543, 0.0
  %v1556 = vadd.f32 %v1512, %v1544
  %v1557 = vadd.f32 %v1513, %v1545
  %v1558 = vadd.f32 %v1514, %v1546
  %v1559 = vadd.f32 %v1515, %v1547
  %v1560 = vadd.f32 %v1516, %v1548
  %v1561 = vadd.f32 %v1517, %v1549
  %v1562 = vadd.f32 %v1518, %v1550
  %v1563 = vadd.f32 %v1519, %v1551
  %v1564 = vadd.f32 %v1520, %v1552
  %v1565 = vadd.f32 %v1521, %v1553
  %v1566 = vadd.f32 %v1522, %v1554
  %v1567 = vadd.f32 %v1523, %v1555
  %v1568 = vlaneseq
  %v1569 = vshrl.u32 %v1568, 7
  %v1570 = vsub.s32 1, %v1569
  %v1571 = vrot.slane %v774, %v1570
  %v1572 = vlaneseq
  %v1573 = vshrl.u32 %v1572, 7
  %v1574 = vsub.s32 1, %v1573
  %v1575 = vrot.slane %v806, %v1574
  %v1576 = vsub.f32 %v1571, %v772
  %v1577 = vsub.f32 %v1575, %v804
  %v1578 = vsub.f32 %v1571, %v773
  %v1579 = vsub.f32 %v1575, %v805
  %v1580 = vsub.f32 %v1571, %v774
  %v1581 = vsub.f32 %v1575, %v806
  %v1582 = vsub.f32 %v1571, %v775
  %v1583 = vsub.f32 %v1575, %v807
  %v1584 = vsub.f32 %v1571, %v776
  %v1585 = vsub.f32 %v1575, %v808
  %v1586 = vsub.f32 %v1571, %v777
  %v1587 = vsub.f32 %v1575, %v809
  %v1588 = vmax.f32 %v1576, 0.0
  %v1589 = vmax.f32 %v1577, 0.0
  %v1590 = vmax.f32 %v1578, 0.0
  %v1591 = vmax.f32 %v1579, 0.0
  %v1592 = vmax.f32 %v1580, 0.0
  %v1593 = vmax.f32 %v1581, 0.0
  %v1594 = vmax.f32 %v1582, 0.0
  %v1595 = vmax.f32 %v1583, 0.0
  %v1596 = vmax.f32 %v1584, 0.0
  %v1597 = vmax.f32 %v1585, 0.0
  %v1598 = vmax.f32 %v1586, 0.0
  %v1599 = vmax.f32 %v1587, 0.0
  %v1600 = vadd.f32 %v1556, %v1588
  %v1601 = vadd.f32 %v1557, %v1589
  %v1602 = vadd.f32 %v1558, %v1590
  %v1603 = vadd.f32 %v1559, %v1591
  %v1604 = vadd.f32 %v1560, %v1592
  %v1605 = vadd.f32 %v1561, %v1593
  %v1606 = vadd.f32 %v1562, %v1594
  %v1607 = vadd.f32 %v1563, %v1595
  %v1608 = vadd.f32 %v1564, %v1596
  %v1609 = vadd.f32 %v1565, %v1597
  %v1610 = vadd.f32 %v1566, %v1598
  %v1611 = vadd.f32 %v1567, %v1599
  %v1612 = vlaneseq
  %v1613 = vshrl.u32 %v1612, 7
  %v1614 = vsub.s32 2, %v1613
  %v1615 = vrot.slane %v774, %v1614
  %v1616 = vlaneseq
  %v1617 = vshrl.u32 %v1616, 7
  %v1618 = vsub.s32 2, %v1617
  %v1619 = vrot.slane %v806, %v1618
  %v1620 = vsub.f32 %v1615, %v772
  %v1621 = vsub.f32 %v1619, %v804
  %v1622 = vsub.f32 %v1615, %v773
  %v1623 = vsub.f32 %v1619, %v805
  %v1624 = vsub.f32 %v1615, %v774
  %v1625 = vsub.f32 %v1619, %v806
  %v1626 = vsub.f32 %v1615, %v775
  %v1627 = vsub.f32 %v1619, %v807
  %v1628 = vsub.f32 %v1615, %v776
  %v1629 = vsub.f32 %v1619, %v808
  %v1630 = vsub.f32 %v1615, %v777
  %v1631 = vsub.f32 %v1619, %v809
  %v1632 = vmax.f32 %v1620, 0.0
  %v1633 = vmax.f32 %v1621, 0.0
  %v1634 = vmax.f32 %v1622, 0.0
  %v1635 = vmax.f32 %v1623, 0.0
  %v1636 = vmax.f32 %v1624, 0.0
  %v1637 = vmax.f32 %v1625, 0.0
  %v1638 = vmax.f32 %v1626, 0.0
  %v1639 = vmax.f32 %v1627, 0.0
  %v1640 = vmax.f32 %v1628, 0.0
  %v1641 = vmax.f32 %v1629, 0.0
  %v1642 = vmax.f32 %v1630, 0.0
  %v1643 = vmax.f32 %v1631, 0.0
  %v1644 = vadd.f32 %v1600, %v1632
  %v1645 = vadd.f32 %v1601, %v1633
  %v1646 = vadd.f32 %v1602, %v1634
  %v1647 = vadd.f32 %v1603, %v1635
  %v1648 = vadd.f32 %v1604, %v1636
  %v1649 = vadd.f32 %v1605, %v1637
  %v1650 = vadd.f32 %v1606, %v1638
  %v1651 = vadd.f32 %v1607, %v1639
  %v1652 = vadd.f32 %v1608, %v1640
  %v1653 = vadd.f32 %v1609, %v1641
  %v1654 = vadd.f32 %v1610, %v1642
  %v1655 = vadd.f32 %v1611, %v1643
  %v1656 = vlaneseq
  %v1657 = vshrl.u32 %v1656, 7
  %v1658 = vsub.s32 3, %v1657
  %v1659 = vrot.slane %v774, %v1658
  %v1660 = vlaneseq
  %v1661 = vshrl.u32 %v1660, 7
  %v1662 = vsub.s32 3, %v1661
  %v1663 = vrot.slane %v806, %v1662
  %v1664 = vsub.f32 %v1659, %v772
  %v1665 = vsub.f32 %v1663, %v804
  %v1666 = vsub.f32 %v1659, %v773
  %v1667 = vsub.f32 %v1663, %v805
  %v1668 = vsub.f32 %v1659, %v774
  %v1669 = vsub.f32 %v1663, %v806
  %v1670 = vsub.f32 %v1659, %v775
  %v1671 = vsub.f32 %v1663, %v807
  %v1672 = vsub.f32 %v1659, %v776
  %v1673 = vsub.f32 %v1663, %v808
  %v1674 = vsub.f32 %v1659, %v777
  %v1675 = vsub.f32 %v1663, %v809
  %v1676 = vmax.f32 %v1664, 0.0
  %v1677 = vmax.f32 %v1665, 0.0
  %v1678 = vmax.f32 %v1666, 0.0
  %v1679 = vmax.f32 %v1667, 0.0
  %v1680 = vmax.f32 %v1668, 0.0
  %v1681 = vmax.f32 %v1669, 0.0
  %v1682 = vmax.f32 %v1670, 0.0
  %v1683 = vmax.f32 %v1671, 0.0
  %v1684 = vmax.f32 %v1672, 0.0
  %v1685 = vmax.f32 %v1673, 0.0
  %v1686 = vmax.f32 %v1674, 0.0
  %v1687 = vmax.f32 %v1675, 0.0
  %v1688 = vadd.f32 %v1644, %v1676
  %v1689 = vadd.f32 %v1645, %v1677
  %v1690 = vadd.f32 %v1646, %v1678
  %v1691 = vadd.f32 %v1647, %v1679
  %v1692 = vadd.f32 %v1648, %v1680
  %v1693 = vadd.f32 %v1649, %v1681
  %v1694 = vadd.f32 %v1650, %v1682
  %v1695 = vadd.f32 %v1651, %v1683
  %v1696 = vadd.f32 %v1652, %v1684
  %v1697 = vadd.f32 %v1653, %v1685
  %v1698 = vadd.f32 %v1654, %v1686
  %v1699 = vadd.f32 %v1655, %v1687
  %v1700 = vlaneseq
  %v1701 = vshrl.u32 %v1700, 7
  %v1702 = vsub.s32 4, %v1701
  %v1703 = vrot.slane %v774, %v1702
  %v1704 = vlaneseq
  %v1705 = vshrl.u32 %v1704, 7
  %v1706 = vsub.s32 4, %v1705
  %v1707 = vrot.slane %v806, %v1706
  %v1708 = vsub.f32 %v1703, %v772
  %v1709 = vsub.f32 %v1707, %v804
  %v1710 = vsub.f32 %v1703, %v773
  %v1711 = vsub.f32 %v1707, %v805
  %v1712 = vsub.f32 %v1703, %v774
  %v1713 = vsub.f32 %v1707, %v806
  %v1714 = vsub.f32 %v1703, %v775
  %v1715 = vsub.f32 %v1707, %v807
  %v1716 = vsub.f32 %v1703, %v776
  %v1717 = vsub.f32 %v1707, %v808
  %v1718 = vsub.f32 %v1703, %v777
  %v1719 = vsub.f32 %v1707, %v809
  %v1720 = vmax.f32 %v1708, 0.0
  %v1721 = vmax.f32 %v1709, 0.0
  %v1722 = vmax.f32 %v1710, 0.0
  %v1723 = vmax.f32 %v1711, 0.0
  %v1724 = vmax.f32 %v1712, 0.0
  %v1725 = vmax.f32 %v1713, 0.0
  %v1726 = vmax.f32 %v1714, 0.0
  %v1727 = vmax.f32 %v1715, 0.0
  %v1728 = vmax.f32 %v1716, 0.0
  %v1729 = vmax.f32 %v1717, 0.0
  %v1730 = vmax.f32 %v1718, 0.0
  %v1731 = vmax.f32 %v1719, 0.0
  %v1732 = vadd.f32 %v1688, %v1720
  %v1733 = vadd.f32 %v1689, %v1721
  %v1734 = vadd.f32 %v1690, %v1722
  %v1735 = vadd.f32 %v1691, %v1723
  %v1736 = vadd.f32 %v1692, %v1724
  %v1737 = vadd.f32 %v1693, %v1725
  %v1738 = vadd.f32 %v1694, %v1726
  %v1739 = vadd.f32 %v1695, %v1727
  %v1740 = vadd.f32 %v1696, %v1728
  %v1741 = vadd.f32 %v1697, %v1729
  %v1742 = vadd.f32 %v1698, %v1730
  %v1743 = vadd.f32 %v1699, %v1731
  %v1744 = vlaneseq
  %v1745 = vshrl.u32 %v1744, 7
  %v1746 = vsub.s32 5, %v1745
  %v1747 = vrot.slane %v774, %v1746
  %v1748 = vlaneseq
  %v1749 = vshrl.u32 %v1748, 7
  %v1750 = vsub.s32 5, %v1749
  %v1751 = vrot.slane %v806, %v1750
  %v1752 = vsub.f32 %v1747, %v772
  %v1753 = vsub.f32 %v1751, %v804
  %v1754 = vsub.f32 %v1747, %v773
  %v1755 = vsub.f32 %v1751, %v805
  %v1756 = vsub.f32 %v1747, %v774
  %v1757 = vsub.f32 %v1751, %v806
  %v1758 = vsub.f32 %v1747, %v775
  %v1759 = vsub.f32 %v1751, %v807
  %v1760 = vsub.f32 %v1747, %v776
  %v1761 = vsub.f32 %v1751, %v808
  %v1762 = vsub.f32 %v1747, %v777
  %v1763 = vsub.f32 %v1751, %v809
  %v1764 = vmax.f32 %v1752, 0.0
  %v1765 = vmax.f32 %v1753, 0.0
  %v1766 = vmax.f32 %v1754, 0.0
  %v1767 = vmax.f32 %v1755, 0.0
  %v1768 = vmax.f32 %v1756, 0.0
  %v1769 = vmax.f32 %v1757, 0.0
  %v1770 = vmax.f32 %v1758, 0.0
  %v1771 = vmax.f32 %v1759, 0.0
  %v1772 = vmax.f32 %v1760, 0.0
  %v1773 = vmax.f32 %v1761, 0.0
  %v1774 = vmax.f32 %v1762, 0.0
  %v1775 = vmax.f32 %v1763, 0.0
  %v1776 = vadd.f32 %v1732, %v1764
  %v1777 = vadd.f32 %v1733, %v1765
  %v1778 = vadd.f32 %v1734, %v1766
  %v1779 = vadd.f32 %v1735, %v1767
  %v1780 = vadd.f32 %v1736, %v1768
  %v1781 = vadd.f32 %v1737, %v1769
  %v1782 = vadd.f32 %v1738, %v1770
  %v1783 = vadd.f32 %v1739, %v1771
  %v1784 = vadd.f32 %v1740, %v1772
  %v1785 = vadd.f32 %v1741, %v1773
  %v1786 = vadd.f32 %v1742, %v1774
  %v1787 = vadd.f32 %v1743, %v1775
  %v1788 = vlaneseq
  %v1789 = vshrl.u32 %v1788, 7
  %v1790 = vsub.s32 6, %v1789
  %v1791 = vrot.slane %v774, %v1790
  %v1792 = vlaneseq
  %v1793 = vshrl.u32 %v1792, 7
  %v1794 = vsub.s32 6, %v1793
  %v1795 = vrot.slane %v806, %v1794
  %v1796 = vsub.f32 %v1791, %v772
  %v1797 = vsub.f32 %v1795, %v804
  %v1798 = vsub.f32 %v1791, %v773
  %v1799 = vsub.f32 %v1795, %v805
  %v1800 = vsub.f32 %v1791, %v774
  %v1801 = vsub.f32 %v1795, %v806
  %v1802 = vsub.f32 %v1791, %v775
  %v1803 = vsub.f32 %v1795, %v807
  %v1804 = vsub.f32 %v1791, %v776
  %v1805 = vsub.f32 %v1795, %v808
  %v1806 = vsub.f32 %v1791, %v777
  %v1807 = vsub.f32 %v1795, %v809
  %v1808 = vmax.f32 %v1796, 0.0
  %v1809 = vmax.f32 %v1797, 0.0
  %v1810 = vmax.f32 %v1798, 0.0
  %v1811 = vmax.f32 %v1799, 0.0
  %v1812 = vmax.f32 %v1800, 0.0
  %v1813 = vmax.f32 %v1801, 0.0
  %v1814 = vmax.f32 %v1802, 0.0
  %v1815 = vmax.f32 %v1803, 0.0
  %v1816 = vmax.f32 %v1804, 0.0
  %v1817 = vmax.f32 %v1805, 0.0
  %v1818 = vmax.f32 %v1806, 0.0
  %v1819 = vmax.f32 %v1807, 0.0
  %v1820 = vadd.f32 %v1776, %v1808
  %v1821 = vadd.f32 %v1777, %v1809
  %v1822 = vadd.f32 %v1778, %v1810
  %v1823 = vadd.f32 %v1779, %v1811
  %v1824 = vadd.f32 %v1780, %v1812
  %v1825 = vadd.f32 %v1781, %v1813
  %v1826 = vadd.f32 %v1782, %v1814
  %v1827 = vadd.f32 %v1783, %v1815
  %v1828 = vadd.f32 %v1784, %v1816
  %v1829 = vadd.f32 %v1785, %v1817
  %v1830 = vadd.f32 %v1786, %v1818
  %v1831 = vadd.f32 %v1787, %v1819
  %v1832 = vlaneseq
  %v1833 = vshrl.u32 %v1832, 7
  %v1834 = vsub.s32 7, %v1833
  %v1835 = vrot.slane %v774, %v1834
  %v1836 = vlaneseq
  %v1837 = vshrl.u32 %v1836, 7
  %v1838 = vsub.s32 7, %v1837
  %v1839 = vrot.slane %v806, %v1838
  %v1840 = vsub.f32 %v1835, %v772
  %v1841 = vsub.f32 %v1839, %v804
  %v1842 = vsub.f32 %v1835, %v773
  %v1843 = vsub.f32 %v1839, %v805
  %v1844 = vsub.f32 %v1835, %v774
  %v1845 = vsub.f32 %v1839, %v806
  %v1846 = vsub.f32 %v1835, %v775
  %v1847 = vsub.f32 %v1839, %v807
  %v1848 = vsub.f32 %v1835, %v776
  %v1849 = vsub.f32 %v1839, %v808
  %v1850 = vsub.f32 %v1835, %v777
  %v1851 = vsub.f32 %v1839, %v809
  %v1852 = vmax.f32 %v1840, 0.0
  %v1853 = vmax.f32 %v1841, 0.0
  %v1854 = vmax.f32 %v1842, 0.0
  %v1855 = vmax.f32 %v1843, 0.0
  %v1856 = vmax.f32 %v1844, 0.0
  %v1857 = vmax.f32 %v1845, 0.0
  %v1858 = vmax.f32 %v1846, 0.0
  %v1859 = vmax.f32 %v1847, 0.0
  %v1860 = vmax.f32 %v1848, 0.0
  %v1861 = vmax.f32 %v1849, 0.0
  %v1862 = vmax.f32 %v1850, 0.0
  %v1863 = vmax.f32 %v1851, 0.0
  %v1864 = vadd.f32 %v1820, %v1852
  %v1865 = vadd.f32 %v1821, %v1853
  %v1866 = vadd.f32 %v1822, %v1854
  %v1867 = vadd.f32 %v1823, %v1855
  %v1868 = vadd.f32 %v1824, %v1856
  %v1869 = vadd.f32 %v1825, %v1857
  %v1870 = vadd.f32 %v1826, %v1858
  %v1871 = vadd.f32 %v1827, %v1859
  %v1872 = vadd.f32 %v1828, %v1860
  %v1873 = vadd.f32 %v1829, %v1861
  %v1874 = vadd.f32 %v1830, %v1862
  %v1875 = vadd.f32 %v1831, %v1863
  %v1876 = vlaneseq
  %v1877 = vshrl.u32 %v1876, 7
  %v1878 = vsub.s32 0, %v1877
  %v1879 = vrot.slane %v775, %v1878
  %v1880 = vlaneseq
  %v1881 = vshrl.u32 %v1880, 7
  %v1882 = vsub.s32 0, %v1881
  %v1883 = vrot.slane %v807, %v1882
  %v1884 = vsub.f32 %v1879, %v772
  %v1885 = vsub.f32 %v1883, %v804
  %v1886 = vsub.f32 %v1879, %v773
  %v1887 = vsub.f32 %v1883, %v805
  %v1888 = vsub.f32 %v1879, %v774
  %v1889 = vsub.f32 %v1883, %v806
  %v1890 = vsub.f32 %v1879, %v775
  %v1891 = vsub.f32 %v1883, %v807
  %v1892 = vsub.f32 %v1879, %v776
  %v1893 = vsub.f32 %v1883, %v808
  %v1894 = vsub.f32 %v1879, %v777
  %v1895 = vsub.f32 %v1883, %v809
  %v1896 = vmax.f32 %v1884, 0.0
  %v1897 = vmax.f32 %v1885, 0.0
  %v1898 = vmax.f32 %v1886, 0.0
  %v1899 = vmax.f32 %v1887, 0.0
  %v1900 = vmax.f32 %v1888, 0.0
  %v1901 = vmax.f32 %v1889, 0.0
  %v1902 = vmax.f32 %v1890, 0.0
  %v1903 = vmax.f32 %v1891, 0.0
  %v1904 = vmax.f32 %v1892, 0.0
  %v1905 = vmax.f32 %v1893, 0.0
  %v1906 = vmax.f32 %v1894, 0.0
  %v1907 = vmax.f32 %v1895, 0.0
  %v1908 = vadd.f32 %v1864, %v1896
  %v1909 = vadd.f32 %v1865, %v1897
  %v1910 = vadd.f32 %v1866, %v1898
  %v1911 = vadd.f32 %v1867, %v1899
  %v1912 = vadd.f32 %v1868, %v1900
  %v1913 = vadd.f32 %v1869, %v1901
  %v1914 = vadd.f32 %v1870, %v1902
  %v1915 = vadd.f32 %v1871, %v1903
  %v1916 = vadd.f32 %v1872, %v1904
  %v1917 = vadd.f32 %v1873, %v1905
  %v1918 = vadd.f32 %v1874, %v1906
  %v1919 = vadd.f32 %v1875, %v1907
  %v1920 = vlaneseq
  %v1921 = vshrl.u32 %v1920, 7
  %v1922 = vsub.s32 1, %v1921
  %v1923 = vrot.slane %v775, %v1922
  %v1924 = vlaneseq
  %v1925 = vshrl.u32 %v1924, 7
  %v1926 = vsub.s32 1, %v1925
  %v1927 = vrot.slane %v807, %v1926
  %v1928 = vsub.f32 %v1923, %v772
  %v1929 = vsub.f32 %v1927, %v804
  %v1930 = vsub.f32 %v1923, %v773
  %v1931 = vsub.f32 %v1927, %v805
  %v1932 = vsub.f32 %v1923, %v774
  %v1933 = vsub.f32 %v1927, %v806
  %v1934 = vsub.f32 %v1923, %v775
  %v1935 = vsub.f32 %v1927, %v807
  %v1936 = vsub.f32 %v1923, %v776
  %v1937 = vsub.f32 %v1927, %v808
  %v1938 = vsub.f32 %v1923, %v777
  %v1939 = vsub.f32 %v1927, %v809
  %v1940 = vmax.f32 %v1928, 0.0
  %v1941 = vmax.f32 %v1929, 0.0
  %v1942 = vmax.f32 %v1930, 0.0
  %v1943 = vmax.f32 %v1931, 0.0
  %v1944 = vmax.f32 %v1932, 0.0
  %v1945 = vmax.f32 %v1933, 0.0
  %v1946 = vmax.f32 %v1934, 0.0
  %v1947 = vmax.f32 %v1935, 0.0
  %v1948 = vmax.f32 %v1936, 0.0
  %v1949 = vmax.f32 %v1937, 0.0
  %v1950 = vmax.f32 %v1938, 0.0
  %v1951 = vmax.f32 %v1939, 0.0
  %v1952 = vadd.f32 %v1908, %v1940
  %v1953 = vadd.f32 %v1909, %v1941
  %v1954 = vadd.f32 %v1910, %v1942
  %v1955 = vadd.f32 %v1911, %v1943
  %v1956 = vadd.f32 %v1912, %v1944
  %v1957 = vadd.f32 %v1913, %v1945
  %v1958 = vadd.f32 %v1914, %v1946
  %v1959 = vadd.f32 %v1915, %v1947
  %v1960 = vadd.f32 %v1916, %v1948
  %v1961 = vadd.f32 %v1917, %v1949
  %v1962 = vadd.f32 %v1918, %v1950
  %v1963 = vadd.f32 %v1919, %v1951
  %v1964 = vlaneseq
  %v1965 = vshrl.u32 %v1964, 7
  %v1966 = vsub.s32 2, %v1965
  %v1967 = vrot.slane %v775, %v1966
  %v1968 = vlaneseq
  %v1969 = vshrl.u32 %v1968, 7
  %v1970 = vsub.s32 2, %v1969
  %v1971 = vrot.slane %v807, %v1970
  %v1972 = vsub.f32 %v1967, %v772
  %v1973 = vsub.f32 %v1971, %v804
  %v1974 = vsub.f32 %v1967, %v773
  %v1975 = vsub.f32 %v1971, %v805
  %v1976 = vsub.f32 %v1967, %v774
  %v1977 = vsub.f32 %v1971, %v806
  %v1978 = vsub.f32 %v1967, %v775
  %v1979 = vsub.f32 %v1971, %v807
  %v1980 = vsub.f32 %v1967, %v776
  %v1981 = vsub.f32 %v1971, %v808
  %v1982 = vsub.f32 %v1967, %v777
  %v1983 = vsub.f32 %v1971, %v809
  %v1984 = vmax.f32 %v1972, 0.0
  %v1985 = vmax.f32 %v1973, 0.0
  %v1986 = vmax.f32 %v1974, 0.0
  %v1987 = vmax.f32 %v1975, 0.0
  %v1988 = vmax.f32 %v1976, 0.0
  %v1989 = vmax.f32 %v1977, 0.0
  %v1990 = vmax.f32 %v1978, 0.0
  %v1991 = vmax.f32 %v1979, 0.0
  %v1992 = vmax.f32 %v1980, 0.0
  %v1993 = vmax.f32 %v1981, 0.0
  %v1994 = vmax.f32 %v1982, 0.0
  %v1995 = vmax.f32 %v1983, 0.0
  %v1996 = vadd.f32 %v1952, %v1984
  %v1997 = vadd.f32 %v1953, %v1985
  %v1998 = vadd.f32 %v1954, %v1986
  %v1999 = vadd.f32 %v1955, %v1987
  %v2000 = vadd.f32 %v1956, %v1988
  %v2001 = vadd.f32 %v1957, %v1989
  %v2002 = vadd.f32 %v1958, %v1990
  %v2003 = vadd.f32 %v1959, %v1991
  %v2004 = vadd.f32 %v1960, %v1992
  %v2005 = vadd.f32 %v1961, %v1993
  %v2006 = vadd.f32 %v1962, %v1994
  %v2007 = vadd.f32 %v1963, %v1995
  %v2008 = vlaneseq
  %v2009 = vshrl.u32 %v2008, 7
  %v2010 = vsub.s32 3, %v2009
  %v2011 = vrot.slane %v775, %v2010
  %v2012 = vlaneseq
  %v2013 = vshrl.u32 %v2012, 7
  %v2014 = vsub.s32 3, %v2013
  %v2015 = vrot.slane %v807, %v2014
  %v2016 = vsub.f32 %v2011, %v772
  %v2017 = vsub.f32 %v2015, %v804
  %v2018 = vsub.f32 %v2011, %v773
  %v2019 = vsub.f32 %v2015, %v805
  %v2020 = vsub.f32 %v2011, %v774
  %v2021 = vsub.f32 %v2015, %v806
  %v2022 = vsub.f32 %v2011, %v775
  %v2023 = vsub.f32 %v2015, %v807
  %v2024 = vsub.f32 %v2011, %v776
  %v2025 = vsub.f32 %v2015, %v808
  %v2026 = vsub.f32 %v2011, %v777
  %v2027 = vsub.f32 %v2015, %v809
  %v2028 = vmax.f32 %v2016, 0.0
  %v2029 = vmax.f32 %v2017, 0.0
  %v2030 = vmax.f32 %v2018, 0.0
  %v2031 = vmax.f32 %v2019, 0.0
  %v2032 = vmax.f32 %v2020, 0.0
  %v2033 = vmax.f32 %v2021, 0.0
  %v2034 = vmax.f32 %v2022, 0.0
  %v2035 = vmax.f32 %v2023, 0.0
  %v2036 = vmax.f32 %v2024, 0.0
  %v2037 = vmax.f32 %v2025, 0.0
  %v2038 = vmax.f32 %v2026, 0.0
  %v2039 = vmax.f32 %v2027, 0.0
  %v2040 = vadd.f32 %v1996, %v2028
  %v2041 = vadd.f32 %v1997, %v2029
  %v2042 = vadd.f32 %v1998, %v2030
  %v2043 = vadd.f32 %v1999, %v2031
  %v2044 = vadd.f32 %v2000, %v2032
  %v2045 = vadd.f32 %v2001, %v2033
  %v2046 = vadd.f32 %v2002, %v2034
  %v2047 = vadd.f32 %v2003, %v2035
  %v2048 = vadd.f32 %v2004, %v2036
  %v2049 = vadd.f32 %v2005, %v2037
  %v2050 = vadd.f32 %v2006, %v2038
  %v2051 = vadd.f32 %v2007, %v2039
  %v2052 = vlaneseq
  %v2053 = vshrl.u32 %v2052, 7
  %v2054 = vsub.s32 4, %v2053
  %v2055 = vrot.slane %v775, %v2054
  %v2056 = vlaneseq
  %v2057 = vshrl.u32 %v2056, 7
  %v2058 = vsub.s32 4, %v2057
  %v2059 = vrot.slane %v807, %v2058
  %v2060 = vsub.f32 %v2055, %v772
  %v2061 = vsub.f32 %v2059, %v804
  %v2062 = vsub.f32 %v2055, %v773
  %v2063 = vsub.f32 %v2059, %v805
  %v2064 = vsub.f32 %v2055, %v774
  %v2065 = vsub.f32 %v2059, %v806
  %v2066 = vsub.f32 %v2055, %v775
  %v2067 = vsub.f32 %v2059, %v807
  %v2068 = vsub.f32 %v2055, %v776
  %v2069 = vsub.f32 %v2059, %v808
  %v2070 = vsub.f32 %v2055, %v777
  %v2071 = vsub.f32 %v2059, %v809
  %v2072 = vmax.f32 %v2060, 0.0
  %v2073 = vmax.f32 %v2061, 0.0
  %v2074 = vmax.f32 %v2062, 0.0
  %v2075 = vmax.f32 %v2063, 0.0
  %v2076 = vmax.f32 %v2064, 0.0
  %v2077 = vmax.f32 %v2065, 0.0
  %v2078 = vmax.f32 %v2066, 0.0
  %v2079 = vmax.f32 %v2067, 0.0
  %v2080 = vmax.f32 %v2068, 0.0
  %v2081 = vmax.f32 %v2069, 0.0
  %v2082 = vmax.f32 %v2070, 0.0
  %v2083 = vmax.f32 %v2071, 0.0
  %v2084 = vadd.f32 %v2040, %v2072
  %v2085 = vadd.f32 %v2041, %v2073
  %v2086 = vadd.f32 %v2042, %v2074
  %v2087 = vadd.f32 %v2043, %v2075
  %v2088 = vadd.f32 %v2044, %v2076
  %v2089 = vadd.f32 %v2045, %v2077
  %v2090 = vadd.f32 %v2046, %v2078
  %v2091 = vadd.f32 %v2047, %v2079
  %v2092 = vadd.f32 %v2048, %v2080
  %v2093 = vadd.f32 %v2049, %v2081
  %v2094 = vadd.f32 %v2050, %v2082
  %v2095 = vadd.f32 %v2051, %v2083
  %v2096 = vlaneseq
  %v2097 = vshrl.u32 %v2096, 7
  %v2098 = vsub.s32 5, %v2097
  %v2099 = vrot.slane %v775, %v2098
  %v2100 = vlaneseq
  %v2101 = vshrl.u32 %v2100, 7
  %v2102 = vsub.s32 5, %v2101
  %v2103 = vrot.slane %v807, %v2102
  %v2104 = vsub.f32 %v2099, %v772
  %v2105 = vsub.f32 %v2103, %v804
  %v2106 = vsub.f32 %v2099, %v773
  %v2107 = vsub.f32 %v2103, %v805
  %v2108 = vsub.f32 %v2099, %v774
  %v2109 = vsub.f32 %v2103, %v806
  %v2110 = vsub.f32 %v2099, %v775
  %v2111 = vsub.f32 %v2103, %v807
  %v2112 = vsub.f32 %v2099, %v776
  %v2113 = vsub.f32 %v2103, %v808
  %v2114 = vsub.f32 %v2099, %v777
  %v2115 = vsub.f32 %v2103, %v809
  %v2116 = vmax.f32 %v2104, 0.0
  %v2117 = vmax.f32 %v2105, 0.0
  %v2118 = vmax.f32 %v2106, 0.0
  %v2119 = vmax.f32 %v2107, 0.0
  %v2120 = vmax.f32 %v2108, 0.0
  %v2121 = vmax.f32 %v2109, 0.0
  %v2122 = vmax.f32 %v2110, 0.0
  %v2123 = vmax.f32 %v2111, 0.0
  %v2124 = vmax.f32 %v2112, 0.0
  %v2125 = vmax.f32 %v2113, 0.0
  %v2126 = vmax.f32 %v2114, 0.0
  %v2127 = vmax.f32 %v2115, 0.0
  %v2128 = vadd.f32 %v2084, %v2116
  %v2129 = vadd.f32 %v2085, %v2117
  %v2130 = vadd.f32 %v2086, %v2118
  %v2131 = vadd.f32 %v2087, %v2119
  %v2132 = vadd.f32 %v2088, %v2120
  %v2133 = vadd.f32 %v2089, %v2121
  %v2134 = vadd.f32 %v2090, %v2122
  %v2135 = vadd.f32 %v2091, %v2123
  %v2136 = vadd.f32 %v2092, %v2124
  %v2137 = vadd.f32 %v2093, %v2125
  %v2138 = vadd.f32 %v2094, %v2126
  %v2139 = vadd.f32 %v2095, %v2127
  %v2140 = vlaneseq
  %v2141 = vshrl.u32 %v2140, 7
  %v2142 = vsub.s32 6, %v2141
  %v2143 = vrot.slane %v775, %v2142
  %v2144 = vlaneseq
  %v2145 = vshrl.u32 %v2144, 7
  %v2146 = vsub.s32 6, %v2145
  %v2147 = vrot.slane %v807, %v2146
  %v2148 = vsub.f32 %v2143, %v772
  %v2149 = vsub.f32 %v2147, %v804
  %v2150 = vsub.f32 %v2143, %v773
  %v2151 = vsub.f32 %v2147, %v805
  %v2152 = vsub.f32 %v2143, %v774
  %v2153 = vsub.f32 %v2147, %v806
  %v2154 = vsub.f32 %v2143, %v775
  %v2155 = vsub.f32 %v2147, %v807
  %v2156 = vsub.f32 %v2143, %v776
  %v2157 = vsub.f32 %v2147, %v808
  %v2158 = vsub.f32 %v2143, %v777
  %v2159 = vsub.f32 %v2147, %v809
  %v2160 = vmax.f32 %v2148, 0.0
  %v2161 = vmax.f32 %v2149, 0.0
  %v2162 = vmax.f32 %v2150, 0.0
  %v2163 = vmax.f32 %v2151, 0.0
  %v2164 = vmax.f32 %v2152, 0.0
  %v2165 = vmax.f32 %v2153, 0.0
  %v2166 = vmax.f32 %v2154, 0.0
  %v2167 = vmax.f32 %v2155, 0.0
  %v2168 = vmax.f32 %v2156, 0.0
  %v2169 = vmax.f32 %v2157, 0.0
  %v2170 = vmax.f32 %v2158, 0.0
  %v2171 = vmax.f32 %v2159, 0.0
  %v2172 = vadd.f32 %v2128, %v2160
  %v2173 = vadd.f32 %v2129, %v2161
  %v2174 = vadd.f32 %v2130, %v2162
  %v2175 = vadd.f32 %v2131, %v2163
  %v2176 = vadd.f32 %v2132, %v2164
  %v2177 = vadd.f32 %v2133, %v2165
  %v2178 = vadd.f32 %v2134, %v2166
  %v2179 = vadd.f32 %v2135, %v2167
  %v2180 = vadd.f32 %v2136, %v2168
  %v2181 = vadd.f32 %v2137, %v2169
  %v2182 = vadd.f32 %v2138, %v2170
  %v2183 = vadd.f32 %v2139, %v2171
  %v2184 = vlaneseq
  %v2185 = vshrl.u32 %v2184, 7
  %v2186 = vsub.s32 7, %v2185
  %v2187 = vrot.slane %v775, %v2186
  %v2188 = vlaneseq
  %v2189 = vshrl.u32 %v2188, 7
  %v2190 = vsub.s32 7, %v2189
  %v2191 = vrot.slane %v807, %v2190
  %v2192 = vsub.f32 %v2187, %v772
  %v2193 = vsub.f32 %v2191, %v804
  %v2194 = vsub.f32 %v2187, %v773
  %v2195 = vsub.f32 %v2191, %v805
  %v2196 = vsub.f32 %v2187, %v774
  %v2197 = vsub.f32 %v2191, %v806
  %v2198 = vsub.f32 %v2187, %v775
  %v2199 = vsub.f32 %v2191, %v807
  %v2200 = vsub.f32 %v2187, %v776
  %v2201 = vsub.f32 %v2191, %v808
  %v2202 = vsub.f32 %v2187, %v777
  %v2203 = vsub.f32 %v2191, %v809
  %v2204 = vmax.f32 %v2192, 0.0
  %v2205 = vmax.f32 %v2193, 0.0
  %v2206 = vmax.f32 %v2194, 0.0
  %v2207 = vmax.f32 %v2195, 0.0
  %v2208 = vmax.f32 %v2196, 0.0
  %v2209 = vmax.f32 %v2197, 0.0
  %v2210 = vmax.f32 %v2198, 0.0
  %v2211 = vmax.f32 %v2199, 0.0
  %v2212 = vmax.f32 %v2200, 0.0
  %v2213 = vmax.f32 %v2201, 0.0
  %v2214 = vmax.f32 %v2202, 0.0
  %v2215 = vmax.f32 %v2203, 0.0
  %v2216 = vadd.f32 %v2172, %v2204
  %v2217 = vadd.f32 %v2173, %v2205
  %v2218 = vadd.f32 %v2174, %v2206
  %v2219 = vadd.f32 %v2175, %v2207
  %v2220 = vadd.f32 %v2176, %v2208
  %v2221 = vadd.f32 %v2177, %v2209
  %v2222 = vadd.f32 %v2178, %v2210
  %v2223 = vadd.f32 %v2179, %v2211
  %v2224 = vadd.f32 %v2180, %v2212
  %v2225 = vadd.f32 %v2181, %v2213
  %v2226 = vadd.f32 %v2182, %v2214
  %v2227 = vadd.f32 %v2183, %v2215
  %v2228 = vlaneseq
  %v2229 = vshrl.u32 %v2228, 7
  %v2230 = vsub.s32 0, %v2229
  %v2231 = vrot.slane %v776, %v2230
  %v2232 = vlaneseq
  %v2233 = vshrl.u32 %v2232, 7
  %v2234 = vsub.s32 0, %v2233
  %v2235 = vrot.slane %v808, %v2234
  %v2236 = vsub.f32 %v2231, %v772
  %v2237 = vsub.f32 %v2235, %v804
  %v2238 = vsub.f32 %v2231, %v773
  %v2239 = vsub.f32 %v2235, %v805
  %v2240 = vsub.f32 %v2231, %v774
  %v2241 = vsub.f32 %v2235, %v806
  %v2242 = vsub.f32 %v2231, %v775
  %v2243 = vsub.f32 %v2235, %v807
  %v2244 = vsub.f32 %v2231, %v776
  %v2245 = vsub.f32 %v2235, %v808
  %v2246 = vsub.f32 %v2231, %v777
  %v2247 = vsub.f32 %v2235, %v809
  %v2248 = vmax.f32 %v2236, 0.0
  %v2249 = vmax.f32 %v2237, 0.0
  %v2250 = vmax.f32 %v2238, 0.0
  %v2251 = vmax.f32 %v2239, 0.0
  %v2252 = vmax.f32 %v2240, 0.0
  %v2253 = vmax.f32 %v2241, 0.0
  %v2254 = vmax.f32 %v2242, 0.0
  %v2255 = vmax.f32 %v2243, 0.0
  %v2256 = vmax.f32 %v2244, 0.0
  %v2257 = vmax.f32 %v2245, 0.0
  %v2258 = vmax.f32 %v2246, 0.0
  %v2259 = vmax.f32 %v2247, 0.0
  %v2260 = vadd.f32 %v2216, %v2248
  %v2261 = vadd.f32 %v2217, %v2249
  %v2262 = vadd.f32 %v2218, %v2250
  %v2263 = vadd.f32 %v2219, %v2251
  %v2264 = vadd.f32 %v2220, %v2252
  %v2265 = vadd.f32 %v2221, %v2253
  %v2266 = vadd.f32 %v2222, %v2254
  %v2267 = vadd.f32 %v2223, %v2255
  %v2268 = vadd.f32 %v2224, %v2256
  %v2269 = vadd.f32 %v2225, %v2257
  %v2270 = vadd.f32 %v2226, %v2258
  %v2271 = vadd.f32 %v2227, %v2259
  %v2272 = vlaneseq
  %v2273 = vshrl.u32 %v2272, 7
  %v2274 = vsub.s32 1, %v2273
  %v2275 = vrot.slane %v776, %v2274
  %v2276 = vlaneseq
  %v2277 = vshrl.u32 %v2276, 7
  %v2278 = vsub.s32 1, %v2277
  %v2279 = vrot.slane %v808, %v2278
  %v2280 = vsub.f32 %v2275, %v772
  %v2281 = vsub.f32 %v2279, %v804
  %v2282 = vsub.f32 %v2275, %v773
  %v2283 = vsub.f32 %v2279, %v805
  %v2284 = vsub.f32 %v2275, %v774
  %v2285 = vsub.f32 %v2279, %v806
  %v2286 = vsub.f32 %v2275, %v775
  %v2287 = vsub.f32 %v2279, %v807
  %v2288 = vsub.f32 %v2275, %v776
  %v2289 = vsub.f32 %v2279, %v808
  %v2290 = vsub.f32 %v2275, %v777
  %v2291 = vsub.f32 %v2279, %v809
  %v2292 = vmax.f32 %v2280, 0.0
  %v2293 = vmax.f32 %v2281, 0.0
  %v2294 = vmax.f32 %v2282, 0.0
  %v2295 = vmax.f32 %v2283, 0.0
  %v2296 = vmax.f32 %v2284, 0.0
  %v2297 = vmax.f32 %v2285, 0.0
  %v2298 = vmax.f32 %v2286, 0.0
  %v2299 = vmax.f32 %v2287, 0.0
  %v2300 = vmax.f32 %v2288, 0.0
  %v2301 = vmax.f32 %v2289, 0.0
  %v2302 = vmax.f32 %v2290, 0.0
  %v2303 = vmax.f32 %v2291, 0.0
  %v2304 = vadd.f32 %v2260, %v2292
  %v2305 = vadd.f32 %v2261, %v2293
  %v2306 = vadd.f32 %v2262, %v2294
  %v2307 = vadd.f32 %v2263, %v2295
  %v2308 = vadd.f32 %v2264, %v2296
  %v2309 = vadd.f32 %v2265, %v2297
  %v2310 = vadd.f32 %v2266, %v2298
  %v2311 = vadd.f32 %v2267, %v2299
  %v2312 = vadd.f32 %v2268, %v2300
  %v2313 = vadd.f32 %v2269, %v2301
  %v2314 = vadd.f32 %v2270, %v2302
  %v2315 = vadd.f32 %v2271, %v2303
  %v2316 = vlaneseq
  %v2317 = vshrl.u32 %v2316, 7
  %v2318 = vsub.s32 2, %v2317
  %v2319 = vrot.slane %v776, %v2318
  %v2320 = vlaneseq
  %v2321 = vshrl.u32 %v2320, 7
  %v2322 = vsub.s32 2, %v2321
  %v2323 = vrot.slane %v808, %v2322
  %v2324 = vsub.f32 %v2319, %v772
  %v2325 = vsub.f32 %v2323, %v804
  %v2326 = vsub.f32 %v2319, %v773
  %v2327 = vsub.f32 %v2323, %v805
  %v2328 = vsub.f32 %v2319, %v774
  %v2329 = vsub.f32 %v2323, %v806
  %v2330 = vsub.f32 %v2319, %v775
  %v2331 = vsub.f32 %v2323, %v807
  %v2332 = vsub.f32 %v2319, %v776
  %v2333 = vsub.f32 %v2323, %v808
  %v2334 = vsub.f32 %v2319, %v777
  %v2335 = vsub.f32 %v2323, %v809
  %v2336 = vmax.f32 %v2324, 0.0
  %v2337 = vmax.f32 %v2325, 0.0
  %v2338 = vmax.f32 %v2326, 0.0
  %v2339 = vmax.f32 %v2327, 0.0
  %v2340 = vmax.f32 %v2328, 0.0
  %v2341 = vmax.f32 %v2329, 0.0
  %v2342 = vmax.f32 %v2330, 0.0
  %v2343 = vmax.f32 %v2331, 0.0
  %v2344 = vmax.f32 %v2332, 0.0
  %v2345 = vmax.f32 %v2333, 0.0
  %v2346 = vmax.f32 %v2334, 0.0
  %v2347 = vmax.f32 %v2335, 0.0
  %v2348 = vadd.f32 %v2304, %v2336
  %v2349 = vadd.f32 %v2305, %v2337
  %v2350 = vadd.f32 %v2306, %v2338
  %v2351 = vadd.f32 %v2307, %v2339
  %v2352 = vadd.f32 %v2308, %v2340
  %v2353 = vadd.f32 %v2309, %v2341
  %v2354 = vadd.f32 %v2310, %v2342
  %v2355 = vadd.f32 %v2311, %v2343
  %v2356 = vadd.f32 %v2312, %v2344
  %v2357 = vadd.f32 %v2313, %v2345
  %v2358 = vadd.f32 %v2314, %v2346
  %v2359 = vadd.f32 %v2315, %v2347
  %v2360 = vlaneseq
  %v2361 = vshrl.u32 %v2360, 7
  %v2362 = vsub.s32 3, %v2361
  %v2363 = vrot.slane %v776, %v2362
  %v2364 = vlaneseq
  %v2365 = vshrl.u32 %v2364, 7
  %v2366 = vsub.s32 3, %v2365
  %v2367 = vrot.slane %v808, %v2366
  %v2368 = vsub.f32 %v2363, %v772
  %v2369 = vsub.f32 %v2367, %v804
  %v2370 = vsub.f32 %v2363, %v773
  %v2371 = vsub.f32 %v2367, %v805
  %v2372 = vsub.f32 %v2363, %v774
  %v2373 = vsub.f32 %v2367, %v806
  %v2374 = vsub.f32 %v2363, %v775
  %v2375 = vsub.f32 %v2367, %v807
  %v2376 = vsub.f32 %v2363, %v776
  %v2377 = vsub.f32 %v2367, %v808
  %v2378 = vsub.f32 %v2363, %v777
  %v2379 = vsub.f32 %v2367, %v809
  %v2380 = vmax.f32 %v2368, 0.0
  %v2381 = vmax.f32 %v2369, 0.0
  %v2382 = vmax.f32 %v2370, 0.0
  %v2383 = vmax.f32 %v2371, 0.0
  %v2384 = vmax.f32 %v2372, 0.0
  %v2385 = vmax.f32 %v2373, 0.0
  %v2386 = vmax.f32 %v2374, 0.0
  %v2387 = vmax.f32 %v2375, 0.0
  %v2388 = vmax.f32 %v2376, 0.0
  %v2389 = vmax.f32 %v2377, 0.0
  %v2390 = vmax.f32 %v2378, 0.0
  %v2391 = vmax.f32 %v2379, 0.0
  %v2392 = vadd.f32 %v2348, %v2380
  %v2393 = vadd.f32 %v2349, %v2381
  %v2394 = vadd.f32 %v2350, %v2382
  %v2395 = vadd.f32 %v2351, %v2383
  %v2396 = vadd.f32 %v2352, %v2384
  %v2397 = vadd.f32 %v2353, %v2385
  %v2398 = vadd.f32 %v2354, %v2386
  %v2399 = vadd.f32 %v2355, %v2387
  %v2400 = vadd.f32 %v2356, %v2388
  %v2401 = vadd.f32 %v2357, %v2389
  %v2402 = vadd.f32 %v2358, %v2390
  %v2403 = vadd.f32 %v2359, %v2391
  %v2404 = vlaneseq
  %v2405 = vshrl.u32 %v2404, 7
  %v2406 = vsub.s32 4, %v2405
  %v2407 = vrot.slane %v776, %v2406
  %v2408 = vlaneseq
  %v2409 = vshrl.u32 %v2408, 7
  %v2410 = vsub.s32 4, %v2409
  %v2411 = vrot.slane %v808, %v2410
  %v2412 = vsub.f32 %v2407, %v772
  %v2413 = vsub.f32 %v2411, %v804
  %v2414 = vsub.f32 %v2407, %v773
  %v2415 = vsub.f32 %v2411, %v805
  %v2416 = vsub.f32 %v2407, %v774
  %v2417 = vsub.f32 %v2411, %v806
  %v2418 = vsub.f32 %v2407, %v775
  %v2419 = vsub.f32 %v2411, %v807
  %v2420 = vsub.f32 %v2407, %v776
  %v2421 = vsub.f32 %v2411, %v808
  %v2422 = vsub.f32 %v2407, %v777
  %v2423 = vsub.f32 %v2411, %v809
  %v2424 = vmax.f32 %v2412, 0.0
  %v2425 = vmax.f32 %v2413, 0.0
  %v2426 = vmax.f32 %v2414, 0.0
  %v2427 = vmax.f32 %v2415, 0.0
  %v2428 = vmax.f32 %v2416, 0.0
  %v2429 = vmax.f32 %v2417, 0.0
  %v2430 = vmax.f32 %v2418, 0.0
  %v2431 = vmax.f32 %v2419, 0.0
  %v2432 = vmax.f32 %v2420, 0.0
  %v2433 = vmax.f32 %v2421, 0.0
  %v2434 = vmax.f32 %v2422, 0.0
  %v2435 = vmax.f32 %v2423, 0.0
  %v2436 = vadd.f32 %v2392, %v2424
  %v2437 = vadd.f32 %v2393, %v2425
  %v2438 = vadd.f32 %v2394, %v2426
  %v2439 = vadd.f32 %v2395, %v2427
  %v2440 = vadd.f32 %v2396, %v2428
  %v2441 = vadd.f32 %v2397, %v2429
  %v2442 = vadd.f32 %v2398, %v2430
  %v2443 = vadd.f32 %v2399, %v2431
  %v2444 = vadd.f32 %v2400, %v2432
  %v2445 = vadd.f32 %v2401, %v2433
  %v2446 = vadd.f32 %v2402, %v2434
  %v2447 = vadd.f32 %v2403, %v2435
  %v2448 = vlaneseq
  %v2449 = vshrl.u32 %v2448, 7
  %v2450 = vsub.s32 5, %v2449
  %v2451 = vrot.slane %v776, %v2450
  %v2452 = vlaneseq
  %v2453 = vshrl.u32 %v2452, 7
  %v2454 = vsub.s32 5, %v2453
  %v2455 = vrot.slane %v808, %v2454
  %v2456 = vsub.f32 %v2451, %v772
  %v2457 = vsub.f32 %v2455, %v804
  %v2458 = vsub.f32 %v2451, %v773
  %v2459 = vsub.f32 %v2455, %v805
  %v2460 = vsub.f32 %v2451, %v774
  %v2461 = vsub.f32 %v2455, %v806
  %v2462 = vsub.f32 %v2451, %v775
  %v2463 = vsub.f32 %v2455, %v807
  %v2464 = vsub.f32 %v2451, %v776
  %v2465 = vsub.f32 %v2455, %v808
  %v2466 = vsub.f32 %v2451, %v777
  %v2467 = vsub.f32 %v2455, %v809
  %v2468 = vmax.f32 %v2456, 0.0
  %v2469 = vmax.f32 %v2457, 0.0
  %v2470 = vmax.f32 %v2458, 0.0
  %v2471 = vmax.f32 %v2459, 0.0
  %v2472 = vmax.f32 %v2460, 0.0
  %v2473 = vmax.f32 %v2461, 0.0
  %v2474 = vmax.f32 %v2462, 0.0
  %v2475 = vmax.f32 %v2463, 0.0
  %v2476 = vmax.f32 %v2464, 0.0
  %v2477 = vmax.f32 %v2465, 0.0
  %v2478 = vmax.f32 %v2466, 0.0
  %v2479 = vmax.f32 %v2467, 0.0
  %v2480 = vadd.f32 %v2436, %v2468
  %v2481 = vadd.f32 %v2437, %v2469
  %v2482 = vadd.f32 %v2438, %v2470
  %v2483 = vadd.f32 %v2439, %v2471
  %v2484 = vadd.f32 %v2440, %v2472
  %v2485 = vadd.f32 %v2441, %v2473
  %v2486 = vadd.f32 %v2442, %v2474
  %v2487 = vadd.f32 %v2443, %v2475
  %v2488 = vadd.f32 %v2444, %v2476
  %v2489 = vadd.f32 %v2445, %v2477
  %v2490 = vadd.f32 %v2446, %v2478
  %v2491 = vadd.f32 %v2447, %v2479
  %v2492 = vlaneseq
  %v2493 = vshrl.u32 %v2492, 7
  %v2494 = vsub.s32 6, %v2493
  %v2495 = vrot.slane %v776, %v2494
  %v2496 = vlaneseq
  %v2497 = vshrl.u32 %v2496, 7
  %v2498 = vsub.s32 6, %v2497
  %v2499 = vrot.slane %v808, %v2498
  %v2500 = vsub.f32 %v2495, %v772
  %v2501 = vsub.f32 %v2499, %v804
  %v2502 = vsub.f32 %v2495, %v773
  %v2503 = vsub.f32 %v2499, %v805
  %v2504 = vsub.f32 %v2495, %v774
  %v2505 = vsub.f32 %v2499, %v806
  %v2506 = vsub.f32 %v2495, %v775
  %v2507 = vsub.f32 %v2499, %v807
  %v2508 = vsub.f32 %v2495, %v776
  %v2509 = vsub.f32 %v2499, %v808
  %v2510 = vsub.f32 %v2495, %v777
  %v2511 = vsub.f32 %v2499, %v809
  %v2512 = vmax.f32 %v2500, 0.0
  %v2513 = vmax.f32 %v2501, 0.0
  %v2514 = vmax.f32 %v2502, 0.0
  %v2515 = vmax.f32 %v2503, 0.0
  %v2516 = vmax.f32 %v2504, 0.0
  %v2517 = vmax.f32 %v2505, 0.0
  %v2518 = vmax.f32 %v2506, 0.0
  %v2519 = vmax.f32 %v2507, 0.0
  %v2520 = vmax.f32 %v2508, 0.0
  %v2521 = vmax.f32 %v2509, 0.0
  %v2522 = vmax.f32 %v2510, 0.0
  %v2523 = vmax.f32 %v2511, 0.0
  %v2524 = vadd.f32 %v2480, %v2512
  %v2525 = vadd.f32 %v2481, %v2513
  %v2526 = vadd.f32 %v2482, %v2514
  %v2527 = vadd.f32 %v2483, %v2515
  %v2528 = vadd.f32 %v2484, %v2516
  %v2529 = vadd.f32 %v2485, %v2517
  %v2530 = vadd.f32 %v2486, %v2518
  %v2531 = vadd.f32 %v2487, %v2519
  %v2532 = vadd.f32 %v2488, %v2520
  %v2533 = vadd.f32 %v2489, %v2521
  %v2534 = vadd.f32 %v2490, %v2522
  %v2535 = vadd.f32 %v2491, %v2523
  %v2536 = vlaneseq
  %v2537 = vshrl.u32 %v2536, 7
  %v2538 = vsub.s32 7, %v2537
  %v2539 = vrot.slane %v776, %v2538
  %v2540 = vlaneseq
  %v2541 = vshrl.u32 %v2540, 7
  %v2542 = vsub.s32 7, %v2541
  %v2543 = vrot.slane %v808, %v2542
  %v2544 = vsub.f32 %v2539, %v772
  %v2545 = vsub.f32 %v2543, %v804
  %v2546 = vsub.f32 %v2539, %v773
  %v2547 = vsub.f32 %v2543, %v805
  %v2548 = vsub.f32 %v2539, %v774
  %v2549 = vsub.f32 %v2543, %v806
  %v2550 = vsub.f32 %v2539, %v775
  %v2551 = vsub.f32 %v2543, %v807
  %v2552 = vsub.f32 %v2539, %v776
  %v2553 = vsub.f32 %v2543, %v808
  %v2554 = vsub.f32 %v2539, %v777
  %v2555 = vsub.f32 %v2543, %v809
  %v2556 = vmax.f32 %v2544, 0.0
  %v2557 = vmax.f32 %v2545, 0.0
  %v2558 = vmax.f32 %v2546, 0.0
  %v2559 = vmax.f32 %v2547, 0.0
  %v2560 = vmax.f32 %v2548, 0.0
  %v2561 = vmax.f32 %v2549, 0.0
  %v2562 = vmax.f32 %v2550, 0.0
  %v2563 = vmax.f32 %v2551, 0.0
  %v2564 = vmax.f32 %v2552, 0.0
  %v2565 = vmax.f32 %v2553, 0.0
  %v2566 = vmax.f32 %v2554, 0.0
  %v2567 = vmax.f32 %v2555, 0.0
  %v2568 = vadd.f32 %v2524, %v2556
  %v2569 = vadd.f32 %v2525, %v2557
  %v2570 = vadd.f32 %v2526, %v2558
  %v2571 = vadd.f32 %v2527, %v2559
  %v2572 = vadd.f32 %v2528, %v2560
  %v2573 = vadd.f32 %v2529, %v2561
  %v2574 = vadd.f32 %v2530, %v2562
  %v2575 = vadd.f32 %v2531, %v2563
  %v2576 = vadd.f32 %v2532, %v2564
  %v2577 = vadd.f32 %v2533, %v2565
  %v2578 = vadd.f32 %v2534, %v2566
  %v2579 = vadd.f32 %v2535, %v2567
  %v2580 = vlaneseq
  %v2581 = vshrl.u32 %v2580, 7
  %v2582 = vsub.s32 0, %v2581
  %v2583 = vrot.slane %v777, %v2582
  %v2584 = vlaneseq
  %v2585 = vshrl.u32 %v2584, 7
  %v2586 = vsub.s32 0, %v2585
  %v2587 = vrot.slane %v809, %v2586
  %v2588 = vsub.f32 %v2583, %v772
  %v2589 = vsub.f32 %v2587, %v804
  %v2590 = vsub.f32 %v2583, %v773
  %v2591 = vsub.f32 %v2587, %v805
  %v2592 = vsub.f32 %v2583, %v774
  %v2593 = vsub.f32 %v2587, %v806
  %v2594 = vsub.f32 %v2583, %v775
  %v2595 = vsub.f32 %v2587, %v807
  %v2596 = vsub.f32 %v2583, %v776
  %v2597 = vsub.f32 %v2587, %v808
  %v2598 = vsub.f32 %v2583, %v777
  %v2599 = vsub.f32 %v2587, %v809
  %v2600 = vmax.f32 %v2588, 0.0
  %v2601 = vmax.f32 %v2589, 0.0
  %v2602 = vmax.f32 %v2590, 0.0
  %v2603 = vmax.f32 %v2591, 0.0
  %v2604 = vmax.f32 %v2592, 0.0
  %v2605 = vmax.f32 %v2593, 0.0
  %v2606 = vmax.f32 %v2594, 0.0
  %v2607 = vmax.f32 %v2595, 0.0
  %v2608 = vmax.f32 %v2596, 0.0
  %v2609 = vmax.f32 %v2597, 0.0
  %v2610 = vmax.f32 %v2598, 0.0
  %v2611 = vmax.f32 %v2599, 0.0
  %v2612 = vadd.f32 %v2568, %v2600
  %v2613 = vadd.f32 %v2569, %v2601
  %v2614 = vadd.f32 %v2570, %v2602
  %v2615 = vadd.f32 %v2571, %v2603
  %v2616 = vadd.f32 %v2572, %v2604
  %v2617 = vadd.f32 %v2573, %v2605
  %v2618 = vadd.f32 %v2574, %v2606
  %v2619 = vadd.f32 %v2575, %v2607
  %v2620 = vadd.f32 %v2576, %v2608
  %v2621 = vadd.f32 %v2577, %v2609
  %v2622 = vadd.f32 %v2578, %v2610
  %v2623 = vadd.f32 %v2579, %v2611
  %v2624 = vlaneseq
  %v2625 = vshrl.u32 %v2624, 7
  %v2626 = vsub.s32 1, %v2625
  %v2627 = vrot.slane %v777, %v2626
  %v2628 = vlaneseq
  %v2629 = vshrl.u32 %v2628, 7
  %v2630 = vsub.s32 1, %v2629
  %v2631 = vrot.slane %v809, %v2630
  %v2632 = vsub.f32 %v2627, %v772
  %v2633 = vsub.f32 %v2631, %v804
  %v2634 = vsub.f32 %v2627, %v773
  %v2635 = vsub.f32 %v2631, %v805
  %v2636 = vsub.f32 %v2627, %v774
  %v2637 = vsub.f32 %v2631, %v806
  %v2638 = vsub.f32 %v2627, %v775
  %v2639 = vsub.f32 %v2631, %v807
  %v2640 = vsub.f32 %v2627, %v776
  %v2641 = vsub.f32 %v2631, %v808
  %v2642 = vsub.f32 %v2627, %v777
  %v2643 = vsub.f32 %v2631, %v809
  %v2644 = vmax.f32 %v2632, 0.0
  %v2645 = vmax.f32 %v2633, 0.0
  %v2646 = vmax.f32 %v2634, 0.0
  %v2647 = vmax.f32 %v2635, 0.0
  %v2648 = vmax.f32 %v2636, 0.0
  %v2649 = vmax.f32 %v2637, 0.0
  %v2650 = vmax.f32 %v2638, 0.0
  %v2651 = vmax.f32 %v2639, 0.0
  %v2652 = vmax.f32 %v2640, 0.0
  %v2653 = vmax.f32 %v2641, 0.0
  %v2654 = vmax.f32 %v2642, 0.0
  %v2655 = vmax.f32 %v2643, 0.0
  %v2656 = vadd.f32 %v2612, %v2644
  %v2657 = vadd.f32 %v2613, %v2645
  %v2658 = vadd.f32 %v2614, %v2646
  %v2659 = vadd.f32 %v2615, %v2647
  %v2660 = vadd.f32 %v2616, %v2648
  %v2661 = vadd.f32 %v2617, %v2649
  %v2662 = vadd.f32 %v2618, %v2650
  %v2663 = vadd.f32 %v2619, %v2651
  %v2664 = vadd.f32 %v2620, %v2652
  %v2665 = vadd.f32 %v2621, %v2653
  %v2666 = vadd.f32 %v2622, %v2654
  %v2667 = vadd.f32 %v2623, %v2655
  %v2668 = vlaneseq
  %v2669 = vshrl.u32 %v2668, 7
  %v2670 = vsub.s32 2, %v2669
  %v2671 = vrot.slane %v777, %v2670
  %v2672 = vlaneseq
  %v2673 = vshrl.u32 %v2672, 7
  %v2674 = vsub.s32 2, %v2673
  %v2675 = vrot.slane %v809, %v2674
  %v2676 = vsub.f32 %v2671, %v772
  %v2677 = vsub.f32 %v2675, %v804
  %v2678 = vsub.f32 %v2671, %v773
  %v2679 = vsub.f32 %v2675, %v805
  %v2680 = vsub.f32 %v2671, %v774
  %v2681 = vsub.f32 %v2675, %v806
  %v2682 = vsub.f32 %v2671, %v775
  %v2683 = vsub.f32 %v2675, %v807
  %v2684 = vsub.f32 %v2671, %v776
  %v2685 = vsub.f32 %v2675, %v808
  %v2686 = vsub.f32 %v2671, %v777
  %v2687 = vsub.f32 %v2675, %v809
  %v2688 = vmax.f32 %v2676, 0.0
  %v2689 = vmax.f32 %v2677, 0.0
  %v2690 = vmax.f32 %v2678, 0.0
  %v2691 = vmax.f32 %v2679, 0.0
  %v2692 = vmax.f32 %v2680, 0.0
  %v2693 = vmax.f32 %v2681, 0.0
  %v2694 = vmax.f32 %v2682, 0.0
  %v2695 = vmax.f32 %v2683, 0.0
  %v2696 = vmax.f32 %v2684, 0.0
  %v2697 = vmax.f32 %v2685, 0.0
  %v2698 = vmax.f32 %v2686, 0.0
  %v2699 = vmax.f32 %v2687, 0.0
  %v2700 = vadd.f32 %v2656, %v2688
  %v2701 = vadd.f32 %v2657, %v2689
  %v2702 = vadd.f32 %v2658, %v2690
  %v2703 = vadd.f32 %v2659, %v2691
  %v2704 = vadd.f32 %v2660, %v2692
  %v2705 = vadd.f32 %v2661, %v2693
  %v2706 = vadd.f32 %v2662, %v2694
  %v2707 = vadd.f32 %v2663, %v2695
  %v2708 = vadd.f32 %v2664, %v2696
  %v2709 = vadd.f32 %v2665, %v2697
  %v2710 = vadd.f32 %v2666, %v2698
  %v2711 = vadd.f32 %v2667, %v2699
  %v2712 = vlaneseq
  %v2713 = vshrl.u32 %v2712, 7
  %v2714 = vsub.s32 3, %v2713
  %v2715 = vrot.slane %v777, %v2714
  %v2716 = vlaneseq
  %v2717 = vshrl.u32 %v2716, 7
  %v2718 = vsub.s32 3, %v2717
  %v2719 = vrot.slane %v809, %v2718
  %v2720 = vsub.f32 %v2715, %v772
  %v2721 = vsub.f32 %v2719, %v804
  %v2722 = vsub.f32 %v2715, %v773
  %v2723 = vsub.f32 %v2719, %v805
  %v2724 = vsub.f32 %v2715, %v774
  %v2725 = vsub.f32 %v2719, %v806
  %v2726 = vsub.f32 %v2715, %v775
  %v2727 = vsub.f32 %v2719, %v807
  %v2728 = vsub.f32 %v2715, %v776
  %v2729 = vsub.f32 %v2719, %v808
  %v2730 = vsub.f32 %v2715, %v777
  %v2731 = vsub.f32 %v2719, %v809
  %v2732 = vmax.f32 %v2720, 0.0
  %v2733 = vmax.f32 %v2721, 0.0
  %v2734 = vmax.f32 %v2722, 0.0
  %v2735 = vmax.f32 %v2723, 0.0
  %v2736 = vmax.f32 %v2724, 0.0
  %v2737 = vmax.f32 %v2725, 0.0
  %v2738 = vmax.f32 %v2726, 0.0
  %v2739 = vmax.f32 %v2727, 0.0
  %v2740 = vmax.f32 %v2728, 0.0
  %v2741 = vmax.f32 %v2729, 0.0
  %v2742 = vmax.f32 %v2730, 0.0
  %v2743 = vmax.f32 %v2731, 0.0
  %v2744 = vadd.f32 %v2700, %v2732
  %v2745 = vadd.f32 %v2701, %v2733
  %v2746 = vadd.f32 %v2702, %v2734
  %v2747 = vadd.f32 %v2703, %v2735
  %v2748 = vadd.f32 %v2704, %v2736
  %v2749 = vadd.f32 %v2705, %v2737
  %v2750 = vadd.f32 %v2706, %v2738
  %v2751 = vadd.f32 %v2707, %v2739
  %v2752 = vadd.f32 %v2708, %v2740
  %v2753 = vadd.f32 %v2709, %v2741
  %v2754 = vadd.f32 %v2710, %v2742
  %v2755 = vadd.f32 %v2711, %v2743
  %v2756 = vlaneseq
  %v2757 = vshrl.u32 %v2756, 7
  %v2758 = vsub.s32 4, %v2757
  %v2759 = vrot.slane %v777, %v2758
  %v2760 = vlaneseq
  %v2761 = vshrl.u32 %v2760, 7
  %v2762 = vsub.s32 4, %v2761
  %v2763 = vrot.slane %v809, %v2762
  %v2764 = vsub.f32 %v2759, %v772
  %v2765 = vsub.f32 %v2763, %v804
  %v2766 = vsub.f32 %v2759, %v773
  %v2767 = vsub.f32 %v2763, %v805
  %v2768 = vsub.f32 %v2759, %v774
  %v2769 = vsub.f32 %v2763, %v806
  %v2770 = vsub.f32 %v2759, %v775
  %v2771 = vsub.f32 %v2763, %v807
  %v2772 = vsub.f32 %v2759, %v776
  %v2773 = vsub.f32 %v2763, %v808
  %v2774 = vsub.f32 %v2759, %v777
  %v2775 = vsub.f32 %v2763, %v809
  %v2776 = vmax.f32 %v2764, 0.0
  %v2777 = vmax.f32 %v2765, 0.0
  %v2778 = vmax.f32 %v2766, 0.0
  %v2779 = vmax.f32 %v2767, 0.0
  %v2780 = vmax.f32 %v2768, 0.0
  %v2781 = vmax.f32 %v2769, 0.0
  %v2782 = vmax.f32 %v2770, 0.0
  %v2783 = vmax.f32 %v2771, 0.0
  %v2784 = vmax.f32 %v2772, 0.0
  %v2785 = vmax.f32 %v2773, 0.0
  %v2786 = vmax.f32 %v2774, 0.0
  %v2787 = vmax.f32 %v2775, 0.0
  %v2788 = vadd.f32 %v2744, %v2776
  %v2789 = vadd.f32 %v2745, %v2777
  %v2790 = vadd.f32 %v2746, %v2778
  %v2791 = vadd.f32 %v2747, %v2779
  %v2792 = vadd.f32 %v2748, %v2780
  %v2793 = vadd.f32 %v2749, %v2781
  %v2794 = vadd.f32 %v2750, %v2782
  %v2795 = vadd.f32 %v2751, %v2783
  %v2796 = vadd.f32 %v2752, %v2784
  %v2797 = vadd.f32 %v2753, %v2785
  %v2798 = vadd.f32 %v2754, %v2786
  %v2799 = vadd.f32 %v2755, %v2787
  %v2800 = vlaneseq
  %v2801 = vshrl.u32 %v2800, 7
  %v2802 = vsub.s32 5, %v2801
  %v2803 = vrot.slane %v777, %v2802
  %v2804 = vlaneseq
  %v2805 = vshrl.u32 %v2804, 7
  %v2806 = vsub.s32 5, %v2805
  %v2807 = vrot.slane %v809, %v2806
  %v2808 = vsub.f32 %v2803, %v772
  %v2809 = vsub.f32 %v2807, %v804
  %v2810 = vsub.f32 %v2803, %v773
  %v2811 = vsub.f32 %v2807, %v805
  %v2812 = vsub.f32 %v2803, %v774
  %v2813 = vsub.f32 %v2807, %v806
  %v2814 = vsub.f32 %v2803, %v775
  %v2815 = vsub.f32 %v2807, %v807
  %v2816 = vsub.f32 %v2803, %v776
  %v2817 = vsub.f32 %v2807, %v808
  %v2818 = vsub.f32 %v2803, %v777
  %v2819 = vsub.f32 %v2807, %v809
  %v2820 = vmax.f32 %v2808, 0.0
  %v2821 = vmax.f32 %v2809, 0.0
  %v2822 = vmax.f32 %v2810, 0.0
  %v2823 = vmax.f32 %v2811, 0.0
  %v2824 = vmax.f32 %v2812, 0.0
  %v2825 = vmax.f32 %v2813, 0.0
  %v2826 = vmax.f32 %v2814, 0.0
  %v2827 = vmax.f32 %v2815, 0.0
  %v2828 = vmax.f32 %v2816, 0.0
  %v2829 = vmax.f32 %v2817, 0.0
  %v2830 = vmax.f32 %v2818, 0.0
  %v2831 = vmax.f32 %v2819, 0.0
  %v2832 = vadd.f32 %v2788, %v2820
  %v2833 = vadd.f32 %v2789, %v2821
  %v2834 = vadd.f32 %v2790, %v2822
  %v2835 = vadd.f32 %v2791, %v2823
  %v2836 = vadd.f32 %v2792, %v2824
  %v2837 = vadd.f32 %v2793, %v2825
  %v2838 = vadd.f32 %v2794, %v2826
  %v2839 = vadd.f32 %v2795, %v2827
  %v2840 = vadd.f32 %v2796, %v2828
  %v2841 = vadd.f32 %v2797, %v2829
  %v2842 = vadd.f32 %v2798, %v2830
  %v2843 = vadd.f32 %v2799, %v2831
  %v2844 = vlaneseq
  %v2845 = vshrl.u32 %v2844, 7
  %v2846 = vsub.s32 6, %v2845
  %v2847 = vrot.slane %v777, %v2846
  %v2848 = vlaneseq
  %v2849 = vshrl.u32 %v2848, 7
  %v2850 = vsub.s32 6, %v2849
  %v2851 = vrot.slane %v809, %v2850
  %v2852 = vsub.f32 %v2847, %v772
  %v2853 = vsub.f32 %v2851, %v804
  %v2854 = vsub.f32 %v2847, %v773
  %v2855 = vsub.f32 %v2851, %v805
  %v2856 = vsub.f32 %v2847, %v774
  %v2857 = vsub.f32 %v2851, %v806
  %v2858 = vsub.f32 %v2847, %v775
  %v2859 = vsub.f32 %v2851, %v807
  %v2860 = vsub.f32 %v2847, %v776
  %v2861 = vsub.f32 %v2851, %v808
  %v2862 = vsub.f32 %v2847, %v777
  %v2863 = vsub.f32 %v2851, %v809
  %v2864 = vmax.f32 %v2852, 0.0
  %v2865 = vmax.f32 %v2853, 0.0
  %v2866 = vmax.f32 %v2854, 0.0
  %v2867 = vmax.f32 %v2855, 0.0
  %v2868 = vmax.f32 %v2856, 0.0
  %v2869 = vmax.f32 %v2857, 0.0
  %v2870 = vmax.f32 %v2858, 0.0
  %v2871 = vmax.f32 %v2859, 0.0
  %v2872 = vmax.f32 %v2860, 0.0
  %v2873 = vmax.f32 %v2861, 0.0
  %v2874 = vmax.f32 %v2862, 0.0
  %v2875 = vmax.f32 %v2863, 0.0
  %v2876 = vadd.f32 %v2832, %v2864
  %v2877 = vadd.f32 %v2833, %v2865
  %v2878 = vadd.f32 %v2834, %v2866
  %v2879 = vadd.f32 %v2835, %v2867
  %v2880 = vadd.f32 %v2836, %v2868
  %v2881 = vadd.f32 %v2837, %v2869
  %v2882 = vadd.f32 %v2838, %v2870
  %v2883 = vadd.f32 %v2839, %v2871
  %v2884 = vadd.f32 %v2840, %v2872
  %v2885 = vadd.f32 %v2841, %v2873
  %v2886 = vadd.f32 %v2842, %v2874
  %v2887 = vadd.f32 %v2843, %v2875
  %v2888 = vlaneseq
  %v2889 = vshrl.u32 %v2888, 7
  %v2890 = vsub.s32 7, %v2889
  %v2891 = vrot.slane %v777, %v2890
  %v2892 = vlaneseq
  %v2893 = vshrl.u32 %v2892, 7
  %v2894 = vsub.s32 7, %v2893
  %v2895 = vrot.slane %v809, %v2894
  %v2896 = vsub.f32 %v2891, %v772
  %v2897 = vsub.f32 %v2895, %v804
  %v2898 = vsub.f32 %v2891, %v773
  %v2899 = vsub.f32 %v2895, %v805
  %v2900 = vsub.f32 %v2891, %v774
  %v2901 = vsub.f32 %v2895, %v806
  %v2902 = vsub.f32 %v2891, %v775
  %v2903 = vsub.f32 %v2895, %v807
  %v2904 = vsub.f32 %v2891, %v776
  %v2905 = vsub.f32 %v2895, %v808
  %v2906 = vsub.f32 %v2891, %v777
  %v2907 = vsub.f32 %v2895, %v809
  %v2908 = vmax.f32 %v2896, 0.0
  %v2909 = vmax.f32 %v2897, 0.0
  %v2910 = vmax.f32 %v2898, 0.0
  %v2911 = vmax.f32 %v2899, 0.0
  %v2912 = vmax.f32 %v2900, 0.0
  %v2913 = vmax.f32 %v2901, 0.0
  %v2914 = vmax.f32 %v2902, 0.0
  %v2915 = vmax.f32 %v2903, 0.0
  %v2916 = vmax.f32 %v2904, 0.0
  %v2917 = vmax.f32 %v2905, 0.0
  %v2918 = vmax.f32 %v2906, 0.0
  %v2919 = vmax.f32 %v2907, 0.0
  %v2920 = vadd.f32 %v2876, %v2908
  %v2921 = vadd.f32 %v2877, %v2909
  %v2922 = vadd.f32 %v2878, %v2910
  %v2923 = vadd.f32 %v2879, %v2911
  %v2924 = vadd.f32 %v2880, %v2912
  %v2925 = vadd.f32 %v2881, %v2913
  %v2926 = vadd.f32 %v2882, %v2914
  %v2927 = vadd.f32 %v2883, %v2915
  %v2928 = vadd.f32 %v2884, %v2916
  %v2929 = vadd.f32 %v2885, %v2917
  %v2930 = vadd.f32 %v2886, %v2918
  %v2931 = vadd.f32 %v2887, %v2919
  %vm2932 = vcmp.lt.f32.partialorder %v2920, 1.0
  %vm2933 = vcmp.lt.f32.partialorder %v2921, 1.0
  %vm2934 = vcmp.lt.f32.partialorder %v2922, 1.0
  %vm2935 = vcmp.lt.f32.partialorder %v2923, 1.0
  %vm2936 = vcmp.lt.f32.partialorder %v2924, 1.0
  %vm2937 = vcmp.lt.f32.partialorder %v2925, 1.0
  %vm2938 = vcmp.lt.f32.partialorder %v2926, 1.0
  %vm2939 = vcmp.lt.f32.partialorder %v2927, 1.0
  %vm2940 = vcmp.lt.f32.partialorder %v2928, 1.0
  %vm2941 = vcmp.lt.f32.partialorder %v2929, 1.0
  %vm2942 = vcmp.lt.f32.partialorder %v2930, 1.0
  %vm2943 = vcmp.lt.f32.partialorder %v2931, 1.0
  %v2944 = vsel %vm2932, 1.0, 0.0
  %v2945 = vsel %vm2933, 1.0, 0.0
  %v2946 = vsel %vm2934, 1.0, 0.0
  %v2947 = vsel %vm2935, 1.0, 0.0
  %v2948 = vsel %vm2936, 1.0, 0.0
  %v2949 = vsel %vm2937, 1.0, 0.0
  %v2950 = vsel %vm2938, 1.0, 0.0
  %v2951 = vsel %vm2939, 1.0, 0.0
  %v2952 = vsel %vm2940, 1.0, 0.0
  %v2953 = vsel %vm2941, 1.0, 0.0
  %v2954 = vsel %vm2942, 1.0, 0.0
  %v2955 = vsel %vm2943, 1.0, 0.0
  %v2956 = vadd.f32 %v2944, %v2946
  %v2957 = vadd.f32 %v2956, %v2948
  %v2958 = vadd.f32 %v2957, %v2950
  %v2959 = vadd.f32 %v2958, %v2952
  %v2960 = vadd.f32 %v2959, %v2954
  %v2961 = vrot.slane %v2960, 4
  %v2962 = vadd.f32 %v2960, %v2961
  %v2963 = vrot.slane %v2962, 2
  %v2964 = vadd.f32 %v2962, %v2963
  %v2965 = vrot.slane %v2964, 1
  %v2966 = vadd.f32 %v2964, %v2965
  %vm2967 = vcmask 523264
  %v2968 = vsel %vm2967, %v2945, 0.0
  %v2969 = vsel %vm2967, %v2947, 0.0
  %v2970 = vadd.f32 %v2968, %v2969
  %v2971 = vsel %vm2967, %v2949, 0.0
  %v2972 = vadd.f32 %v2970, %v2971
  %v2973 = vsel %vm2967, %v2951, 0.0
  %v2974 = vadd.f32 %v2972, %v2973
  %v2975 = vsel %vm2967, %v2953, 0.0
  %v2976 = vadd.f32 %v2974, %v2975
  %v2977 = vsel %vm2967, %v2955, 0.0
  %v2978 = vadd.f32 %v2976, %v2977
  %v2979 = vrot.slane %v2978, 4
  %v2980 = vadd.f32 %v2978, %v2979
  %v2981 = vrot.slane %v2980, 2
  %v2982 = vadd.f32 %v2980, %v2981
  %v2983 = vrot.slane %v2982, 1
  %v2984 = vadd.f32 %v2982, %v2983
  %v2985 = vmul.f32 %v772, %v2944
  %v2986 = vmul.f32 %v804, %v2945
  %v2987 = vmul.f32 %v773, %v2946
  %v2988 = vmul.f32 %v805, %v2947
  %v2989 = vmul.f32 %v774, %v2948
  %v2990 = vmul.f32 %v806, %v2949
  %v2991 = vmul.f32 %v775, %v2950
  %v2992 = vmul.f32 %v807, %v2951
  %v2993 = vmul.f32 %v776, %v2952
  %v2994 = vmul.f32 %v808, %v2953
  %v2995 = vmul.f32 %v777, %v2954
  %v2996 = vmul.f32 %v809, %v2955
  %v2997 = vadd.f32 %v2985, %v2987
  %v2998 = vadd.f32 %v2997, %v2989
  %v2999 = vadd.f32 %v2998, %v2991
  %v3000 = vadd.f32 %v2999, %v2993
  %v3001 = vadd.f32 %v3000, %v2995
  %v3002 = vrot.slane %v3001, 4
  %v3003 = vadd.f32 %v3001, %v3002
  %v3004 = vrot.slane %v3003, 2
  %v3005 = vadd.f32 %v3003, %v3004
  %v3006 = vrot.slane %v3005, 1
  %v3007 = vadd.f32 %v3005, %v3006
  %v3008 = vsel %vm2967, %v2986, 0.0
  %v3009 = vsel %vm2967, %v2988, 0.0
  %v3010 = vadd.f32 %v3008, %v3009
  %v3011 = vsel %vm2967, %v2990, 0.0
  %v3012 = vadd.f32 %v3010, %v3011
  %v3013 = vsel %vm2967, %v2992, 0.0
  %v3014 = vadd.f32 %v3012, %v3013
  %v3015 = vsel %vm2967, %v2994, 0.0
  %v3016 = vadd.f32 %v3014, %v3015
  %v3017 = vsel %vm2967, %v2996, 0.0
  %v3018 = vadd.f32 %v3016, %v3017
  %v3019 = vrot.slane %v3018, 4
  %v3020 = vadd.f32 %v3018, %v3019
  %v3021 = vrot.slane %v3020, 2
  %v3022 = vadd.f32 %v3020, %v3021
  %v3023 = vrot.slane %v3022, 1
  %v3024 = vadd.f32 %v3022, %v3023
  %v3025 = vsub.f32 %v3007, 1.0
  %v3026 = vsub.f32 %v3024, 1.0
  %v3027 = vrcp.pop %v2966
  %v3028 = vmul.f32 %v3025, %v3027
  %v3029 = vrcp.pop %v2984
  %v3030 = vmul.f32 %v3026, %v3029
  %v3031 = vsub.f32 %v772, %v3028
  %v3032 = vsub.f32 %v804, %v3030
  %v3033 = vsub.f32 %v773, %v3028
  %v3034 = vsub.f32 %v805, %v3030
  %v3035 = vsub.f32 %v774, %v3028
  %v3036 = vsub.f32 %v806, %v3030
  %v3037 = vsub.f32 %v775, %v3028
  %v3038 = vsub.f32 %v807, %v3030
  %v3039 = vsub.f32 %v776, %v3028
  %v3040 = vsub.f32 %v808, %v3030
  %v3041 = vsub.f32 %v777, %v3028
  %v3042 = vsub.f32 %v809, %v3030
  %v3043 = vmax.f32 %v3031, 0.0
  %v3044 = vmax.f32 %v3032, 0.0
  %v3045 = vmax.f32 %v3033, 0.0
  %v3046 = vmax.f32 %v3034, 0.0
  %v3047 = vmax.f32 %v3035, 0.0
  %v3048 = vmax.f32 %v3036, 0.0
  %v3049 = vmax.f32 %v3037, 0.0
  %v3050 = vmax.f32 %v3038, 0.0
  %v3051 = vmax.f32 %v3039, 0.0
  %v3052 = vmax.f32 %v3040, 0.0
  %v3053 = vmax.f32 %v3041, 0.0
  %v3054 = vmax.f32 %v3042, 0.0
  %3055 = vxpose.xlu0.b32.start [1/16] %v3043, 128
  %3056 = vxpose.xlu0.b32.cont [2/16] %v3045, 128
  %3057 = vxpose.xlu0.b32.cont [3/16] %v3047, 128
  %3058 = vxpose.xlu0.b32.cont [4/16] %v3049, 128
  %3059 = vxpose.xlu0.b32.cont [5/16] %v3051, 128
  %3060 = vxpose.xlu0.b32.cont [6/16] %v3053, 128
  %3061 = vxpose.xlu0.b32.cont [7/16] 0.0, 128
  %3062 = vxpose.xlu0.b32.cont [8/16] 0.0, 128
  %3063 = vxpose.xlu0.b32.cont [9/16] 0.0, 128
  %3064 = vxpose.xlu0.b32.cont [10/16] 0.0, 128
  %3065 = vxpose.xlu0.b32.cont [11/16] 0.0, 128
  %3066 = vxpose.xlu0.b32.cont [12/16] 0.0, 128
  %3067 = vxpose.xlu0.b32.cont [13/16] 0.0, 128
  %3068 = vxpose.xlu0.b32.cont [14/16] 0.0, 128
  %3069 = vxpose.xlu0.b32.cont [15/16] 0.0, 128
  %3070 = vxpose.xlu0.b32.end [16/16] 0.0, 128
  %v3071 = vpop.trf.xlu0
  %v3072 = vpop.trf.xlu0
  %v3073 = vpop.trf.xlu0
  %v3074 = vpop.trf.xlu0
  %v3075 = vpop.trf.xlu0
  %v3076 = vpop.trf.xlu0
  %v3077 = vpop.trf.xlu0
  %v3078 = vpop.trf.xlu0
  %v3079 = vpop.trf.xlu0
  %v3080 = vpop.trf.xlu0
  %v3081 = vpop.trf.xlu0
  %v3082 = vpop.trf.xlu0
  %v3083 = vpop.trf.xlu0
  %v3084 = vpop.trf.xlu0
  %v3085 = vpop.trf.xlu0
  %v3086 = vpop.trf.xlu0
  %3087 = vxpose.xlu0.b32.start [1/16] %v3044, 128
  %3088 = vxpose.xlu0.b32.cont [2/16] %v3046, 128
  %3089 = vxpose.xlu0.b32.cont [3/16] %v3048, 128
  %3090 = vxpose.xlu0.b32.cont [4/16] %v3050, 128
  %3091 = vxpose.xlu0.b32.cont [5/16] %v3052, 128
  %3092 = vxpose.xlu0.b32.cont [6/16] %v3054, 128
  %3093 = vxpose.xlu0.b32.cont [7/16] 0.0, 128
  %3094 = vxpose.xlu0.b32.cont [8/16] 0.0, 128
  %3095 = vxpose.xlu0.b32.cont [9/16] 0.0, 128
  %3096 = vxpose.xlu0.b32.cont [10/16] 0.0, 128
  %3097 = vxpose.xlu0.b32.cont [11/16] 0.0, 128
  %3098 = vxpose.xlu0.b32.cont [12/16] 0.0, 128
  %3099 = vxpose.xlu0.b32.cont [13/16] 0.0, 128
  %3100 = vxpose.xlu0.b32.cont [14/16] 0.0, 128
  %3101 = vxpose.xlu0.b32.cont [15/16] 0.0, 128
  %3102 = vxpose.xlu0.b32.end [16/16] 0.0, 128
  %v3103 = vpop.trf.xlu0
  %v3104 = vpop.trf.xlu0
  %v3105 = vpop.trf.xlu0
  %v3106 = vpop.trf.xlu0
  %v3107 = vpop.trf.xlu0
  %v3108 = vpop.trf.xlu0
  %v3109 = vpop.trf.xlu0
  %v3110 = vpop.trf.xlu0
  %v3111 = vpop.trf.xlu0
  %v3112 = vpop.trf.xlu0
  %v3113 = vpop.trf.xlu0
  %v3114 = vpop.trf.xlu0
  %v3115 = vpop.trf.xlu0
  %v3116 = vpop.trf.xlu0
  %v3117 = vpop.trf.xlu0
  %v3118 = vpop.trf.xlu0
  %3119 = vrot.lane.b32.xlu0 %v137, 64
  %v3120 = vpop.permute.xlu0 %3119
  %3121 = vrot.lane.b32.xlu0 %v142, 64
  %v3122 = vpop.permute.xlu0 %3121
  %3123 = vrot.lane.b32.xlu0 %v147, 64
  %v3124 = vpop.permute.xlu0 %3123
  %3125 = vrot.lane.b32.xlu0 %v152, 64
  %v3126 = vpop.permute.xlu0 %3125
  %3127 = vrot.lane.b32.xlu0 %v157, 64
  %v3128 = vpop.permute.xlu0 %3127
  %3129 = vrot.lane.b32.xlu0 %v162, 64
  %v3130 = vpop.permute.xlu0 %3129
  %vm3137 = vcmask 392192
  %v3139 = vsel %vm3137, %v3071, 0
  %v3142 = vsel %vm3137, %v3072, 0
  %v3145 = vsel %vm3137, %v3073, 0
  %v3148 = vsel %vm3137, %v3074, 0
  %v3151 = vsel %vm3137, %v3075, 0
  %v3154 = vsel %vm3137, %v3076, 0
  %3156 = vmatprep.subr.mxu0 0.0
  %3157 = vmatpush1.msra.mxu0 %v3120
  %3158 = vmatprep.subr.mxu0 0.0
  %3159 = vmatpush1.msra.mxu0 %v3122
  %3160 = vmatprep.subr.mxu0 0.0
  %3161 = vmatpush1.msra.mxu0 %v3124
  %3162 = vmatprep.subr.mxu0 0.0
  %3163 = vmatpush1.msra.mxu0 %v3126
  %3164 = vmatprep.subr.mxu0 0.0
  %3165 = vmatpush1.msra.mxu0 %v3128
  %3166 = vmatprep.subr.mxu0 0.0
  %3167 = vmatpush1.msra.mxu0 %v3130
  %3168 = vmatprep.subr.mxu0 0.0
  %3169 = vmatpush1.msra.mxu0 0.0
  %3170 = vmatprep.subr.mxu0 0.0
  %3171 = vmatpush1.msra.mxu0 0.0
  %3172 = vmatprep.subr.mxu0 0.0
  %3173 = vmatpush1.msra.mxu0 0.0
  %3174 = vmatprep.subr.mxu0 0.0
  %3175 = vmatpush1.msra.mxu0 0.0
  %3176 = vmatprep.subr.mxu0 0.0
  %3177 = vmatpush1.msra.mxu0 0.0
  %3178 = vmatprep.subr.mxu0 0.0
  %3179 = vmatpush1.msra.mxu0 0.0
  %3180 = vmatprep.subr.mxu0 0.0
  %3181 = vmatpush1.msra.mxu0 0.0
  %3182 = vmatprep.subr.mxu0 0.0
  %3183 = vmatpush1.msra.mxu0 0.0
  %3184 = vmatprep.subr.mxu0 0.0
  %3185 = vmatpush1.msra.mxu0 0.0
  %3186 = vmatprep.subr.mxu0 0.0
  %3187 = vmatpush1.msra.mxu0 0.0
  %3188 = vmatprep.subr.mxu0 0.0
  %3189 = vmatpush1.msra.mxu0 0.0
  %3190 = vmatprep.subr.mxu0 0.0
  %3191 = vmatpush1.msra.mxu0 0.0
  %3192 = vmatprep.subr.mxu0 0.0
  %3193 = vmatpush1.msra.mxu0 0.0
  %3194 = vmatprep.subr.mxu0 0.0
  %3195 = vmatpush1.msra.mxu0 0.0
  %3196 = vmatprep.subr.mxu0 0.0
  %3197 = vmatpush1.msra.mxu0 0.0
  %3198 = vmatprep.subr.mxu0 0.0
  %3199 = vmatpush1.msra.mxu0 0.0
  %3200 = vmatprep.subr.mxu0 0.0
  %3201 = vmatpush1.msra.mxu0 0.0
  %3202 = vmatprep.subr.mxu0 0.0
  %3203 = vmatpush1.msra.mxu0 0.0
  %3204 = vmatprep.subr.mxu0 0.0
  %3205 = vmatpush1.msra.mxu0 0.0
  %3206 = vmatprep.subr.mxu0 0.0
  %3207 = vmatpush1.msra.mxu0 0.0
  %3208 = vmatprep.subr.mxu0 0.0
  %3209 = vmatpush1.msra.mxu0 0.0
  %3210 = vmatprep.subr.mxu0 0.0
  %3211 = vmatpush1.msra.mxu0 0.0
  %3212 = vmatprep.subr.mxu0 0.0
  %3213 = vmatpush1.msra.mxu0 0.0
  %3214 = vmatprep.subr.mxu0 0.0
  %3215 = vmatpush1.msra.mxu0 0.0
  %3216 = vmatprep.subr.mxu0 0.0
  %3217 = vmatpush1.msra.mxu0 0.0
  %3218 = vmatprep.subr.mxu0 0.0
  %3219 = vmatpush1.msra.mxu0 0.0
  %3220 = vmatprep.mubr.f32.mxu0 0.0
  %3221 = vmatmul.mubr.f32.gmra.mrb[0].mxu0 %v3139
  %v3222 = vpop.f32.mrb[0].mxu0
  %v3223 = vadd.f32 0.0, %v3222
  %v3224 = vpop.f32.mrb[0].mxu0
  %3225 = vmatprep.mubr.f32.mxu0 0.0
  %3226 = vmatmul.mubr.f32.gmra.mrb[0].mxu0 %v3142
  %v3227 = vpop.f32.mrb[0].mxu0
  %v3228 = vadd.f32 0.0, %v3227
  %v3229 = vpop.f32.mrb[0].mxu0
  %3230 = vmatprep.mubr.f32.mxu0 0.0
  %3231 = vmatmul.mubr.f32.gmra.mrb[0].mxu0 %v3145
  %v3232 = vpop.f32.mrb[0].mxu0
  %v3233 = vadd.f32 0.0, %v3232
  %v3234 = vpop.f32.mrb[0].mxu0
  %3235 = vmatprep.mubr.f32.mxu0 0.0
  %3236 = vmatmul.mubr.f32.gmra.mrb[0].mxu0 %v3148
  %v3237 = vpop.f32.mrb[0].mxu0
  %v3238 = vadd.f32 0.0, %v3237
  %v3239 = vpop.f32.mrb[0].mxu0
  %3240 = vmatprep.mubr.f32.mxu0 0.0
  %3241 = vmatmul.mubr.f32.gmra.mrb[0].mxu0 %v3151
  %v3242 = vpop.f32.mrb[0].mxu0
  %v3243 = vadd.f32 0.0, %v3242
  %v3244 = vpop.f32.mrb[0].mxu0
  %3245 = vmatprep.mubr.f32.mxu0 0.0
  %3246 = vmatmul.mubr.f32.gmra.mrb[0].mxu0 %v3154
  %v3247 = vpop.f32.mrb[0].mxu0
  %v3248 = vadd.f32 0.0, %v3247
  %v3249 = vpop.f32.mrb[0].mxu0
  %3250 = vdwg.mxu0
  %3251 = vrot.lane.b32.xlu0 %v167, 64
  %v3252 = vpop.permute.xlu0 %3251
  %3253 = vrot.lane.b32.xlu0 %v172, 64
  %v3254 = vpop.permute.xlu0 %3253
  %3255 = vrot.lane.b32.xlu0 %v177, 64
  %v3256 = vpop.permute.xlu0 %3255
  %3257 = vrot.lane.b32.xlu0 %v182, 64
  %v3258 = vpop.permute.xlu0 %3257
  %3259 = vrot.lane.b32.xlu0 %v187, 64
  %v3260 = vpop.permute.xlu0 %3259
  %3261 = vrot.lane.b32.xlu0 %v192, 64
  %v3262 = vpop.permute.xlu0 %3261
  %v3270 = vsel %vm3137, %v3077, 0
  %v3273 = vsel %vm3137, %v3078, 0
  %v3276 = vsel %vm3137, %v3079, 0
  %v3279 = vsel %vm3137, %v3080, 0
  %v3282 = vsel %vm3137, %v3081, 0
  %v3285 = vsel %vm3137, %v3082, 0
  %3287 = vmatprep.subr.mxu0 0.0
  %3288 = vmatpush1.msra.mxu0 %v3252
  %3289 = vmatprep.subr.mxu0 0.0
  %3290 = vmatpush1.msra.mxu0 %v3254
  %3291 = vmatprep.subr.mxu0 0.0
  %3292 = vmatpush1.msra.mxu0 %v3256
  %3293 = vmatprep.subr.mxu0 0.0
  %3294 = vmatpush1.msra.mxu0 %v3258
  %3295 = vmatprep.subr.mxu0 0.0
  %3296 = vmatpush1.msra.mxu0 %v3260
  %3297 = vmatprep.subr.mxu0 0.0
  %3298 = vmatpush1.msra.mxu0 %v3262
  %3299 = vmatprep.subr.mxu0 0.0
  %3300 = vmatpush1.msra.mxu0 0.0
  %3301 = vmatprep.subr.mxu0 0.0
  %3302 = vmatpush1.msra.mxu0 0.0
  %3303 = vmatprep.subr.mxu0 0.0
  %3304 = vmatpush1.msra.mxu0 0.0
  %3305 = vmatprep.subr.mxu0 0.0
  %3306 = vmatpush1.msra.mxu0 0.0
  %3307 = vmatprep.subr.mxu0 0.0
  %3308 = vmatpush1.msra.mxu0 0.0
  %3309 = vmatprep.subr.mxu0 0.0
  %3310 = vmatpush1.msra.mxu0 0.0
  %3311 = vmatprep.subr.mxu0 0.0
  %3312 = vmatpush1.msra.mxu0 0.0
  %3313 = vmatprep.subr.mxu0 0.0
  %3314 = vmatpush1.msra.mxu0 0.0
  %3315 = vmatprep.subr.mxu0 0.0
  %3316 = vmatpush1.msra.mxu0 0.0
  %3317 = vmatprep.subr.mxu0 0.0
  %3318 = vmatpush1.msra.mxu0 0.0
  %3319 = vmatprep.subr.mxu0 0.0
  %3320 = vmatpush1.msra.mxu0 0.0
  %3321 = vmatprep.subr.mxu0 0.0
  %3322 = vmatpush1.msra.mxu0 0.0
  %3323 = vmatprep.subr.mxu0 0.0
  %3324 = vmatpush1.msra.mxu0 0.0
  %3325 = vmatprep.subr.mxu0 0.0
  %3326 = vmatpush1.msra.mxu0 0.0
  %3327 = vmatprep.subr.mxu0 0.0
  %3328 = vmatpush1.msra.mxu0 0.0
  %3329 = vmatprep.subr.mxu0 0.0
  %3330 = vmatpush1.msra.mxu0 0.0
  %3331 = vmatprep.subr.mxu0 0.0
  %3332 = vmatpush1.msra.mxu0 0.0
  %3333 = vmatprep.subr.mxu0 0.0
  %3334 = vmatpush1.msra.mxu0 0.0
  %3335 = vmatprep.subr.mxu0 0.0
  %3336 = vmatpush1.msra.mxu0 0.0
  %3337 = vmatprep.subr.mxu0 0.0
  %3338 = vmatpush1.msra.mxu0 0.0
  %3339 = vmatprep.subr.mxu0 0.0
  %3340 = vmatpush1.msra.mxu0 0.0
  %3341 = vmatprep.subr.mxu0 0.0
  %3342 = vmatpush1.msra.mxu0 0.0
  %3343 = vmatprep.subr.mxu0 0.0
  %3344 = vmatpush1.msra.mxu0 0.0
  %3345 = vmatprep.subr.mxu0 0.0
  %3346 = vmatpush1.msra.mxu0 0.0
  %3347 = vmatprep.subr.mxu0 0.0
  %3348 = vmatpush1.msra.mxu0 0.0
  %3349 = vmatprep.subr.mxu0 0.0
  %3350 = vmatpush1.msra.mxu0 0.0
  %3351 = vmatprep.mubr.f32.mxu0 0.0
  %3352 = vmatmul.mubr.f32.gmra.mrb[0].mxu0 %v3270
  %v3353 = vpop.f32.mrb[0].mxu0
  %v3354 = vadd.f32 0.0, %v3353
  %v3355 = vpop.f32.mrb[0].mxu0
  %3356 = vmatprep.mubr.f32.mxu0 0.0
  %3357 = vmatmul.mubr.f32.gmra.mrb[0].mxu0 %v3273
  %v3358 = vpop.f32.mrb[0].mxu0
  %v3359 = vadd.f32 0.0, %v3358
  %v3360 = vpop.f32.mrb[0].mxu0
  %3361 = vmatprep.mubr.f32.mxu0 0.0
  %3362 = vmatmul.mubr.f32.gmra.mrb[0].mxu0 %v3276
  %v3363 = vpop.f32.mrb[0].mxu0
  %v3364 = vadd.f32 0.0, %v3363
  %v3365 = vpop.f32.mrb[0].mxu0
  %3366 = vmatprep.mubr.f32.mxu0 0.0
  %3367 = vmatmul.mubr.f32.gmra.mrb[0].mxu0 %v3279
  %v3368 = vpop.f32.mrb[0].mxu0
  %v3369 = vadd.f32 0.0, %v3368
  %v3370 = vpop.f32.mrb[0].mxu0
  %3371 = vmatprep.mubr.f32.mxu0 0.0
  %3372 = vmatmul.mubr.f32.gmra.mrb[0].mxu0 %v3282
  %v3373 = vpop.f32.mrb[0].mxu0
  %v3374 = vadd.f32 0.0, %v3373
  %v3375 = vpop.f32.mrb[0].mxu0
  %3376 = vmatprep.mubr.f32.mxu0 0.0
  %3377 = vmatmul.mubr.f32.gmra.mrb[0].mxu0 %v3285
  %v3378 = vpop.f32.mrb[0].mxu0
  %v3379 = vadd.f32 0.0, %v3378
  %v3380 = vpop.f32.mrb[0].mxu0
  %3381 = vdwg.mxu0
  %3382 = vrot.lane.b32.xlu0 %v208, 64
  %v3383 = vpop.permute.xlu0 %3382
  %3384 = vrot.lane.b32.xlu0 %v210, 64
  %v3385 = vpop.permute.xlu0 %3384
  %3386 = vrot.lane.b32.xlu0 %v212, 64
  %v3387 = vpop.permute.xlu0 %3386
  %3388 = vrot.lane.b32.xlu0 %v214, 64
  %v3389 = vpop.permute.xlu0 %3388
  %3390 = vrot.lane.b32.xlu0 %v216, 64
  %v3391 = vpop.permute.xlu0 %3390
  %3392 = vrot.lane.b32.xlu0 %v218, 64
  %v3393 = vpop.permute.xlu0 %3392
  %v3401 = vsel %vm3137, %v3083, 0
  %v3404 = vsel %vm3137, %v3084, 0
  %v3407 = vsel %vm3137, %v3085, 0
  %v3410 = vsel %vm3137, %v3086, 0
  %v3413 = vsel %vm3137, %v3103, 0
  %v3416 = vsel %vm3137, %v3104, 0
  %3418 = vmatprep.subr.mxu0 0.0
  %3419 = vmatpush1.msra.mxu0 %v3383
  %3420 = vmatprep.subr.mxu0 0.0
  %3421 = vmatpush1.msra.mxu0 %v3385
  %3422 = vmatprep.subr.mxu0 0.0
  %3423 = vmatpush1.msra.mxu0 %v3387
  %3424 = vmatprep.subr.mxu0 0.0
  %3425 = vmatpush1.msra.mxu0 %v3389
  %3426 = vmatprep.subr.mxu0 0.0
  %3427 = vmatpush1.msra.mxu0 %v3391
  %3428 = vmatprep.subr.mxu0 0.0
  %3429 = vmatpush1.msra.mxu0 %v3393
  %3430 = vmatprep.subr.mxu0 0.0
  %3431 = vmatpush1.msra.mxu0 0.0
  %3432 = vmatprep.subr.mxu0 0.0
  %3433 = vmatpush1.msra.mxu0 0.0
  %3434 = vmatprep.subr.mxu0 0.0
  %3435 = vmatpush1.msra.mxu0 0.0
  %3436 = vmatprep.subr.mxu0 0.0
  %3437 = vmatpush1.msra.mxu0 0.0
  %3438 = vmatprep.subr.mxu0 0.0
  %3439 = vmatpush1.msra.mxu0 0.0
  %3440 = vmatprep.subr.mxu0 0.0
  %3441 = vmatpush1.msra.mxu0 0.0
  %3442 = vmatprep.subr.mxu0 0.0
  %3443 = vmatpush1.msra.mxu0 0.0
  %3444 = vmatprep.subr.mxu0 0.0
  %3445 = vmatpush1.msra.mxu0 0.0
  %3446 = vmatprep.subr.mxu0 0.0
  %3447 = vmatpush1.msra.mxu0 0.0
  %3448 = vmatprep.subr.mxu0 0.0
  %3449 = vmatpush1.msra.mxu0 0.0
  %3450 = vmatprep.subr.mxu0 0.0
  %3451 = vmatpush1.msra.mxu0 0.0
  %3452 = vmatprep.subr.mxu0 0.0
  %3453 = vmatpush1.msra.mxu0 0.0
  %3454 = vmatprep.subr.mxu0 0.0
  %3455 = vmatpush1.msra.mxu0 0.0
  %3456 = vmatprep.subr.mxu0 0.0
  %3457 = vmatpush1.msra.mxu0 0.0
  %3458 = vmatprep.subr.mxu0 0.0
  %3459 = vmatpush1.msra.mxu0 0.0
  %3460 = vmatprep.subr.mxu0 0.0
  %3461 = vmatpush1.msra.mxu0 0.0
  %3462 = vmatprep.subr.mxu0 0.0
  %3463 = vmatpush1.msra.mxu0 0.0
  %3464 = vmatprep.subr.mxu0 0.0
  %3465 = vmatpush1.msra.mxu0 0.0
  %3466 = vmatprep.subr.mxu0 0.0
  %3467 = vmatpush1.msra.mxu0 0.0
  %3468 = vmatprep.subr.mxu0 0.0
  %3469 = vmatpush1.msra.mxu0 0.0
  %3470 = vmatprep.subr.mxu0 0.0
  %3471 = vmatpush1.msra.mxu0 0.0
  %3472 = vmatprep.subr.mxu0 0.0
  %3473 = vmatpush1.msra.mxu0 0.0
  %3474 = vmatprep.subr.mxu0 0.0
  %3475 = vmatpush1.msra.mxu0 0.0
  %3476 = vmatprep.subr.mxu0 0.0
  %3477 = vmatpush1.msra.mxu0 0.0
  %3478 = vmatprep.subr.mxu0 0.0
  %3479 = vmatpush1.msra.mxu0 0.0
  %3480 = vmatprep.subr.mxu0 0.0
  %3481 = vmatpush1.msra.mxu0 0.0
  %3482 = vmatprep.mubr.f32.mxu0 0.0
  %3483 = vmatmul.mubr.f32.gmra.mrb[0].mxu0 %v3401
  %v3484 = vpop.f32.mrb[0].mxu0
  %v3485 = vadd.f32 0.0, %v3484
  %v3486 = vpop.f32.mrb[0].mxu0
  %3487 = vmatprep.mubr.f32.mxu0 0.0
  %3488 = vmatmul.mubr.f32.gmra.mrb[0].mxu0 %v3404
  %v3489 = vpop.f32.mrb[0].mxu0
  %v3490 = vadd.f32 0.0, %v3489
  %v3491 = vpop.f32.mrb[0].mxu0
  %3492 = vmatprep.mubr.f32.mxu0 0.0
  %3493 = vmatmul.mubr.f32.gmra.mrb[0].mxu0 %v3407
  %v3494 = vpop.f32.mrb[0].mxu0
  %v3495 = vadd.f32 0.0, %v3494
  %v3496 = vpop.f32.mrb[0].mxu0
  %3497 = vmatprep.mubr.f32.mxu0 0.0
  %3498 = vmatmul.mubr.f32.gmra.mrb[0].mxu0 %v3410
  %v3499 = vpop.f32.mrb[0].mxu0
  %v3500 = vadd.f32 0.0, %v3499
  %v3501 = vpop.f32.mrb[0].mxu0
  %3502 = vmatprep.mubr.f32.mxu0 0.0
  %3503 = vmatmul.mubr.f32.gmra.mrb[0].mxu0 %v3413
  %v3504 = vpop.f32.mrb[0].mxu0
  %v3505 = vadd.f32 0.0, %v3504
  %v3506 = vpop.f32.mrb[0].mxu0
  %3507 = vmatprep.mubr.f32.mxu0 0.0
  %3508 = vmatmul.mubr.f32.gmra.mrb[0].mxu0 %v3416
  %v3509 = vpop.f32.mrb[0].mxu0
  %v3510 = vadd.f32 0.0, %v3509
  %v3511 = vpop.f32.mrb[0].mxu0
  %3512 = vdwg.mxu0
  %3513 = vrot.lane.b32.xlu0 %v220, 64
  %v3514 = vpop.permute.xlu0 %3513
  %3515 = vrot.lane.b32.xlu0 %v222, 64
  %v3516 = vpop.permute.xlu0 %3515
  %3517 = vrot.lane.b32.xlu0 %v224, 64
  %v3518 = vpop.permute.xlu0 %3517
  %3519 = vrot.lane.b32.xlu0 %v226, 64
  %v3520 = vpop.permute.xlu0 %3519
  %3521 = vrot.lane.b32.xlu0 %v228, 64
  %v3522 = vpop.permute.xlu0 %3521
  %3523 = vrot.lane.b32.xlu0 %v230, 64
  %v3524 = vpop.permute.xlu0 %3523
  %v3532 = vsel %vm3137, %v3105, 0
  %v3535 = vsel %vm3137, %v3106, 0
  %v3538 = vsel %vm3137, %v3107, 0
  %v3541 = vsel %vm3137, %v3108, 0
  %v3544 = vsel %vm3137, %v3109, 0
  %v3547 = vsel %vm3137, %v3110, 0
  %3549 = vmatprep.subr.mxu0 0.0
  %3550 = vmatpush1.msra.mxu0 %v3514
  %3551 = vmatprep.subr.mxu0 0.0
  %3552 = vmatpush1.msra.mxu0 %v3516
  %3553 = vmatprep.subr.mxu0 0.0
  %3554 = vmatpush1.msra.mxu0 %v3518
  %3555 = vmatprep.subr.mxu0 0.0
  %3556 = vmatpush1.msra.mxu0 %v3520
  %3557 = vmatprep.subr.mxu0 0.0
  %3558 = vmatpush1.msra.mxu0 %v3522
  %3559 = vmatprep.subr.mxu0 0.0
  %3560 = vmatpush1.msra.mxu0 %v3524
  %3561 = vmatprep.subr.mxu0 0.0
  %3562 = vmatpush1.msra.mxu0 0.0
  %3563 = vmatprep.subr.mxu0 0.0
  %3564 = vmatpush1.msra.mxu0 0.0
  %3565 = vmatprep.subr.mxu0 0.0
  %3566 = vmatpush1.msra.mxu0 0.0
  %3567 = vmatprep.subr.mxu0 0.0
  %3568 = vmatpush1.msra.mxu0 0.0
  %3569 = vmatprep.subr.mxu0 0.0
  %3570 = vmatpush1.msra.mxu0 0.0
  %3571 = vmatprep.subr.mxu0 0.0
  %3572 = vmatpush1.msra.mxu0 0.0
  %3573 = vmatprep.subr.mxu0 0.0
  %3574 = vmatpush1.msra.mxu0 0.0
  %3575 = vmatprep.subr.mxu0 0.0
  %3576 = vmatpush1.msra.mxu0 0.0
  %3577 = vmatprep.subr.mxu0 0.0
  %3578 = vmatpush1.msra.mxu0 0.0
  %3579 = vmatprep.subr.mxu0 0.0
  %3580 = vmatpush1.msra.mxu0 0.0
  %3581 = vmatprep.subr.mxu0 0.0
  %3582 = vmatpush1.msra.mxu0 0.0
  %3583 = vmatprep.subr.mxu0 0.0
  %3584 = vmatpush1.msra.mxu0 0.0
  %3585 = vmatprep.subr.mxu0 0.0
  %3586 = vmatpush1.msra.mxu0 0.0
  %3587 = vmatprep.subr.mxu0 0.0
  %3588 = vmatpush1.msra.mxu0 0.0
  %3589 = vmatprep.subr.mxu0 0.0
  %3590 = vmatpush1.msra.mxu0 0.0
  %3591 = vmatprep.subr.mxu0 0.0
  %3592 = vmatpush1.msra.mxu0 0.0
  %3593 = vmatprep.subr.mxu0 0.0
  %3594 = vmatpush1.msra.mxu0 0.0
  %3595 = vmatprep.subr.mxu0 0.0
  %3596 = vmatpush1.msra.mxu0 0.0
  %3597 = vmatprep.subr.mxu0 0.0
  %3598 = vmatpush1.msra.mxu0 0.0
  %3599 = vmatprep.subr.mxu0 0.0
  %3600 = vmatpush1.msra.mxu0 0.0
  %3601 = vmatprep.subr.mxu0 0.0
  %3602 = vmatpush1.msra.mxu0 0.0
  %3603 = vmatprep.subr.mxu0 0.0
  %3604 = vmatpush1.msra.mxu0 0.0
  %3605 = vmatprep.subr.mxu0 0.0
  %3606 = vmatpush1.msra.mxu0 0.0
  %3607 = vmatprep.subr.mxu0 0.0
  %3608 = vmatpush1.msra.mxu0 0.0
  %3609 = vmatprep.subr.mxu0 0.0
  %3610 = vmatpush1.msra.mxu0 0.0
  %3611 = vmatprep.subr.mxu0 0.0
  %3612 = vmatpush1.msra.mxu0 0.0
  %3613 = vmatprep.mubr.f32.mxu0 0.0
  %3614 = vmatmul.mubr.f32.gmra.mrb[0].mxu0 %v3532
  %v3615 = vpop.f32.mrb[0].mxu0
  %v3616 = vadd.f32 0.0, %v3615
  %v3617 = vpop.f32.mrb[0].mxu0
  %3618 = vmatprep.mubr.f32.mxu0 0.0
  %3619 = vmatmul.mubr.f32.gmra.mrb[0].mxu0 %v3535
  %v3620 = vpop.f32.mrb[0].mxu0
  %v3621 = vadd.f32 0.0, %v3620
  %v3622 = vpop.f32.mrb[0].mxu0
  %3623 = vmatprep.mubr.f32.mxu0 0.0
  %3624 = vmatmul.mubr.f32.gmra.mrb[0].mxu0 %v3538
  %v3625 = vpop.f32.mrb[0].mxu0
  %v3626 = vadd.f32 0.0, %v3625
  %v3627 = vpop.f32.mrb[0].mxu0
  %3628 = vmatprep.mubr.f32.mxu0 0.0
  %3629 = vmatmul.mubr.f32.gmra.mrb[0].mxu0 %v3541
  %v3630 = vpop.f32.mrb[0].mxu0
  %v3631 = vadd.f32 0.0, %v3630
  %v3632 = vpop.f32.mrb[0].mxu0
  %3633 = vmatprep.mubr.f32.mxu0 0.0
  %3634 = vmatmul.mubr.f32.gmra.mrb[0].mxu0 %v3544
  %v3635 = vpop.f32.mrb[0].mxu0
  %v3636 = vadd.f32 0.0, %v3635
  %v3637 = vpop.f32.mrb[0].mxu0
  %3638 = vmatprep.mubr.f32.mxu0 0.0
  %3639 = vmatmul.mubr.f32.gmra.mrb[0].mxu0 %v3547
  %v3640 = vpop.f32.mrb[0].mxu0
  %v3641 = vadd.f32 0.0, %v3640
  %v3642 = vpop.f32.mrb[0].mxu0
  %3643 = vdwg.mxu0
  %3656 = vrot.lane.b32.xlu0 %v3485, 16
  %v3657 = vpop.permute.xlu0 %3656
  %3658 = vrot.lane.b32.xlu0 %v3490, 16
  %v3659 = vpop.permute.xlu0 %3658
  %3660 = vrot.lane.b32.xlu0 %v3495, 16
  %v3661 = vpop.permute.xlu0 %3660
  %3662 = vrot.lane.b32.xlu0 %v3500, 16
  %v3663 = vpop.permute.xlu0 %3662
  %3664 = vrot.lane.b32.xlu0 %v3505, 16
  %v3665 = vpop.permute.xlu0 %3664
  %3666 = vrot.lane.b32.xlu0 %v3510, 16
  %v3667 = vpop.permute.xlu0 %3666
  %3668 = vrot.lane.b32.xlu0 %v3616, 16
  %v3669 = vpop.permute.xlu0 %3668
  %3670 = vrot.lane.b32.xlu0 %v3621, 16
  %v3671 = vpop.permute.xlu0 %3670
  %3672 = vrot.lane.b32.xlu0 %v3626, 16
  %v3673 = vpop.permute.xlu0 %3672
  %3674 = vrot.lane.b32.xlu0 %v3631, 16
  %v3675 = vpop.permute.xlu0 %3674
  %3676 = vrot.lane.b32.xlu0 %v3636, 16
  %v3677 = vpop.permute.xlu0 %3676
  %3678 = vrot.lane.b32.xlu0 %v3641, 16
  %v3679 = vpop.permute.xlu0 %3678
  %v3692 = vsel %vm243, %v3223, %v3657
  %v3693 = vsel %vm243, %v3228, %v3659
  %v3694 = vsel %vm243, %v3233, %v3661
  %v3695 = vsel %vm243, %v3238, %v3663
  %v3696 = vsel %vm243, %v3243, %v3665
  %v3697 = vsel %vm243, %v3248, %v3667
  %v3698 = vsel %vm243, %v3354, %v3669
  %v3699 = vsel %vm243, %v3359, %v3671
  %v3700 = vsel %vm243, %v3364, %v3673
  %v3701 = vsel %vm243, %v3369, %v3675
  %v3702 = vsel %vm243, %v3374, %v3677
  %v3703 = vsel %vm243, %v3379, %v3679
  %v3704 = vld [vmem:[%s2] sm:$0xff]
  %v3705 = vld [vmem:[%s2 + $0x8] sm:$0xff]
  %v3706 = vld [vmem:[%s2 + $0x10] sm:$0xff]
  %v3707 = vld [vmem:[%s2 + $0x18] sm:$0xff]
  %v3708 = vld [vmem:[%s3] sm:$0x1]
  %v3710 = vlaneseq
  %v3711 = vshrl.u32 %v3710, 7
  %v3712 = vsub.s32 0, %v3711
  %v3713 = vrot.slane %v3708, %v3712
  %v3716 = vsel %vm33, %v3692, 0
  %v3719 = vsel %vm33, %v3693, 0
  %v3722 = vsel %vm33, %v3694, 0
  %v3725 = vsel %vm33, %v3695, 0
  %v3728 = vsel %vm33, %v3696, 0
  %v3731 = vsel %vm33, %v3697, 0
  %v3734 = vsel %vm33, %v3698, 0
  %v3737 = vsel %vm33, %v3699, 0
  %v3740 = vsel %vm33, %v3700, 0
  %v3743 = vsel %vm33, %v3701, 0
  %v3746 = vsel %vm33, %v3702, 0
  %v3749 = vsel %vm33, %v3703, 0
  %3751 = vmatprep.subr.mxu0 0.0
  %3752 = vmatpush1.msra.mxu0 %v3704
  %3753 = vmatprep.subr.mxu0 0.0
  %3754 = vmatpush1.msra.mxu0 %v3705
  %3755 = vmatprep.subr.mxu0 0.0
  %3756 = vmatpush1.msra.mxu0 %v3706
  %3757 = vmatprep.subr.mxu0 0.0
  %3758 = vmatpush1.msra.mxu0 %v3707
  %3759 = vmatprep.subr.mxu0 0.0
  %3760 = vmatpush1.msra.mxu0 0.0
  %3761 = vmatprep.subr.mxu0 0.0
  %3762 = vmatpush1.msra.mxu0 0.0
  %3763 = vmatprep.subr.mxu0 0.0
  %3764 = vmatpush1.msra.mxu0 0.0
  %3765 = vmatprep.subr.mxu0 0.0
  %3766 = vmatpush1.msra.mxu0 0.0
  %3767 = vmatprep.subr.mxu0 0.0
  %3768 = vmatpush1.msra.mxu0 0.0
  %3769 = vmatprep.subr.mxu0 0.0
  %3770 = vmatpush1.msra.mxu0 0.0
  %3771 = vmatprep.subr.mxu0 0.0
  %3772 = vmatpush1.msra.mxu0 0.0
  %3773 = vmatprep.subr.mxu0 0.0
  %3774 = vmatpush1.msra.mxu0 0.0
  %3775 = vmatprep.subr.mxu0 0.0
  %3776 = vmatpush1.msra.mxu0 0.0
  %3777 = vmatprep.subr.mxu0 0.0
  %3778 = vmatpush1.msra.mxu0 0.0
  %3779 = vmatprep.subr.mxu0 0.0
  %3780 = vmatpush1.msra.mxu0 0.0
  %3781 = vmatprep.subr.mxu0 0.0
  %3782 = vmatpush1.msra.mxu0 0.0
  %3783 = vmatprep.subr.mxu0 0.0
  %3784 = vmatpush1.msra.mxu0 0.0
  %3785 = vmatprep.subr.mxu0 0.0
  %3786 = vmatpush1.msra.mxu0 0.0
  %3787 = vmatprep.subr.mxu0 0.0
  %3788 = vmatpush1.msra.mxu0 0.0
  %3789 = vmatprep.subr.mxu0 0.0
  %3790 = vmatpush1.msra.mxu0 0.0
  %3791 = vmatprep.subr.mxu0 0.0
  %3792 = vmatpush1.msra.mxu0 0.0
  %3793 = vmatprep.subr.mxu0 0.0
  %3794 = vmatpush1.msra.mxu0 0.0
  %3795 = vmatprep.subr.mxu0 0.0
  %3796 = vmatpush1.msra.mxu0 0.0
  %3797 = vmatprep.subr.mxu0 0.0
  %3798 = vmatpush1.msra.mxu0 0.0
  %3799 = vmatprep.subr.mxu0 0.0
  %3800 = vmatpush1.msra.mxu0 0.0
  %3801 = vmatprep.subr.mxu0 0.0
  %3802 = vmatpush1.msra.mxu0 0.0
  %3803 = vmatprep.subr.mxu0 0.0
  %3804 = vmatpush1.msra.mxu0 0.0
  %3805 = vmatprep.subr.mxu0 0.0
  %3806 = vmatpush1.msra.mxu0 0.0
  %3807 = vmatprep.subr.mxu0 0.0
  %3808 = vmatpush1.msra.mxu0 0.0
  %3809 = vmatprep.subr.mxu0 0.0
  %3810 = vmatpush1.msra.mxu0 0.0
  %3811 = vmatprep.subr.mxu0 0.0
  %3812 = vmatpush1.msra.mxu0 0.0
  %3813 = vmatprep.subr.mxu0 0.0
  %3814 = vmatpush1.msra.mxu0 0.0
  %3815 = vmatprep.mubr.f32.mxu0 0.0
  %3816 = vmatmul.mubr.f32.gmra.mrb[0].mxu0 %v3716
  %v3817 = vpop.f32.mrb[0].mxu0
  %v3818 = vadd.f32 %v3713, %v3817
  %v3819 = vpop.f32.mrb[0].mxu0
  %3820 = vmatprep.mubr.f32.mxu0 0.0
  %3821 = vmatmul.mubr.f32.gmra.mrb[0].mxu0 %v3719
  %v3822 = vpop.f32.mrb[0].mxu0
  %v3823 = vadd.f32 %v3713, %v3822
  %v3824 = vpop.f32.mrb[0].mxu0
  %3825 = vmatprep.mubr.f32.mxu0 0.0
  %3826 = vmatmul.mubr.f32.gmra.mrb[0].mxu0 %v3722
  %v3827 = vpop.f32.mrb[0].mxu0
  %v3828 = vadd.f32 %v3713, %v3827
  %v3829 = vpop.f32.mrb[0].mxu0
  %3830 = vmatprep.mubr.f32.mxu0 0.0
  %3831 = vmatmul.mubr.f32.gmra.mrb[0].mxu0 %v3725
  %v3832 = vpop.f32.mrb[0].mxu0
  %v3833 = vadd.f32 %v3713, %v3832
  %v3834 = vpop.f32.mrb[0].mxu0
  %3835 = vmatprep.mubr.f32.mxu0 0.0
  %3836 = vmatmul.mubr.f32.gmra.mrb[0].mxu0 %v3728
  %v3837 = vpop.f32.mrb[0].mxu0
  %v3838 = vadd.f32 %v3713, %v3837
  %v3839 = vpop.f32.mrb[0].mxu0
  %3840 = vmatprep.mubr.f32.mxu0 0.0
  %3841 = vmatmul.mubr.f32.gmra.mrb[0].mxu0 %v3731
  %v3842 = vpop.f32.mrb[0].mxu0
  %v3843 = vadd.f32 %v3713, %v3842
  %v3844 = vpop.f32.mrb[0].mxu0
  %3845 = vmatprep.mubr.f32.mxu0 0.0
  %3846 = vmatmul.mubr.f32.gmra.mrb[0].mxu0 %v3734
  %v3847 = vpop.f32.mrb[0].mxu0
  %v3848 = vadd.f32 %v3713, %v3847
  %v3849 = vpop.f32.mrb[0].mxu0
  %3850 = vmatprep.mubr.f32.mxu0 0.0
  %3851 = vmatmul.mubr.f32.gmra.mrb[0].mxu0 %v3737
  %v3852 = vpop.f32.mrb[0].mxu0
  %v3853 = vadd.f32 %v3713, %v3852
  %v3854 = vpop.f32.mrb[0].mxu0
  %3855 = vmatprep.mubr.f32.mxu0 0.0
  %3856 = vmatmul.mubr.f32.gmra.mrb[0].mxu0 %v3740
  %v3857 = vpop.f32.mrb[0].mxu0
  %v3858 = vadd.f32 %v3713, %v3857
  %v3859 = vpop.f32.mrb[0].mxu0
  %3860 = vmatprep.mubr.f32.mxu0 0.0
  %3861 = vmatmul.mubr.f32.gmra.mrb[0].mxu0 %v3743
  %v3862 = vpop.f32.mrb[0].mxu0
  %v3863 = vadd.f32 %v3713, %v3862
  %v3864 = vpop.f32.mrb[0].mxu0
  %3865 = vmatprep.mubr.f32.mxu0 0.0
  %3866 = vmatmul.mubr.f32.gmra.mrb[0].mxu0 %v3746
  %v3867 = vpop.f32.mrb[0].mxu0
  %v3868 = vadd.f32 %v3713, %v3867
  %v3869 = vpop.f32.mrb[0].mxu0
  %3870 = vmatprep.mubr.f32.mxu0 0.0
  %3871 = vmatmul.mubr.f32.gmra.mrb[0].mxu0 %v3749
  %v3872 = vpop.f32.mrb[0].mxu0
  %v3873 = vadd.f32 %v3713, %v3872
  %v3874 = vpop.f32.mrb[0].mxu0
  %3875 = vdwg.mxu0
  %3876 = vst.msk [vmem:[%s4] sm:$0xff] %vm33, %v3818
  %3877 = vst.msk [vmem:[%s4 + $0x8] sm:$0xff] %vm33, %v3823
  %3878 = vst.msk [vmem:[%s4 + $0x10] sm:$0xff] %vm33, %v3828
  %3879 = vst.msk [vmem:[%s4 + $0x18] sm:$0xff] %vm33, %v3833
  %3880 = vst.msk [vmem:[%s4 + $0x20] sm:$0xff] %vm33, %v3838
  %3881 = vst.msk [vmem:[%s4 + $0x28] sm:$0xff] %vm33, %v3843
  %3882 = vst.msk [vmem:[%s4 + $0x30] sm:$0xff] %vm33, %v3848
  %3883 = vst.msk [vmem:[%s4 + $0x38] sm:$0xff] %vm33, %v3853
  %3884 = vst.msk [vmem:[%s4 + $0x40] sm:$0xff] %vm33, %v3858
  %3885 = vst.msk [vmem:[%s4 + $0x48] sm:$0xff] %vm33, %v3863
  %3886 = vst.msk [vmem:[%s4 + $0x50] sm:$0xff] %vm33, %v3868
  %3887 = vst.msk [vmem:[%s4 + $0x58] sm:$0xff] %vm33, %v3873
  // Predicated region
  $region18: #{tpu_custom_call.1} parent=0 // pred_check
    _
  $region19: #{tpu_custom_call.1} parent=0 // pred_check_branch
    %3889 = sbr.rel (0) target = $region21
  $region20: #{tpu_custom_call.1} parent=0 // pred_region
    _
  $region21: #{tpu_custom_call.1} parent=0 // pred_fallthru
    _
  // Predicated region
  $region22: #{tpu_custom_call.1} parent=0 // pred_check
    _
  $region23: #{tpu_custom_call.1} parent=0 // pred_check_branch
    %3891 = sbr.rel (0) target = $region25
  $region24: #{tpu_custom_call.1} parent=0 // pred_region
    _
  $region25: #{tpu_custom_call.1} parent=0 // pred_fallthru
    _

</llo_original>
